<compile_context>
chip_gen: v6e
topology: v6e:2x2x1
jax: 0.10.0
libtpu: 0.0.40
codegen_flags: <defaults>
</compile_context>

<pallas_src>
import jax
import jax.numpy as jnp
from jax import lax
from jax.experimental import pallas as pl
from jax.experimental.pallas import tpu as pltpu

H = 128  # mlp_hidden_size['rnn']


def _round_up(x, m):
    return (x + m - 1) // m * m


def traj_linear_kernel(x_ref, wih_ref, whh_ref, bih_ref, bhh_ref,
                       wmlp_ref, bmlp_ref, out_ref, gi_ref):
    """normalize -> (hoisted input projection) -> GRU recurrence -> Linear -> Softplus.

    x_ref   : (T, B_blk, F)   time-major input tile (one batch block)
    wih_ref : (F, 3H)         GRU input weights, pre-transposed, gate order [r|z|n]
    whh_ref : (H, 3H)         GRU hidden weights, pre-transposed
    bih/bhh : (1, 3H)
    wmlp_ref: (H, OUT), bmlp_ref: (1, OUT)
    gi_ref  : (T, B_blk, 3H)  VMEM scratch for the hoisted input projection
    """
    T, Bb, F = x_ref.shape

    # --- F.normalize(x, p=2, dim=1) on (B,T,F)  ==  L2 norm over axis 0 of (T,B,F) ---
    x = x_ref[...].astype(jnp.float32)                       # single load of the tile
    nrm = jnp.sqrt(jnp.sum(x * x, axis=0))                   # (Bb, F)
    inv_nrm = 1.0 / jnp.maximum(nrm, 1e-12)                  # computed once (torch eps)

    wih = wih_ref[...]                                       # (F, 3H)
    bih = bih_ref[...]                                       # (1, 3H)

    # --- Hoisted input projection: all T timesteps, independent of h (off critical path) ---
    for t in range(T):                                       # T is static -> fully unrolled
        gi_ref[t] = jnp.dot(x[t] * inv_nrm, wih,
                            preferred_element_type=jnp.float32) + bih

    whh = whh_ref[...]                                       # (H, 3H)
    bhh = bhh_ref[...]                                       # (1, 3H)

    # --- GRU recurrence (PyTorch gate equations), statically unrolled ---
    # NOTE: for large T this should become a time-tiled grid axis / fori_loop; at the
    # shapes this module targets a full static unroll is the fastest option.
    h = jnp.zeros((Bb, H), jnp.float32)
    for t in range(T):
        gi = gi_ref[t]                                       # (Bb, 3H)
        gh = jnp.dot(h, whh, preferred_element_type=jnp.float32) + bhh
        r = jax.nn.sigmoid(gi[:, 0 * H:1 * H] + gh[:, 0 * H:1 * H])
        z = jax.nn.sigmoid(gi[:, 1 * H:2 * H] + gh[:, 1 * H:2 * H])
        n = jnp.tanh(gi[:, 2 * H:3 * H] + r * gh[:, 2 * H:3 * H])
        h = (1.0 - z) * n + z * h

    # --- MLP head: Linear + Softplus ---
    logits = jnp.dot(h, wmlp_ref[...], preferred_element_type=jnp.float32) + bmlp_ref[...]
    out_ref[...] = jax.nn.softplus(logits)


def prepare_kernel_params(params):
    """One-time layout prep (pre-transpose weights, row-vector biases) -- not per call."""
    return {
        "w_ih_t": jnp.asarray(params["w_ih"].T, jnp.float32),   # (F, 3H)
        "w_hh_t": jnp.asarray(params["w_hh"].T, jnp.float32),   # (H, 3H)
        "b_ih": jnp.asarray(params["b_ih"][None, :], jnp.float32),
        "b_hh": jnp.asarray(params["b_hh"][None, :], jnp.float32),
        "w_mlp_t": jnp.asarray(params["w_mlp"].T, jnp.float32),  # (H, OUT)
        "b_mlp": jnp.asarray(params["b_mlp"][None, :], jnp.float32),
    }


@jax.jit
def traj_model_linear_forward(x_btf, kparams):
    """x_btf: (B, T, F) float32 -- the PyTorch `imputed_embeds` (batch_first GRU input)."""
    B, T, F = x_btf.shape
    OUT = kparams["w_mlp_t"].shape[1]

    # Pad batch to a sublane multiple (8) and tile at 128 rows for large B so the batch
    # grid axis can be sharded across TensorCores (v7x) / fills MXU rows.
    B_BLOCK = 128 if B >= 128 else _round_up(B, 8)
    B_pad = _round_up(B, B_BLOCK)

    x_tbf = jnp.transpose(x_btf, (1, 0, 2)).astype(jnp.float32)     # time-major (T, B, F)
    if B_pad != B:
        x_tbf = jnp.pad(x_tbf, ((0, 0), (0, B_pad - B), (0, 0)))    # zero rows are harmless

    grid = (B_pad // B_BLOCK,)

    out = pl.pallas_call(
        traj_linear_kernel,
        out_shape=jax.ShapeDtypeStruct((B_pad, OUT), jnp.float32),
        grid=grid,
        in_specs=[
            pl.BlockSpec((T, B_BLOCK, F), lambda i: (0, i, 0)),     # x: tiled over batch
            pl.BlockSpec((F, 3 * H), lambda i: (0, 0)),             # W_ih^T (resident)
            pl.BlockSpec((H, 3 * H), lambda i: (0, 0)),             # W_hh^T
            pl.BlockSpec((1, 3 * H), lambda i: (0, 0)),             # b_ih
            pl.BlockSpec((1, 3 * H), lambda i: (0, 0)),             # b_hh
            pl.BlockSpec((H, OUT), lambda i: (0, 0)),               # W_mlp^T
            pl.BlockSpec((1, OUT), lambda i: (0, 0)),               # b_mlp
        ],
        out_specs=pl.BlockSpec((B_BLOCK, OUT), lambda i: (i, 0)),
        scratch_shapes=[pltpu.VMEM((T, B_BLOCK, 3 * H), jnp.float32)],  # hoisted GI buffer
        compiler_params=pltpu.CompilerParams(dimension_semantics=("parallel",)),
    )(x_tbf, kparams["w_ih_t"], kparams["w_hh_t"], kparams["b_ih"],
      kparams["b_hh"], kparams["w_mlp_t"], kparams["b_mlp"])

    return jnp.squeeze(out[:B])       # drop batch padding, then torch.squeeze semantics


def reference_forward(x_btf, params):
    """Pure-JAX reference with identical math (for correctness check)."""
    x = x_btf.astype(jnp.float32)
    nrm = jnp.maximum(jnp.sqrt(jnp.sum(x * x, axis=1, keepdims=True)), 1e-12)  # dim=1
    x = x / nrm
    B, T, F = x.shape
    wih, whh = params["w_ih"], params["w_hh"]
    bih, bhh = params["b_ih"], params["b_hh"]
    h = jnp.zeros((B, H), jnp.float32)
    for t in range(T):
        gi = x[:, t, :] @ wih.T + bih
        gh = h @ whh.T + bhh
        r = jax.nn.sigmoid(gi[:, :H] + gh[:, :H])
        z = jax.nn.sigmoid(gi[:, H:2 * H] + gh[:, H:2 * H])
        n = jnp.tanh(gi[:, 2 * H:] + r * gh[:, 2 * H:])
        h = (1.0 - z) * n + z * h
    y = jax.nn.softplus(h @ params["w_mlp"].T + params["b_mlp"])
    return jnp.squeeze(y)


def init_params(key, imputed_size, predict_seq, predict_year):
    """Deterministic synthetic init matching the PyTorch module's shapes/init style."""
    out_dim = predict_seq if predict_year == 0 else 1
    ks = jax.random.split(key, 6)
    u = lambda k, shape: jax.random.uniform(k, shape, jnp.float32, -0.1, 0.1)  # GRU uniform(-0.1, 0.1)
    xavier_lim = (6.0 / (H + out_dim)) ** 0.5
    return {
        "w_ih": u(ks[0], (3 * H, imputed_size)),
        "w_hh": u(ks[1], (3 * H, H)),
        "b_ih": u(ks[2], (3 * H,)),
        "b_hh": u(ks[3], (3 * H,)),
        "w_mlp": jax.random.uniform(ks[4], (out_dim, H), jnp.float32, -xavier_lim, xavier_lim),
        "b_mlp": jax.random.uniform(ks[5], (out_dim,), jnp.float32, -H ** -0.5, H ** -0.5),
    }


if __name__ == "__main__":
    B, T, IMPUTED_SIZE = 2, 8, 32
    PREDICT_SEQ, PREDICT_YEAR = 8, 0

    key = jax.random.PRNGKey(0)
    k_x, k_p = jax.random.split(key)
    x = jax.random.normal(k_x, (B, T, IMPUTED_SIZE), jnp.float32)
    params = init_params(k_p, IMPUTED_SIZE, PREDICT_SEQ, PREDICT_YEAR)
    kparams = prepare_kernel_params(params)          # one-time weight layout prep

    out = jax.block_until_ready(traj_model_linear_forward(x, kparams))
    ref = jax.block_until_ready(reference_forward(x, params))

    assert out.shape == ref.shape, (out.shape, ref.shape)
    assert jnp.allclose(out, ref, rtol=1e-3, atol=1e-3), float(jnp.max(jnp.abs(out - ref)))
    print("KERNEL_OK")
</pallas_src>

<mosaic_0001>
module attributes {stable_mosaic.version = 11 : i64} {
  func.func @traj_linear_kernel(%arg0: i32, %arg1: memref<8x8x32xf32, #tpu.memory_space<vmem>>, %arg2: memref<32x384xf32, #tpu.memory_space<vmem>>, %arg3: memref<128x384xf32, #tpu.memory_space<vmem>>, %arg4: memref<1x384xf32, #tpu.memory_space<vmem>>, %arg5: memref<1x384xf32, #tpu.memory_space<vmem>>, %arg6: memref<128x8xf32, #tpu.memory_space<vmem>>, %arg7: memref<1x8xf32, #tpu.memory_space<vmem>>, %arg8: memref<8x8xf32, #tpu.memory_space<vmem>>, %arg9: memref<8x8x384xf32, #tpu.memory_space<vmem>>) attributes {dimension_semantics = [#tpu.dimension_semantics<parallel>], iteration_bounds = array<i64: 1>, scalar_prefetch = 0 : i64, scratch_operands = 1 : i64, tpu.core_type = #tpu.core_type<tc>, window_params = [{transform_indices = @transform_0, window_bounds = array<i64: 8, 8, 32>}, {pipeline_mode = #tpu.pipeline_mode<synchronous>, transform_indices = @transform_1, window_bounds = array<i64: 32, 384>}, {pipeline_mode = #tpu.pipeline_mode<synchronous>, transform_indices = @transform_2, window_bounds = array<i64: 128, 384>}, {pipeline_mode = #tpu.pipeline_mode<synchronous>, transform_indices = @transform_3, window_bounds = array<i64: 1, 384>}, {pipeline_mode = #tpu.pipeline_mode<synchronous>, transform_indices = @transform_4, window_bounds = array<i64: 1, 384>}, {pipeline_mode = #tpu.pipeline_mode<synchronous>, transform_indices = @transform_5, window_bounds = array<i64: 128, 8>}, {pipeline_mode = #tpu.pipeline_mode<synchronous>, transform_indices = @transform_6, window_bounds = array<i64: 1, 8>}, {transform_indices = @transform_7, window_bounds = array<i64: 8, 8>}]} {
    %c0 = arith.constant 0 : index
    %c0_0 = arith.constant 0 : index
    %c0_1 = arith.constant 0 : index
    %0 = vector.load %arg1[%c0, %c0_0, %c0_1] : memref<8x8x32xf32, #tpu.memory_space<vmem>>, vector<8x8x32xf32>
    %1 = arith.mulf %0, %0 : vector<8x8x32xf32>
    %cst = arith.constant dense<0.000000e+00> : vector<8x32xf32>
    %2 = vector.multi_reduction <add>, %1, %cst [0] : vector<8x8x32xf32> to vector<8x32xf32>
    %3 = math.sqrt %2 : vector<8x32xf32>
    %cst_2 = arith.constant 9.99999996E-13 : f32
    %4 = vector.broadcast %cst_2 : f32 to vector<8x32xf32>
    %5 = arith.maximumf %3, %4 : vector<8x32xf32>
    %cst_3 = arith.constant 1.000000e+00 : f32
    %6 = vector.broadcast %cst_3 : f32 to vector<8x32xf32>
    %7 = arith.divf %6, %5 : vector<8x32xf32>
    %c0_4 = arith.constant 0 : index
    %c0_5 = arith.constant 0 : index
    %8 = vector.load %arg2[%c0_4, %c0_5] : memref<32x384xf32, #tpu.memory_space<vmem>>, vector<32x384xf32>
    %c0_6 = arith.constant 0 : index
    %c0_7 = arith.constant 0 : index
    %9 = vector.load %arg4[%c0_6, %c0_7] : memref<1x384xf32, #tpu.memory_space<vmem>>, vector<1x384xf32>
    %10 = vector.extract_strided_slice %0 {offsets = [0, 0, 0], sizes = [1, 8, 32], strides = [1, 1, 1]} : vector<8x8x32xf32> to vector<1x8x32xf32>
    %11 = vector.shape_cast %10 : vector<1x8x32xf32> to vector<8x32xf32>
    %12 = arith.mulf %11, %7 : vector<8x32xf32>
    %cst_8 = arith.constant dense<0.000000e+00> : vector<8x384xf32>
    %13 = tpu.matmul %12, %8, %cst_8 {dimension_numbers = #tpu.dot_dimension_numbers<[1], [0], [0], [1], [0, 0, 1, 1], [], []>} : vector<8x32xf32>, vector<32x384xf32>, vector<8x384xf32> -> vector<8x384xf32>
    %14 = vector.broadcast %9 : vector<1x384xf32> to vector<8x384xf32>
    %15 = arith.addf %13, %14 : vector<8x384xf32>
    %c0_9 = arith.constant 0 : index
    %c0_10 = arith.constant 0 : index
    %c0_11 = arith.constant 0 : index
    %16 = vector.load %arg9[%c0_9, %c0_10, %c0_11] : memref<8x8x384xf32, #tpu.memory_space<vmem>>, vector<1x8x384xf32>
    %17 = vector.shape_cast %16 : vector<1x8x384xf32> to vector<8x384xf32>
    %18 = vector.shape_cast %15 : vector<8x384xf32> to vector<1x8x384xf32>
    tpu.vector_store %arg9[%c0_9, %c0_10, %c0_11], %18 {strides = array<i32>} : memref<8x8x384xf32, #tpu.memory_space<vmem>>, vector<1x8x384xf32>,
    %19 = vector.extract_strided_slice %0 {offsets = [1, 0, 0], sizes = [1, 8, 32], strides = [1, 1, 1]} : vector<8x8x32xf32> to vector<1x8x32xf32>
    %20 = vector.shape_cast %19 : vector<1x8x32xf32> to vector<8x32xf32>
    %21 = arith.mulf %20, %7 : vector<8x32xf32>
    %cst_12 = arith.constant dense<0.000000e+00> : vector<8x384xf32>
    %22 = tpu.matmul %21, %8, %cst_12 {dimension_numbers = #tpu.dot_dimension_numbers<[1], [0], [0], [1], [0, 0, 1, 1], [], []>} : vector<8x32xf32>, vector<32x384xf32>, vector<8x384xf32> -> vector<8x384xf32>
    %23 = vector.broadcast %9 : vector<1x384xf32> to vector<8x384xf32>
    %24 = arith.addf %22, %23 : vector<8x384xf32>
    %c1 = arith.constant 1 : index
    %c0_13 = arith.constant 0 : index
    %c0_14 = arith.constant 0 : index
    %25 = vector.load %arg9[%c1, %c0_13, %c0_14] : memref<8x8x384xf32, #tpu.memory_space<vmem>>, vector<1x8x384xf32>
    %26 = vector.shape_cast %25 : vector<1x8x384xf32> to vector<8x384xf32>
    %27 = vector.shape_cast %24 : vector<8x384xf32> to vector<1x8x384xf32>
    tpu.vector_store %arg9[%c1, %c0_13, %c0_14], %27 {strides = array<i32>} : memref<8x8x384xf32, #tpu.memory_space<vmem>>, vector<1x8x384xf32>,
    %28 = vector.extract_strided_slice %0 {offsets = [2, 0, 0], sizes = [1, 8, 32], strides = [1, 1, 1]} : vector<8x8x32xf32> to vector<1x8x32xf32>
    %29 = vector.shape_cast %28 : vector<1x8x32xf32> to vector<8x32xf32>
    %30 = arith.mulf %29, %7 : vector<8x32xf32>
    %cst_15 = arith.constant dense<0.000000e+00> : vector<8x384xf32>
    %31 = tpu.matmul %30, %8, %cst_15 {dimension_numbers = #tpu.dot_dimension_numbers<[1], [0], [0], [1], [0, 0, 1, 1], [], []>} : vector<8x32xf32>, vector<32x384xf32>, vector<8x384xf32> -> vector<8x384xf32>
    %32 = vector.broadcast %9 : vector<1x384xf32> to vector<8x384xf32>
    %33 = arith.addf %31, %32 : vector<8x384xf32>
    %c2 = arith.constant 2 : index
    %c0_16 = arith.constant 0 : index
    %c0_17 = arith.constant 0 : index
    %34 = vector.load %arg9[%c2, %c0_16, %c0_17] : memref<8x8x384xf32, #tpu.memory_space<vmem>>, vector<1x8x384xf32>
    %35 = vector.shape_cast %34 : vector<1x8x384xf32> to vector<8x384xf32>
    %36 = vector.shape_cast %33 : vector<8x384xf32> to vector<1x8x384xf32>
    tpu.vector_store %arg9[%c2, %c0_16, %c0_17], %36 {strides = array<i32>} : memref<8x8x384xf32, #tpu.memory_space<vmem>>, vector<1x8x384xf32>,
    %37 = vector.extract_strided_slice %0 {offsets = [3, 0, 0], sizes = [1, 8, 32], strides = [1, 1, 1]} : vector<8x8x32xf32> to vector<1x8x32xf32>
    %38 = vector.shape_cast %37 : vector<1x8x32xf32> to vector<8x32xf32>
    %39 = arith.mulf %38, %7 : vector<8x32xf32>
    %cst_18 = arith.constant dense<0.000000e+00> : vector<8x384xf32>
    %40 = tpu.matmul %39, %8, %cst_18 {dimension_numbers = #tpu.dot_dimension_numbers<[1], [0], [0], [1], [0, 0, 1, 1], [], []>} : vector<8x32xf32>, vector<32x384xf32>, vector<8x384xf32> -> vector<8x384xf32>
    %41 = vector.broadcast %9 : vector<1x384xf32> to vector<8x384xf32>
    %42 = arith.addf %40, %41 : vector<8x384xf32>
    %c3 = arith.constant 3 : index
    %c0_19 = arith.constant 0 : index
    %c0_20 = arith.constant 0 : index
    %43 = vector.load %arg9[%c3, %c0_19, %c0_20] : memref<8x8x384xf32, #tpu.memory_space<vmem>>, vector<1x8x384xf32>
    %44 = vector.shape_cast %43 : vector<1x8x384xf32> to vector<8x384xf32>
    %45 = vector.shape_cast %42 : vector<8x384xf32> to vector<1x8x384xf32>
    tpu.vector_store %arg9[%c3, %c0_19, %c0_20], %45 {strides = array<i32>} : memref<8x8x384xf32, #tpu.memory_space<vmem>>, vector<1x8x384xf32>,
    %46 = vector.extract_strided_slice %0 {offsets = [4, 0, 0], sizes = [1, 8, 32], strides = [1, 1, 1]} : vector<8x8x32xf32> to vector<1x8x32xf32>
    %47 = vector.shape_cast %46 : vector<1x8x32xf32> to vector<8x32xf32>
    %48 = arith.mulf %47, %7 : vector<8x32xf32>
    %cst_21 = arith.constant dense<0.000000e+00> : vector<8x384xf32>
    %49 = tpu.matmul %48, %8, %cst_21 {dimension_numbers = #tpu.dot_dimension_numbers<[1], [0], [0], [1], [0, 0, 1, 1], [], []>} : vector<8x32xf32>, vector<32x384xf32>, vector<8x384xf32> -> vector<8x384xf32>
    %50 = vector.broadcast %9 : vector<1x384xf32> to vector<8x384xf32>
    %51 = arith.addf %49, %50 : vector<8x384xf32>
    %c4 = arith.constant 4 : index
    %c0_22 = arith.constant 0 : index
    %c0_23 = arith.constant 0 : index
    %52 = vector.load %arg9[%c4, %c0_22, %c0_23] : memref<8x8x384xf32, #tpu.memory_space<vmem>>, vector<1x8x384xf32>
    %53 = vector.shape_cast %52 : vector<1x8x384xf32> to vector<8x384xf32>
    %54 = vector.shape_cast %51 : vector<8x384xf32> to vector<1x8x384xf32>
    tpu.vector_store %arg9[%c4, %c0_22, %c0_23], %54 {strides = array<i32>} : memref<8x8x384xf32, #tpu.memory_space<vmem>>, vector<1x8x384xf32>,
    %55 = vector.extract_strided_slice %0 {offsets = [5, 0, 0], sizes = [1, 8, 32], strides = [1, 1, 1]} : vector<8x8x32xf32> to vector<1x8x32xf32>
    %56 = vector.shape_cast %55 : vector<1x8x32xf32> to vector<8x32xf32>
    %57 = arith.mulf %56, %7 : vector<8x32xf32>
    %cst_24 = arith.constant dense<0.000000e+00> : vector<8x384xf32>
    %58 = tpu.matmul %57, %8, %cst_24 {dimension_numbers = #tpu.dot_dimension_numbers<[1], [0], [0], [1], [0, 0, 1, 1], [], []>} : vector<8x32xf32>, vector<32x384xf32>, vector<8x384xf32> -> vector<8x384xf32>
    %59 = vector.broadcast %9 : vector<1x384xf32> to vector<8x384xf32>
    %60 = arith.addf %58, %59 : vector<8x384xf32>
    %c5 = arith.constant 5 : index
    %c0_25 = arith.constant 0 : index
    %c0_26 = arith.constant 0 : index
    %61 = vector.load %arg9[%c5, %c0_25, %c0_26] : memref<8x8x384xf32, #tpu.memory_space<vmem>>, vector<1x8x384xf32>
    %62 = vector.shape_cast %61 : vector<1x8x384xf32> to vector<8x384xf32>
    %63 = vector.shape_cast %60 : vector<8x384xf32> to vector<1x8x384xf32>
    tpu.vector_store %arg9[%c5, %c0_25, %c0_26], %63 {strides = array<i32>} : memref<8x8x384xf32, #tpu.memory_space<vmem>>, vector<1x8x384xf32>,
    %64 = vector.extract_strided_slice %0 {offsets = [6, 0, 0], sizes = [1, 8, 32], strides = [1, 1, 1]} : vector<8x8x32xf32> to vector<1x8x32xf32>
    %65 = vector.shape_cast %64 : vector<1x8x32xf32> to vector<8x32xf32>
    %66 = arith.mulf %65, %7 : vector<8x32xf32>
    %cst_27 = arith.constant dense<0.000000e+00> : vector<8x384xf32>
    %67 = tpu.matmul %66, %8, %cst_27 {dimension_numbers = #tpu.dot_dimension_numbers<[1], [0], [0], [1], [0, 0, 1, 1], [], []>} : vector<8x32xf32>, vector<32x384xf32>, vector<8x384xf32> -> vector<8x384xf32>
    %68 = vector.broadcast %9 : vector<1x384xf32> to vector<8x384xf32>
    %69 = arith.addf %67, %68 : vector<8x384xf32>
    %c6 = arith.constant 6 : index
    %c0_28 = arith.constant 0 : index
    %c0_29 = arith.constant 0 : index
    %70 = vector.load %arg9[%c6, %c0_28, %c0_29] : memref<8x8x384xf32, #tpu.memory_space<vmem>>, vector<1x8x384xf32>
    %71 = vector.shape_cast %70 : vector<1x8x384xf32> to vector<8x384xf32>
    %72 = vector.shape_cast %69 : vector<8x384xf32> to vector<1x8x384xf32>
    tpu.vector_store %arg9[%c6, %c0_28, %c0_29], %72 {strides = array<i32>} : memref<8x8x384xf32, #tpu.memory_space<vmem>>, vector<1x8x384xf32>,
    %73 = vector.extract_strided_slice %0 {offsets = [7, 0, 0], sizes = [1, 8, 32], strides = [1, 1, 1]} : vector<8x8x32xf32> to vector<1x8x32xf32>
    %74 = vector.shape_cast %73 : vector<1x8x32xf32> to vector<8x32xf32>
    %75 = arith.mulf %74, %7 : vector<8x32xf32>
    %cst_30 = arith.constant dense<0.000000e+00> : vector<8x384xf32>
    %76 = tpu.matmul %75, %8, %cst_30 {dimension_numbers = #tpu.dot_dimension_numbers<[1], [0], [0], [1], [0, 0, 1, 1], [], []>} : vector<8x32xf32>, vector<32x384xf32>, vector<8x384xf32> -> vector<8x384xf32>
    %77 = vector.broadcast %9 : vector<1x384xf32> to vector<8x384xf32>
    %78 = arith.addf %76, %77 : vector<8x384xf32>
    %c7 = arith.constant 7 : index
    %c0_31 = arith.constant 0 : index
    %c0_32 = arith.constant 0 : index
    %79 = vector.load %arg9[%c7, %c0_31, %c0_32] : memref<8x8x384xf32, #tpu.memory_space<vmem>>, vector<1x8x384xf32>
    %80 = vector.shape_cast %79 : vector<1x8x384xf32> to vector<8x384xf32>
    %81 = vector.shape_cast %78 : vector<8x384xf32> to vector<1x8x384xf32>
    tpu.vector_store %arg9[%c7, %c0_31, %c0_32], %81 {strides = array<i32>} : memref<8x8x384xf32, #tpu.memory_space<vmem>>, vector<1x8x384xf32>,
    %c0_33 = arith.constant 0 : index
    %c0_34 = arith.constant 0 : index
    %82 = vector.load %arg3[%c0_33, %c0_34] : memref<128x384xf32, #tpu.memory_space<vmem>>, vector<128x384xf32>
    %c0_35 = arith.constant 0 : index
    %c0_36 = arith.constant 0 : index
    %83 = vector.load %arg5[%c0_35, %c0_36] : memref<1x384xf32, #tpu.memory_space<vmem>>, vector<1x384xf32>
    %cst_37 = arith.constant 0.000000e+00 : f32
    %84 = vector.broadcast %cst_37 : f32 to vector<8x128xf32>
    %c0_38 = arith.constant 0 : index
    %c0_39 = arith.constant 0 : index
    %c0_40 = arith.constant 0 : index
    %85 = vector.load %arg9[%c0_38, %c0_39, %c0_40] : memref<8x8x384xf32, #tpu.memory_space<vmem>>, vector<1x8x384xf32>
    %86 = vector.shape_cast %85 : vector<1x8x384xf32> to vector<8x384xf32>
    %cst_41 = arith.constant dense<0.000000e+00> : vector<8x384xf32>
    %87 = tpu.matmul %84, %82, %cst_41 {dimension_numbers = #tpu.dot_dimension_numbers<[1], [0], [0], [1], [0, 0, 1, 1], [], []>} : vector<8x128xf32>, vector<128x384xf32>, vector<8x384xf32> -> vector<8x384xf32>
    %88 = vector.broadcast %83 : vector<1x384xf32> to vector<8x384xf32>
    %89 = arith.addf %87, %88 : vector<8x384xf32>
    %90 = vector.extract_strided_slice %86 {offsets = [0, 0], sizes = [8, 128], strides = [1, 1]} : vector<8x384xf32> to vector<8x128xf32>
    %91 = vector.extract_strided_slice %89 {offsets = [0, 0], sizes = [8, 128], strides = [1, 1]} : vector<8x384xf32> to vector<8x128xf32>
    %92 = arith.addf %90, %91 : vector<8x128xf32>
    %93 = arith.negf %92 : vector<8x128xf32>
    %94 = math.exp %93 : vector<8x128xf32>
    %cst_42 = arith.constant 1.000000e+00 : f32
    %95 = vector.broadcast %cst_42 : f32 to vector<8x128xf32>
    %96 = arith.addf %95, %94 : vector<8x128xf32>
    %97 = arith.divf %95, %96 : vector<8x128xf32>
    %98 = vector.extract_strided_slice %86 {offsets = [0, 128], sizes = [8, 128], strides = [1, 1]} : vector<8x384xf32> to vector<8x128xf32>
    %99 = vector.extract_strided_slice %89 {offsets = [0, 128], sizes = [8, 128], strides = [1, 1]} : vector<8x384xf32> to vector<8x128xf32>
    %100 = arith.addf %98, %99 : vector<8x128xf32>
    %101 = arith.negf %100 : vector<8x128xf32>
    %102 = math.exp %101 : vector<8x128xf32>
    %cst_43 = arith.constant 1.000000e+00 : f32
    %103 = vector.broadcast %cst_43 : f32 to vector<8x128xf32>
    %104 = arith.addf %103, %102 : vector<8x128xf32>
    %105 = arith.divf %103, %104 : vector<8x128xf32>
    %106 = vector.extract_strided_slice %86 {offsets = [0, 256], sizes = [8, 128], strides = [1, 1]} : vector<8x384xf32> to vector<8x128xf32>
    %107 = vector.extract_strided_slice %89 {offsets = [0, 256], sizes = [8, 128], strides = [1, 1]} : vector<8x384xf32> to vector<8x128xf32>
    %108 = arith.mulf %97, %107 : vector<8x128xf32>
    %109 = arith.addf %106, %108 : vector<8x128xf32>
    %110 = math.tanh %109 : vector<8x128xf32>
    %cst_44 = arith.constant 1.000000e+00 : f32
    %111 = vector.broadcast %cst_44 : f32 to vector<8x128xf32>
    %112 = arith.subf %111, %105 : vector<8x128xf32>
    %113 = arith.mulf %112, %110 : vector<8x128xf32>
    %114 = arith.mulf %105, %84 : vector<8x128xf32>
    %115 = arith.addf %113, %114 : vector<8x128xf32>
    %c1_45 = arith.constant 1 : index
    %c0_46 = arith.constant 0 : index
    %c0_47 = arith.constant 0 : index
    %116 = vector.load %arg9[%c1_45, %c0_46, %c0_47] : memref<8x8x384xf32, #tpu.memory_space<vmem>>, vector<1x8x384xf32>
    %117 = vector.shape_cast %116 : vector<1x8x384xf32> to vector<8x384xf32>
    %cst_48 = arith.constant dense<0.000000e+00> : vector<8x384xf32>
    %118 = tpu.matmul %115, %82, %cst_48 {dimension_numbers = #tpu.dot_dimension_numbers<[1], [0], [0], [1], [0, 0, 1, 1], [], []>} : vector<8x128xf32>, vector<128x384xf32>, vector<8x384xf32> -> vector<8x384xf32>
    %119 = vector.broadcast %83 : vector<1x384xf32> to vector<8x384xf32>
    %120 = arith.addf %118, %119 : vector<8x384xf32>
    %121 = vector.extract_strided_slice %117 {offsets = [0, 0], sizes = [8, 128], strides = [1, 1]} : vector<8x384xf32> to vector<8x128xf32>
    %122 = vector.extract_strided_slice %120 {offsets = [0, 0], sizes = [8, 128], strides = [1, 1]} : vector<8x384xf32> to vector<8x128xf32>
    %123 = arith.addf %121, %122 : vector<8x128xf32>
    %124 = arith.negf %123 : vector<8x128xf32>
    %125 = math.exp %124 : vector<8x128xf32>
    %cst_49 = arith.constant 1.000000e+00 : f32
    %126 = vector.broadcast %cst_49 : f32 to vector<8x128xf32>
    %127 = arith.addf %126, %125 : vector<8x128xf32>
    %128 = arith.divf %126, %127 : vector<8x128xf32>
    %129 = vector.extract_strided_slice %117 {offsets = [0, 128], sizes = [8, 128], strides = [1, 1]} : vector<8x384xf32> to vector<8x128xf32>
    %130 = vector.extract_strided_slice %120 {offsets = [0, 128], sizes = [8, 128], strides = [1, 1]} : vector<8x384xf32> to vector<8x128xf32>
    %131 = arith.addf %129, %130 : vector<8x128xf32>
    %132 = arith.negf %131 : vector<8x128xf32>
    %133 = math.exp %132 : vector<8x128xf32>
    %cst_50 = arith.constant 1.000000e+00 : f32
    %134 = vector.broadcast %cst_50 : f32 to vector<8x128xf32>
    %135 = arith.addf %134, %133 : vector<8x128xf32>
    %136 = arith.divf %134, %135 : vector<8x128xf32>
    %137 = vector.extract_strided_slice %117 {offsets = [0, 256], sizes = [8, 128], strides = [1, 1]} : vector<8x384xf32> to vector<8x128xf32>
    %138 = vector.extract_strided_slice %120 {offsets = [0, 256], sizes = [8, 128], strides = [1, 1]} : vector<8x384xf32> to vector<8x128xf32>
    %139 = arith.mulf %128, %138 : vector<8x128xf32>
    %140 = arith.addf %137, %139 : vector<8x128xf32>
    %141 = math.tanh %140 : vector<8x128xf32>
    %cst_51 = arith.constant 1.000000e+00 : f32
    %142 = vector.broadcast %cst_51 : f32 to vector<8x128xf32>
    %143 = arith.subf %142, %136 : vector<8x128xf32>
    %144 = arith.mulf %143, %141 : vector<8x128xf32>
    %145 = arith.mulf %136, %115 : vector<8x128xf32>
    %146 = arith.addf %144, %145 : vector<8x128xf32>
    %c2_52 = arith.constant 2 : index
    %c0_53 = arith.constant 0 : index
    %c0_54 = arith.constant 0 : index
    %147 = vector.load %arg9[%c2_52, %c0_53, %c0_54] : memref<8x8x384xf32, #tpu.memory_space<vmem>>, vector<1x8x384xf32>
    %148 = vector.shape_cast %147 : vector<1x8x384xf32> to vector<8x384xf32>
    %cst_55 = arith.constant dense<0.000000e+00> : vector<8x384xf32>
    %149 = tpu.matmul %146, %82, %cst_55 {dimension_numbers = #tpu.dot_dimension_numbers<[1], [0], [0], [1], [0, 0, 1, 1], [], []>} : vector<8x128xf32>, vector<128x384xf32>, vector<8x384xf32> -> vector<8x384xf32>
    %150 = vector.broadcast %83 : vector<1x384xf32> to vector<8x384xf32>
    %151 = arith.addf %149, %150 : vector<8x384xf32>
    %152 = vector.extract_strided_slice %148 {offsets = [0, 0], sizes = [8, 128], strides = [1, 1]} : vector<8x384xf32> to vector<8x128xf32>
    %153 = vector.extract_strided_slice %151 {offsets = [0, 0], sizes = [8, 128], strides = [1, 1]} : vector<8x384xf32> to vector<8x128xf32>
    %154 = arith.addf %152, %153 : vector<8x128xf32>
    %155 = arith.negf %154 : vector<8x128xf32>
    %156 = math.exp %155 : vector<8x128xf32>
    %cst_56 = arith.constant 1.000000e+00 : f32
    %157 = vector.broadcast %cst_56 : f32 to vector<8x128xf32>
    %158 = arith.addf %157, %156 : vector<8x128xf32>
    %159 = arith.divf %157, %158 : vector<8x128xf32>
    %160 = vector.extract_strided_slice %148 {offsets = [0, 128], sizes = [8, 128], strides = [1, 1]} : vector<8x384xf32> to vector<8x128xf32>
    %161 = vector.extract_strided_slice %151 {offsets = [0, 128], sizes = [8, 128], strides = [1, 1]} : vector<8x384xf32> to vector<8x128xf32>
    %162 = arith.addf %160, %161 : vector<8x128xf32>
    %163 = arith.negf %162 : vector<8x128xf32>
    %164 = math.exp %163 : vector<8x128xf32>
    %cst_57 = arith.constant 1.000000e+00 : f32
    %165 = vector.broadcast %cst_57 : f32 to vector<8x128xf32>
    %166 = arith.addf %165, %164 : vector<8x128xf32>
    %167 = arith.divf %165, %166 : vector<8x128xf32>
    %168 = vector.extract_strided_slice %148 {offsets = [0, 256], sizes = [8, 128], strides = [1, 1]} : vector<8x384xf32> to vector<8x128xf32>
    %169 = vector.extract_strided_slice %151 {offsets = [0, 256], sizes = [8, 128], strides = [1, 1]} : vector<8x384xf32> to vector<8x128xf32>
    %170 = arith.mulf %159, %169 : vector<8x128xf32>
    %171 = arith.addf %168, %170 : vector<8x128xf32>
    %172 = math.tanh %171 : vector<8x128xf32>
    %cst_58 = arith.constant 1.000000e+00 : f32
    %173 = vector.broadcast %cst_58 : f32 to vector<8x128xf32>
    %174 = arith.subf %173, %167 : vector<8x128xf32>
    %175 = arith.mulf %174, %172 : vector<8x128xf32>
    %176 = arith.mulf %167, %146 : vector<8x128xf32>
    %177 = arith.addf %175, %176 : vector<8x128xf32>
    %c3_59 = arith.constant 3 : index
    %c0_60 = arith.constant 0 : index
    %c0_61 = arith.constant 0 : index
    %178 = vector.load %arg9[%c3_59, %c0_60, %c0_61] : memref<8x8x384xf32, #tpu.memory_space<vmem>>, vector<1x8x384xf32>
    %179 = vector.shape_cast %178 : vector<1x8x384xf32> to vector<8x384xf32>
    %cst_62 = arith.constant dense<0.000000e+00> : vector<8x384xf32>
    %180 = tpu.matmul %177, %82, %cst_62 {dimension_numbers = #tpu.dot_dimension_numbers<[1], [0], [0], [1], [0, 0, 1, 1], [], []>} : vector<8x128xf32>, vector<128x384xf32>, vector<8x384xf32> -> vector<8x384xf32>
    %181 = vector.broadcast %83 : vector<1x384xf32> to vector<8x384xf32>
    %182 = arith.addf %180, %181 : vector<8x384xf32>
    %183 = vector.extract_strided_slice %179 {offsets = [0, 0], sizes = [8, 128], strides = [1, 1]} : vector<8x384xf32> to vector<8x128xf32>
    %184 = vector.extract_strided_slice %182 {offsets = [0, 0], sizes = [8, 128], strides = [1, 1]} : vector<8x384xf32> to vector<8x128xf32>
    %185 = arith.addf %183, %184 : vector<8x128xf32>
    %186 = arith.negf %185 : vector<8x128xf32>
    %187 = math.exp %186 : vector<8x128xf32>
    %cst_63 = arith.constant 1.000000e+00 : f32
    %188 = vector.broadcast %cst_63 : f32 to vector<8x128xf32>
    %189 = arith.addf %188, %187 : vector<8x128xf32>
    %190 = arith.divf %188, %189 : vector<8x128xf32>
    %191 = vector.extract_strided_slice %179 {offsets = [0, 128], sizes = [8, 128], strides = [1, 1]} : vector<8x384xf32> to vector<8x128xf32>
    %192 = vector.extract_strided_slice %182 {offsets = [0, 128], sizes = [8, 128], strides = [1, 1]} : vector<8x384xf32> to vector<8x128xf32>
    %193 = arith.addf %191, %192 : vector<8x128xf32>
    %194 = arith.negf %193 : vector<8x128xf32>
    %195 = math.exp %194 : vector<8x128xf32>
    %cst_64 = arith.constant 1.000000e+00 : f32
    %196 = vector.broadcast %cst_64 : f32 to vector<8x128xf32>
    %197 = arith.addf %196, %195 : vector<8x128xf32>
    %198 = arith.divf %196, %197 : vector<8x128xf32>
    %199 = vector.extract_strided_slice %179 {offsets = [0, 256], sizes = [8, 128], strides = [1, 1]} : vector<8x384xf32> to vector<8x128xf32>
    %200 = vector.extract_strided_slice %182 {offsets = [0, 256], sizes = [8, 128], strides = [1, 1]} : vector<8x384xf32> to vector<8x128xf32>
    %201 = arith.mulf %190, %200 : vector<8x128xf32>
    %202 = arith.addf %199, %201 : vector<8x128xf32>
    %203 = math.tanh %202 : vector<8x128xf32>
    %cst_65 = arith.constant 1.000000e+00 : f32
    %204 = vector.broadcast %cst_65 : f32 to vector<8x128xf32>
    %205 = arith.subf %204, %198 : vector<8x128xf32>
    %206 = arith.mulf %205, %203 : vector<8x128xf32>
    %207 = arith.mulf %198, %177 : vector<8x128xf32>
    %208 = arith.addf %206, %207 : vector<8x128xf32>
    %c4_66 = arith.constant 4 : index
    %c0_67 = arith.constant 0 : index
    %c0_68 = arith.constant 0 : index
    %209 = vector.load %arg9[%c4_66, %c0_67, %c0_68] : memref<8x8x384xf32, #tpu.memory_space<vmem>>, vector<1x8x384xf32>
    %210 = vector.shape_cast %209 : vector<1x8x384xf32> to vector<8x384xf32>
    %cst_69 = arith.constant dense<0.000000e+00> : vector<8x384xf32>
    %211 = tpu.matmul %208, %82, %cst_69 {dimension_numbers = #tpu.dot_dimension_numbers<[1], [0], [0], [1], [0, 0, 1, 1], [], []>} : vector<8x128xf32>, vector<128x384xf32>, vector<8x384xf32> -> vector<8x384xf32>
    %212 = vector.broadcast %83 : vector<1x384xf32> to vector<8x384xf32>
    %213 = arith.addf %211, %212 : vector<8x384xf32>
    %214 = vector.extract_strided_slice %210 {offsets = [0, 0], sizes = [8, 128], strides = [1, 1]} : vector<8x384xf32> to vector<8x128xf32>
    %215 = vector.extract_strided_slice %213 {offsets = [0, 0], sizes = [8, 128], strides = [1, 1]} : vector<8x384xf32> to vector<8x128xf32>
    %216 = arith.addf %214, %215 : vector<8x128xf32>
    %217 = arith.negf %216 : vector<8x128xf32>
    %218 = math.exp %217 : vector<8x128xf32>
    %cst_70 = arith.constant 1.000000e+00 : f32
    %219 = vector.broadcast %cst_70 : f32 to vector<8x128xf32>
    %220 = arith.addf %219, %218 : vector<8x128xf32>
    %221 = arith.divf %219, %220 : vector<8x128xf32>
    %222 = vector.extract_strided_slice %210 {offsets = [0, 128], sizes = [8, 128], strides = [1, 1]} : vector<8x384xf32> to vector<8x128xf32>
    %223 = vector.extract_strided_slice %213 {offsets = [0, 128], sizes = [8, 128], strides = [1, 1]} : vector<8x384xf32> to vector<8x128xf32>
    %224 = arith.addf %222, %223 : vector<8x128xf32>
    %225 = arith.negf %224 : vector<8x128xf32>
    %226 = math.exp %225 : vector<8x128xf32>
    %cst_71 = arith.constant 1.000000e+00 : f32
    %227 = vector.broadcast %cst_71 : f32 to vector<8x128xf32>
    %228 = arith.addf %227, %226 : vector<8x128xf32>
    %229 = arith.divf %227, %228 : vector<8x128xf32>
    %230 = vector.extract_strided_slice %210 {offsets = [0, 256], sizes = [8, 128], strides = [1, 1]} : vector<8x384xf32> to vector<8x128xf32>
    %231 = vector.extract_strided_slice %213 {offsets = [0, 256], sizes = [8, 128], strides = [1, 1]} : vector<8x384xf32> to vector<8x128xf32>
    %232 = arith.mulf %221, %231 : vector<8x128xf32>
    %233 = arith.addf %230, %232 : vector<8x128xf32>
    %234 = math.tanh %233 : vector<8x128xf32>
    %cst_72 = arith.constant 1.000000e+00 : f32
    %235 = vector.broadcast %cst_72 : f32 to vector<8x128xf32>
    %236 = arith.subf %235, %229 : vector<8x128xf32>
    %237 = arith.mulf %236, %234 : vector<8x128xf32>
    %238 = arith.mulf %229, %208 : vector<8x128xf32>
    %239 = arith.addf %237, %238 : vector<8x128xf32>
    %c5_73 = arith.constant 5 : index
    %c0_74 = arith.constant 0 : index
    %c0_75 = arith.constant 0 : index
    %240 = vector.load %arg9[%c5_73, %c0_74, %c0_75] : memref<8x8x384xf32, #tpu.memory_space<vmem>>, vector<1x8x384xf32>
    %241 = vector.shape_cast %240 : vector<1x8x384xf32> to vector<8x384xf32>
    %cst_76 = arith.constant dense<0.000000e+00> : vector<8x384xf32>
    %242 = tpu.matmul %239, %82, %cst_76 {dimension_numbers = #tpu.dot_dimension_numbers<[1], [0], [0], [1], [0, 0, 1, 1], [], []>} : vector<8x128xf32>, vector<128x384xf32>, vector<8x384xf32> -> vector<8x384xf32>
    %243 = vector.broadcast %83 : vector<1x384xf32> to vector<8x384xf32>
    %244 = arith.addf %242, %243 : vector<8x384xf32>
    %245 = vector.extract_strided_slice %241 {offsets = [0, 0], sizes = [8, 128], strides = [1, 1]} : vector<8x384xf32> to vector<8x128xf32>
    %246 = vector.extract_strided_slice %244 {offsets = [0, 0], sizes = [8, 128], strides = [1, 1]} : vector<8x384xf32> to vector<8x128xf32>
    %247 = arith.addf %245, %246 : vector<8x128xf32>
    %248 = arith.negf %247 : vector<8x128xf32>
    %249 = math.exp %248 : vector<8x128xf32>
    %cst_77 = arith.constant 1.000000e+00 : f32
    %250 = vector.broadcast %cst_77 : f32 to vector<8x128xf32>
    %251 = arith.addf %250, %249 : vector<8x128xf32>
    %252 = arith.divf %250, %251 : vector<8x128xf32>
    %253 = vector.extract_strided_slice %241 {offsets = [0, 128], sizes = [8, 128], strides = [1, 1]} : vector<8x384xf32> to vector<8x128xf32>
    %254 = vector.extract_strided_slice %244 {offsets = [0, 128], sizes = [8, 128], strides = [1, 1]} : vector<8x384xf32> to vector<8x128xf32>
    %255 = arith.addf %253, %254 : vector<8x128xf32>
    %256 = arith.negf %255 : vector<8x128xf32>
    %257 = math.exp %256 : vector<8x128xf32>
    %cst_78 = arith.constant 1.000000e+00 : f32
    %258 = vector.broadcast %cst_78 : f32 to vector<8x128xf32>
    %259 = arith.addf %258, %257 : vector<8x128xf32>
    %260 = arith.divf %258, %259 : vector<8x128xf32>
    %261 = vector.extract_strided_slice %241 {offsets = [0, 256], sizes = [8, 128], strides = [1, 1]} : vector<8x384xf32> to vector<8x128xf32>
    %262 = vector.extract_strided_slice %244 {offsets = [0, 256], sizes = [8, 128], strides = [1, 1]} : vector<8x384xf32> to vector<8x128xf32>
    %263 = arith.mulf %252, %262 : vector<8x128xf32>
    %264 = arith.addf %261, %263 : vector<8x128xf32>
    %265 = math.tanh %264 : vector<8x128xf32>
    %cst_79 = arith.constant 1.000000e+00 : f32
    %266 = vector.broadcast %cst_79 : f32 to vector<8x128xf32>
    %267 = arith.subf %266, %260 : vector<8x128xf32>
    %268 = arith.mulf %267, %265 : vector<8x128xf32>
    %269 = arith.mulf %260, %239 : vector<8x128xf32>
    %270 = arith.addf %268, %269 : vector<8x128xf32>
    %c6_80 = arith.constant 6 : index
    %c0_81 = arith.constant 0 : index
    %c0_82 = arith.constant 0 : index
    %271 = vector.load %arg9[%c6_80, %c0_81, %c0_82] : memref<8x8x384xf32, #tpu.memory_space<vmem>>, vector<1x8x384xf32>
    %272 = vector.shape_cast %271 : vector<1x8x384xf32> to vector<8x384xf32>
    %cst_83 = arith.constant dense<0.000000e+00> : vector<8x384xf32>
    %273 = tpu.matmul %270, %82, %cst_83 {dimension_numbers = #tpu.dot_dimension_numbers<[1], [0], [0], [1], [0, 0, 1, 1], [], []>} : vector<8x128xf32>, vector<128x384xf32>, vector<8x384xf32> -> vector<8x384xf32>
    %274 = vector.broadcast %83 : vector<1x384xf32> to vector<8x384xf32>
    %275 = arith.addf %273, %274 : vector<8x384xf32>
    %276 = vector.extract_strided_slice %272 {offsets = [0, 0], sizes = [8, 128], strides = [1, 1]} : vector<8x384xf32> to vector<8x128xf32>
    %277 = vector.extract_strided_slice %275 {offsets = [0, 0], sizes = [8, 128], strides = [1, 1]} : vector<8x384xf32> to vector<8x128xf32>
    %278 = arith.addf %276, %277 : vector<8x128xf32>
    %279 = arith.negf %278 : vector<8x128xf32>
    %280 = math.exp %279 : vector<8x128xf32>
    %cst_84 = arith.constant 1.000000e+00 : f32
    %281 = vector.broadcast %cst_84 : f32 to vector<8x128xf32>
    %282 = arith.addf %281, %280 : vector<8x128xf32>
    %283 = arith.divf %281, %282 : vector<8x128xf32>
    %284 = vector.extract_strided_slice %272 {offsets = [0, 128], sizes = [8, 128], strides = [1, 1]} : vector<8x384xf32> to vector<8x128xf32>
    %285 = vector.extract_strided_slice %275 {offsets = [0, 128], sizes = [8, 128], strides = [1, 1]} : vector<8x384xf32> to vector<8x128xf32>
    %286 = arith.addf %284, %285 : vector<8x128xf32>
    %287 = arith.negf %286 : vector<8x128xf32>
    %288 = math.exp %287 : vector<8x128xf32>
    %cst_85 = arith.constant 1.000000e+00 : f32
    %289 = vector.broadcast %cst_85 : f32 to vector<8x128xf32>
    %290 = arith.addf %289, %288 : vector<8x128xf32>
    %291 = arith.divf %289, %290 : vector<8x128xf32>
    %292 = vector.extract_strided_slice %272 {offsets = [0, 256], sizes = [8, 128], strides = [1, 1]} : vector<8x384xf32> to vector<8x128xf32>
    %293 = vector.extract_strided_slice %275 {offsets = [0, 256], sizes = [8, 128], strides = [1, 1]} : vector<8x384xf32> to vector<8x128xf32>
    %294 = arith.mulf %283, %293 : vector<8x128xf32>
    %295 = arith.addf %292, %294 : vector<8x128xf32>
    %296 = math.tanh %295 : vector<8x128xf32>
    %cst_86 = arith.constant 1.000000e+00 : f32
    %297 = vector.broadcast %cst_86 : f32 to vector<8x128xf32>
    %298 = arith.subf %297, %291 : vector<8x128xf32>
    %299 = arith.mulf %298, %296 : vector<8x128xf32>
    %300 = arith.mulf %291, %270 : vector<8x128xf32>
    %301 = arith.addf %299, %300 : vector<8x128xf32>
    %c7_87 = arith.constant 7 : index
    %c0_88 = arith.constant 0 : index
    %c0_89 = arith.constant 0 : index
    %302 = vector.load %arg9[%c7_87, %c0_88, %c0_89] : memref<8x8x384xf32, #tpu.memory_space<vmem>>, vector<1x8x384xf32>
    %303 = vector.shape_cast %302 : vector<1x8x384xf32> to vector<8x384xf32>
    %cst_90 = arith.constant dense<0.000000e+00> : vector<8x384xf32>
    %304 = tpu.matmul %301, %82, %cst_90 {dimension_numbers = #tpu.dot_dimension_numbers<[1], [0], [0], [1], [0, 0, 1, 1], [], []>} : vector<8x128xf32>, vector<128x384xf32>, vector<8x384xf32> -> vector<8x384xf32>
    %305 = vector.broadcast %83 : vector<1x384xf32> to vector<8x384xf32>
    %306 = arith.addf %304, %305 : vector<8x384xf32>
    %307 = vector.extract_strided_slice %303 {offsets = [0, 0], sizes = [8, 128], strides = [1, 1]} : vector<8x384xf32> to vector<8x128xf32>
    %308 = vector.extract_strided_slice %306 {offsets = [0, 0], sizes = [8, 128], strides = [1, 1]} : vector<8x384xf32> to vector<8x128xf32>
    %309 = arith.addf %307, %308 : vector<8x128xf32>
    %310 = arith.negf %309 : vector<8x128xf32>
    %311 = math.exp %310 : vector<8x128xf32>
    %cst_91 = arith.constant 1.000000e+00 : f32
    %312 = vector.broadcast %cst_91 : f32 to vector<8x128xf32>
    %313 = arith.addf %312, %311 : vector<8x128xf32>
    %314 = arith.divf %312, %313 : vector<8x128xf32>
    %315 = vector.extract_strided_slice %303 {offsets = [0, 128], sizes = [8, 128], strides = [1, 1]} : vector<8x384xf32> to vector<8x128xf32>
    %316 = vector.extract_strided_slice %306 {offsets = [0, 128], sizes = [8, 128], strides = [1, 1]} : vector<8x384xf32> to vector<8x128xf32>
    %317 = arith.addf %315, %316 : vector<8x128xf32>
    %318 = arith.negf %317 : vector<8x128xf32>
    %319 = math.exp %318 : vector<8x128xf32>
    %cst_92 = arith.constant 1.000000e+00 : f32
    %320 = vector.broadcast %cst_92 : f32 to vector<8x128xf32>
    %321 = arith.addf %320, %319 : vector<8x128xf32>
    %322 = arith.divf %320, %321 : vector<8x128xf32>
    %323 = vector.extract_strided_slice %303 {offsets = [0, 256], sizes = [8, 128], strides = [1, 1]} : vector<8x384xf32> to vector<8x128xf32>
    %324 = vector.extract_strided_slice %306 {offsets = [0, 256], sizes = [8, 128], strides = [1, 1]} : vector<8x384xf32> to vector<8x128xf32>
    %325 = arith.mulf %314, %324 : vector<8x128xf32>
    %326 = arith.addf %323, %325 : vector<8x128xf32>
    %327 = math.tanh %326 : vector<8x128xf32>
    %cst_93 = arith.constant 1.000000e+00 : f32
    %328 = vector.broadcast %cst_93 : f32 to vector<8x128xf32>
    %329 = arith.subf %328, %322 : vector<8x128xf32>
    %330 = arith.mulf %329, %327 : vector<8x128xf32>
    %331 = arith.mulf %322, %301 : vector<8x128xf32>
    %332 = arith.addf %330, %331 : vector<8x128xf32>
    %c0_94 = arith.constant 0 : index
    %c0_95 = arith.constant 0 : index
    %333 = vector.load %arg6[%c0_94, %c0_95] : memref<128x8xf32, #tpu.memory_space<vmem>>, vector<128x8xf32>
    %cst_96 = arith.constant dense<0.000000e+00> : vector<8x8xf32>
    %334 = tpu.matmul %332, %333, %cst_96 {dimension_numbers = #tpu.dot_dimension_numbers<[1], [0], [0], [1], [0, 0, 1, 1], [], []>} : vector<8x128xf32>, vector<128x8xf32>, vector<8x8xf32> -> vector<8x8xf32>
    %c0_97 = arith.constant 0 : index
    %c0_98 = arith.constant 0 : index
    %335 = vector.load %arg7[%c0_97, %c0_98] : memref<1x8xf32, #tpu.memory_space<vmem>>, vector<1x8xf32>
    %336 = vector.broadcast %335 : vector<1x8xf32> to vector<8x8xf32>
    %337 = arith.addf %334, %336 : vector<8x8xf32>
    %cst_99 = arith.constant 0.000000e+00 : f32
    %338 = vector.broadcast %cst_99 : f32 to vector<8x8xf32>
    %339 = arith.maximumf %337, %338 : vector<8x8xf32>
    %340 = vector.broadcast %cst_99 : f32 to vector<8x8xf32>
    %341 = arith.subf %337, %340 : vector<8x8xf32>
    %342 = arith.cmpf one, %341, %341 : vector<8x8xf32>
    %343 = vector.broadcast %cst_99 : f32 to vector<8x8xf32>
    %344 = arith.addf %337, %343 : vector<8x8xf32>
    %345 = math.absf %341 : vector<8x8xf32>
    %cst_100 = arith.constant 0.000000e+00 : f32
    %346 = vector.broadcast %cst_100 : f32 to vector<8x8xf32>
    %347 = arith.subf %346, %345 : vector<8x8xf32>
    %348 = math.exp %347 : vector<8x8xf32>
    %349 = math.log1p %348 : vector<8x8xf32>
    %350 = arith.addf %339, %349 : vector<8x8xf32>
    %351 = arith.select %342, %344, %350 : vector<8x8xi1>, vector<8x8xf32>
    %c0_101 = arith.constant 0 : index
    %c0_102 = arith.constant 0 : index
    %352 = vector.load %arg8[%c0_101, %c0_102] : memref<8x8xf32, #tpu.memory_space<vmem>>, vector<8x8xf32>
    tpu.vector_store %arg8[%c0_101, %c0_102], %351 {strides = array<i32>} : memref<8x8xf32, #tpu.memory_space<vmem>>, vector<8x8xf32>,
    return
  }
  func.func @transform_0(%arg0: i32) -> (i32, i32, i32) {
    %c0_i32 = arith.constant 0 : i32
    %c0_i32_0 = arith.constant 0 : i32
    %c0_i32_1 = arith.constant 0 : i32
    return %c0_i32, %arg0, %c0_i32_0 : i32, i32, i32
  }
  func.func @transform_1(%arg0: i32) -> (i32, i32) {
    %c0_i32 = arith.constant 0 : i32
    %c0_i32_0 = arith.constant 0 : i32
    %c0_i32_1 = arith.constant 0 : i32
    return %c0_i32, %c0_i32_0 : i32, i32
  }
  func.func @transform_2(%arg0: i32) -> (i32, i32) {
    %c0_i32 = arith.constant 0 : i32
    %c0_i32_0 = arith.constant 0 : i32
    %c0_i32_1 = arith.constant 0 : i32
    return %c0_i32, %c0_i32_0 : i32, i32
  }
  func.func @transform_3(%arg0: i32) -> (i32, i32) {
    %c0_i32 = arith.constant 0 : i32
    %c0_i32_0 = arith.constant 0 : i32
    %c0_i32_1 = arith.constant 0 : i32
    return %c0_i32, %c0_i32_0 : i32, i32
  }
  func.func @transform_4(%arg0: i32) -> (i32, i32) {
    %c0_i32 = arith.constant 0 : i32
    %c0_i32_0 = arith.constant 0 : i32
    %c0_i32_1 = arith.constant 0 : i32
    return %c0_i32, %c0_i32_0 : i32, i32
  }
  func.func @transform_5(%arg0: i32) -> (i32, i32) {
    %c0_i32 = arith.constant 0 : i32
    %c0_i32_0 = arith.constant 0 : i32
    %c0_i32_1 = arith.constant 0 : i32
    return %c0_i32, %c0_i32_0 : i32, i32
  }
  func.func @transform_6(%arg0: i32) -> (i32, i32) {
    %c0_i32 = arith.constant 0 : i32
    %c0_i32_0 = arith.constant 0 : i32
    %c0_i32_1 = arith.constant 0 : i32
    return %c0_i32, %c0_i32_0 : i32, i32
  }
  func.func @transform_7(%arg0: i32) -> (i32, i32) {
    %c0_i32 = arith.constant 0 : i32
    %c0_i32_0 = arith.constant 0 : i32
    return %arg0, %c0_i32 : i32, i32
  }
}

</mosaic_0001>

<llo_original>
// kernel: traj_model_linear_forward.1
$region0: #{traj_model_linear_forward.1}
  #allocation0 [shape = 'u32[]', space=smem, size = 0x4, offset = 0x4, fixed_abs, tag = 'smem constant byte address 0x4 - core index']
  #allocation1 [shape = 'u32[144,128]{1,0:T(1,128)}', space=vmem, size = 0x12000, scoped, tag = 'internal scratch']
  #allocation2 [shape = 'f32[8,8,384]{2,1,0:T(8,128)}', space=vmem, size = 0x18000, scoped, tag = 'scratch operand']
  %s0 = inlined_call_operand.vmem [shape: f32[8,8,32], index: 0, kind: input, shape index: {}]
  %s1 = inlined_call_operand.vmem [shape: f32[32,384], index: 1, kind: input, shape index: {}]
  %s2 = inlined_call_operand.hbm [shape: f32[128,384], index: 2, kind: input, shape index: {}]
  %s3 = inlined_call_operand.vmem [shape: f32[1,384], index: 3, kind: input, shape index: {}]
  %s4 = inlined_call_operand.vmem [shape: f32[1,384], index: 4, kind: input, shape index: {}]
  %s5 = inlined_call_operand.vmem [shape: f32[128,8], index: 5, kind: input, shape index: {}]
  %s6 = inlined_call_operand.vmem [shape: f32[1,8], index: 6, kind: input, shape index: {}]
  %s7 = inlined_call_operand.vmem [shape: f32[8,8], index: 7, kind: output, shape index: {}]
  %s8 = sld [smem:[#allocation0]]
  $region42: #{traj_model_linear_forward.1} parent=0
    _
  %s10 = ssub.s32 1, %s8
  %s11 = scalar_select 0, %s10, %s8
  $region1: #{traj_model_linear_forward.1} parent=0
    #allocation3 [shape = 'u8[196608]{0}', space=vmem, size = 0x30000, scoped, tag = 'input window, operand 2, single buffered']
    #allocation4 [shape = 's32[1]{0}', space=sflag, size = 0x4, scoped, tag = 'scoped memory for traj_model_linear_forward.1']
    %12 = vsyncpa [#allocation4], 0
    // Predicated region
    $region2: #{traj_model_linear_forward.1} parent=1 // pred_check
      _
    $region3: #{traj_model_linear_forward.1} parent=1 // pred_check_branch
      %14 = sbr.rel (0) target = $region5
    $region4: #{traj_model_linear_forward.1} parent=1 // pred_region
      _
    $region5: #{traj_model_linear_forward.1} parent=1 // pred_fallthru
      _
    // Predicated region
    $region6: #{traj_model_linear_forward.1} parent=1 // pred_check
      _
    $region7: #{traj_model_linear_forward.1} parent=1 // pred_check_branch
      %16 = sbr.rel (0) target = $region9
    $region8: #{traj_model_linear_forward.1} parent=1 // pred_region
      _
    $region9: #{traj_model_linear_forward.1} parent=1 // pred_fallthru
      _
    // Predicated region
    $region10: #{traj_model_linear_forward.1} parent=1 // pred_check
      _
    $region11: #{traj_model_linear_forward.1} parent=1 // pred_check_branch
      %18 = sbr.rel (0) target = $region13
    $region12: #{traj_model_linear_forward.1} parent=1 // pred_region
      %s20 = ssub.s32 6144, 6144
      %21 = vsyncadd [#allocation4], %s20
      %s22 = sshll.u32 [#allocation3], 4
      %s23 = int_to_ptr.vmem [resolvable:$true] %s22
      %28 = dma.hbm_to_vmem [thread:$0]  %s2, 6144, %s23, [#allocation4], 384, 384, 24
    $region13: #{traj_model_linear_forward.1} parent=1 // pred_fallthru
      _
    // Predicated region
    $region14: #{traj_model_linear_forward.1} parent=1 // pred_check
      _
    $region15: #{traj_model_linear_forward.1} parent=1 // pred_check_branch
      %30 = sbr.rel (0) target = $region17
    $region16: #{traj_model_linear_forward.1} parent=1 // pred_region
      _
    $region17: #{traj_model_linear_forward.1} parent=1 // pred_fallthru
      _
    // Predicated region
    $region18: #{traj_model_linear_forward.1} parent=1 // pred_check
      _
    $region19: #{traj_model_linear_forward.1} parent=1 // pred_check_branch
      %32 = sbr.rel (0) target = $region21
    $region20: #{traj_model_linear_forward.1} parent=1 // pred_region
      _
    $region21: #{traj_model_linear_forward.1} parent=1 // pred_fallthru
      _
    // Predicated region
    $region22: #{traj_model_linear_forward.1} parent=1 // pred_check
      _
    $region23: #{traj_model_linear_forward.1} parent=1 // pred_check_branch
      %34 = sbr.rel (0) target = $region25
    $region24: #{traj_model_linear_forward.1} parent=1 // pred_region
      _
    $region25: #{traj_model_linear_forward.1} parent=1 // pred_fallthru
      _
    // Predicated region
    $region26: #{traj_model_linear_forward.1} parent=1 // pred_check
      _
    $region27: #{traj_model_linear_forward.1} parent=1 // pred_check_branch
      %36 = sbr.rel (0) target = $region29
    $region28: #{traj_model_linear_forward.1} parent=1 // pred_region
      _
    $region29: #{traj_model_linear_forward.1} parent=1 // pred_fallthru
      _
    // Predicated region
    $region30: #{traj_model_linear_forward.1} parent=1 // pred_check
      _
    $region31: #{traj_model_linear_forward.1} parent=1 // pred_check_branch
      %38 = sbr.rel (0) target = $region33
    $region32: #{traj_model_linear_forward.1} parent=1 // pred_region
      %39 = dma.done [#allocation4], 6144
    $region33: #{traj_model_linear_forward.1} parent=1 // pred_fallthru
      _
    %v40 = vld [vmem:[%s0] sm:$0xff]
    %v41 = vld [vmem:[%s0 + $0x8] sm:$0xff]
    %v42 = vld [vmem:[%s0 + $0x10] sm:$0xff]
    %v43 = vld [vmem:[%s0 + $0x18] sm:$0xff]
    %v44 = vld [vmem:[%s0 + $0x20] sm:$0xff]
    %v45 = vld [vmem:[%s0 + $0x28] sm:$0xff]
    %v46 = vld [vmem:[%s0 + $0x30] sm:$0xff]
    %v47 = vld [vmem:[%s0 + $0x38] sm:$0xff]
    %v48 = vmul.f32 %v40, %v40
    %v49 = vmul.f32 %v41, %v41
    %v50 = vmul.f32 %v42, %v42
    %v51 = vmul.f32 %v43, %v43
    %v52 = vmul.f32 %v44, %v44
    %v53 = vmul.f32 %v45, %v45
    %v54 = vmul.f32 %v46, %v46
    %v55 = vmul.f32 %v47, %v47
    %vm56 = vcmask 261120
    %v57 = vsel %vm56, %v48, 0.0
    %v58 = vsel %vm56, %v49, 0.0
    %v59 = vadd.f32 %v57, %v58
    %v60 = vsel %vm56, %v50, 0.0
    %v61 = vadd.f32 %v59, %v60
    %v62 = vsel %vm56, %v51, 0.0
    %v63 = vadd.f32 %v61, %v62
    %v64 = vsel %vm56, %v52, 0.0
    %v65 = vadd.f32 %v63, %v64
    %v66 = vsel %vm56, %v53, 0.0
    %v67 = vadd.f32 %v65, %v66
    %v68 = vsel %vm56, %v54, 0.0
    %v69 = vadd.f32 %v67, %v68
    %v70 = vsel %vm56, %v55, 0.0
    %v71 = vadd.f32 %v69, %v70
    %v72 = vrsqrt.pop %v71
    %v73 = vmul.f32 %v71, %v72
    %vm74 = vcmp.eq.f32.partialorder %v71, inf
    %v75 = vsel %vm74, %v71, %v73
    %vm76 = vcmp.eq.f32.partialorder %v71, 0.0
    %v77 = vand.u32 %v71, 2147483648
    %v78 = vsel %vm76, %v77, %v75
    %v79 = vmax.f32 %v78, 1e-12
    %v80 = vrcp.pop %v79
    %v81 = vmul.f32 1.0, %v80
    %v82 = vld [vmem:[%s1] sm:$0xff]
    %v83 = vld [vmem:[%s1 + $0x8] sm:$0xff]
    %v84 = vld [vmem:[%s1 + $0x10] sm:$0xff]
    %v85 = vld [vmem:[%s1 + $0x18] sm:$0xff]
    %v86 = vld [vmem:[%s1 + $0x20] sm:$0xff]
    %v87 = vld [vmem:[%s1 + $0x28] sm:$0xff]
    %v88 = vld [vmem:[%s1 + $0x30] sm:$0xff]
    %v89 = vld [vmem:[%s1 + $0x38] sm:$0xff]
    %v90 = vld [vmem:[%s1 + $0x40] sm:$0xff]
    %v91 = vld [vmem:[%s1 + $0x48] sm:$0xff]
    %v92 = vld [vmem:[%s1 + $0x50] sm:$0xff]
    %v93 = vld [vmem:[%s1 + $0x58] sm:$0xff]
    %v94 = vld [vmem:[%s3] sm:$0x7]
    %v95 = vmul.f32 %v40, %v81
    %v97 = vlaneseq
    %v98 = vshrl.u32 %v97, 7
    %v99 = vsub.s32 0, %v98
    %v100 = vrot.slane %v94, %v99
    %v101 = vlaneseq
    %v102 = vshrl.u32 %v101, 7
    %v103 = vsub.s32 1, %v102
    %v104 = vrot.slane %v94, %v103
    %v105 = vlaneseq
    %v106 = vshrl.u32 %v105, 7
    %v107 = vsub.s32 2, %v106
    %v108 = vrot.slane %v94, %v107
    %v113 = vsel %vm56, %v95, 0
    %115 = vmatprep.subr.mxu0 0.0
    %116 = vmatpush1.msra.mxu0 0.0
    %117 = vmatprep.subr.mxu0 0.0
    %118 = vmatpush1.msra.mxu0 0.0
    %119 = vmatprep.subr.mxu0 0.0
    %120 = vmatpush1.msra.mxu0 0.0
    %121 = vmatprep.subr.mxu0 0.0
    %122 = vmatpush1.msra.mxu0 0.0
    %123 = vmatprep.subr.mxu0 0.0
    %124 = vmatpush1.msra.mxu0 0.0
    %125 = vmatprep.subr.mxu0 0.0
    %126 = vmatpush1.msra.mxu0 0.0
    %127 = vmatprep.subr.mxu0 0.0
    %128 = vmatpush1.msra.mxu0 0.0
    %129 = vmatprep.subr.mxu0 0.0
    %130 = vmatpush1.msra.mxu0 0.0
    %131 = vmatprep.subr.mxu0 0.0
    %132 = vmatpush1.msra.mxu0 0.0
    %133 = vmatprep.subr.mxu0 0.0
    %134 = vmatpush1.msra.mxu0 0.0
    %135 = vmatprep.subr.mxu0 0.0
    %136 = vmatpush1.msra.mxu0 0.0
    %137 = vmatprep.subr.mxu0 0.0
    %138 = vmatpush1.msra.mxu0 0.0
    %139 = vmatprep.subr.mxu0 %v92
    %140 = vmatpush1.msra.mxu0 %v91
    %141 = vmatprep.subr.mxu0 %v89
    %142 = vmatpush1.msra.mxu0 %v88
    %143 = vmatprep.subr.mxu0 %v86
    %144 = vmatpush1.msra.mxu0 %v85
    %145 = vmatprep.subr.mxu0 %v83
    %146 = vmatpush1.msra.mxu0 %v82
    %147 = vmatprep.subr.mxu0 0.0
    %148 = vmatpush2.msra.mxu0 0.0
    %149 = vmatprep.subr.mxu0 0.0
    %150 = vmatpush2.msra.mxu0 0.0
    %151 = vmatprep.subr.mxu0 0.0
    %152 = vmatpush2.msra.mxu0 0.0
    %153 = vmatprep.subr.mxu0 0.0
    %154 = vmatpush2.msra.mxu0 0.0
    %155 = vmatprep.subr.mxu0 0.0
    %156 = vmatpush2.msra.mxu0 0.0
    %157 = vmatprep.subr.mxu0 0.0
    %158 = vmatpush2.msra.mxu0 0.0
    %159 = vmatprep.subr.mxu0 0.0
    %160 = vmatpush2.msra.mxu0 0.0
    %161 = vmatprep.subr.mxu0 0.0
    %162 = vmatpush2.msra.mxu0 0.0
    %163 = vmatprep.subr.mxu0 0.0
    %164 = vmatpush2.msra.mxu0 0.0
    %165 = vmatprep.subr.mxu0 0.0
    %166 = vmatpush2.msra.mxu0 0.0
    %167 = vmatprep.subr.mxu0 0.0
    %168 = vmatpush2.msra.mxu0 0.0
    %169 = vmatprep.subr.mxu0 0.0
    %170 = vmatpush2.msra.mxu0 0.0
    %171 = vmatprep.subr.mxu0 0.0
    %172 = vmatpush2.msra.mxu0 0.0
    %173 = vmatprep.subr.mxu0 0.0
    %174 = vmatpush2.msra.mxu0 0.0
    %175 = vmatprep.subr.mxu0 0.0
    %176 = vmatpush2.msra.mxu0 0.0
    %177 = vmatprep.subr.mxu0 0.0
    %178 = vmatpush2.msra.mxu0 0.0
    %179 = vmatprep.mubr.f32.mxu0 0.0
    %180 = vmatmul.mubr.f32.gmra.mxu0 %v113
    %v181 = vpop.f32.mrf.mxu0
    %v182 = vadd.f32 %v100, %v181
    %v183 = vpop.f32.mrf.mxu0
    %v184 = vadd.f32 %v104, %v183
    %185 = vdwg.mxu0
    %186 = vmatprep.subr.mxu0 0.0
    %187 = vmatpush1.msra.mxu0 0.0
    %188 = vmatprep.subr.mxu0 0.0
    %189 = vmatpush1.msra.mxu0 0.0
    %190 = vmatprep.subr.mxu0 0.0
    %191 = vmatpush1.msra.mxu0 0.0
    %192 = vmatprep.subr.mxu0 0.0
    %193 = vmatpush1.msra.mxu0 0.0
    %194 = vmatprep.subr.mxu0 0.0
    %195 = vmatpush1.msra.mxu0 0.0
    %196 = vmatprep.subr.mxu0 0.0
    %197 = vmatpush1.msra.mxu0 0.0
    %198 = vmatprep.subr.mxu0 0.0
    %199 = vmatpush1.msra.mxu0 0.0
    %200 = vmatprep.subr.mxu0 0.0
    %201 = vmatpush1.msra.mxu0 0.0
    %202 = vmatprep.subr.mxu0 0.0
    %203 = vmatpush1.msra.mxu0 0.0
    %204 = vmatprep.subr.mxu0 0.0
    %205 = vmatpush1.msra.mxu0 0.0
    %206 = vmatprep.subr.mxu0 0.0
    %207 = vmatpush1.msra.mxu0 0.0
    %208 = vmatprep.subr.mxu0 0.0
    %209 = vmatpush1.msra.mxu0 0.0
    %210 = vmatprep.subr.mxu0 0.0
    %211 = vmatpush1.msra.mxu0 %v93
    %212 = vmatprep.subr.mxu0 0.0
    %213 = vmatpush1.msra.mxu0 %v90
    %214 = vmatprep.subr.mxu0 0.0
    %215 = vmatpush1.msra.mxu0 %v87
    %216 = vmatprep.subr.mxu0 0.0
    %217 = vmatpush1.msra.mxu0 %v84
    %218 = vmatprep.subr.mxu0 0.0
    %219 = vmatpush2.msra.mxu0 0.0
    %220 = vmatprep.subr.mxu0 0.0
    %221 = vmatpush2.msra.mxu0 0.0
    %222 = vmatprep.subr.mxu0 0.0
    %223 = vmatpush2.msra.mxu0 0.0
    %224 = vmatprep.subr.mxu0 0.0
    %225 = vmatpush2.msra.mxu0 0.0
    %226 = vmatprep.subr.mxu0 0.0
    %227 = vmatpush2.msra.mxu0 0.0
    %228 = vmatprep.subr.mxu0 0.0
    %229 = vmatpush2.msra.mxu0 0.0
    %230 = vmatprep.subr.mxu0 0.0
    %231 = vmatpush2.msra.mxu0 0.0
    %232 = vmatprep.subr.mxu0 0.0
    %233 = vmatpush2.msra.mxu0 0.0
    %234 = vmatprep.subr.mxu0 0.0
    %235 = vmatpush2.msra.mxu0 0.0
    %236 = vmatprep.subr.mxu0 0.0
    %237 = vmatpush2.msra.mxu0 0.0
    %238 = vmatprep.subr.mxu0 0.0
    %239 = vmatpush2.msra.mxu0 0.0
    %240 = vmatprep.subr.mxu0 0.0
    %241 = vmatpush2.msra.mxu0 0.0
    %242 = vmatprep.subr.mxu0 0.0
    %243 = vmatpush2.msra.mxu0 0.0
    %244 = vmatprep.subr.mxu0 0.0
    %245 = vmatpush2.msra.mxu0 0.0
    %246 = vmatprep.subr.mxu0 0.0
    %247 = vmatpush2.msra.mxu0 0.0
    %248 = vmatprep.subr.mxu0 0.0
    %249 = vmatpush2.msra.mxu0 0.0
    %250 = vmatprep.mubr.f32.mxu0 0.0
    %251 = vmatmul.mubr.f32.gmra.mxu0 %v113
    %v252 = vpop.f32.mrf.mxu0
    %v253 = vadd.f32 %v108, %v252
    %v254 = vpop.f32.mrf.mxu0
    %255 = vdwg.mxu0
    %256 = vst [vmem:[#allocation2] sm:$0xff] %v182
    %257 = vst [vmem:[#allocation2 + $0x8] sm:$0xff] %v184
    %258 = vst [vmem:[#allocation2 + $0x10] sm:$0xff] %v253
    %v259 = vmul.f32 %v41, %v81
    %v261 = vsel %vm56, %v259, 0
    %263 = vmatprep.subr.mxu0 0.0
    %264 = vmatpush1.msra.mxu0 0.0
    %265 = vmatprep.subr.mxu0 0.0
    %266 = vmatpush1.msra.mxu0 0.0
    %267 = vmatprep.subr.mxu0 0.0
    %268 = vmatpush1.msra.mxu0 0.0
    %269 = vmatprep.subr.mxu0 0.0
    %270 = vmatpush1.msra.mxu0 0.0
    %271 = vmatprep.subr.mxu0 0.0
    %272 = vmatpush1.msra.mxu0 0.0
    %273 = vmatprep.subr.mxu0 0.0
    %274 = vmatpush1.msra.mxu0 0.0
    %275 = vmatprep.subr.mxu0 0.0
    %276 = vmatpush1.msra.mxu0 0.0
    %277 = vmatprep.subr.mxu0 0.0
    %278 = vmatpush1.msra.mxu0 0.0
    %279 = vmatprep.subr.mxu0 0.0
    %280 = vmatpush1.msra.mxu0 0.0
    %281 = vmatprep.subr.mxu0 0.0
    %282 = vmatpush1.msra.mxu0 0.0
    %283 = vmatprep.subr.mxu0 0.0
    %284 = vmatpush1.msra.mxu0 0.0
    %285 = vmatprep.subr.mxu0 0.0
    %286 = vmatpush1.msra.mxu0 0.0
    %287 = vmatprep.subr.mxu0 %v92
    %288 = vmatpush1.msra.mxu0 %v91
    %289 = vmatprep.subr.mxu0 %v89
    %290 = vmatpush1.msra.mxu0 %v88
    %291 = vmatprep.subr.mxu0 %v86
    %292 = vmatpush1.msra.mxu0 %v85
    %293 = vmatprep.subr.mxu0 %v83
    %294 = vmatpush1.msra.mxu0 %v82
    %295 = vmatprep.subr.mxu0 0.0
    %296 = vmatpush2.msra.mxu0 0.0
    %297 = vmatprep.subr.mxu0 0.0
    %298 = vmatpush2.msra.mxu0 0.0
    %299 = vmatprep.subr.mxu0 0.0
    %300 = vmatpush2.msra.mxu0 0.0
    %301 = vmatprep.subr.mxu0 0.0
    %302 = vmatpush2.msra.mxu0 0.0
    %303 = vmatprep.subr.mxu0 0.0
    %304 = vmatpush2.msra.mxu0 0.0
    %305 = vmatprep.subr.mxu0 0.0
    %306 = vmatpush2.msra.mxu0 0.0
    %307 = vmatprep.subr.mxu0 0.0
    %308 = vmatpush2.msra.mxu0 0.0
    %309 = vmatprep.subr.mxu0 0.0
    %310 = vmatpush2.msra.mxu0 0.0
    %311 = vmatprep.subr.mxu0 0.0
    %312 = vmatpush2.msra.mxu0 0.0
    %313 = vmatprep.subr.mxu0 0.0
    %314 = vmatpush2.msra.mxu0 0.0
    %315 = vmatprep.subr.mxu0 0.0
    %316 = vmatpush2.msra.mxu0 0.0
    %317 = vmatprep.subr.mxu0 0.0
    %318 = vmatpush2.msra.mxu0 0.0
    %319 = vmatprep.subr.mxu0 0.0
    %320 = vmatpush2.msra.mxu0 0.0
    %321 = vmatprep.subr.mxu0 0.0
    %322 = vmatpush2.msra.mxu0 0.0
    %323 = vmatprep.subr.mxu0 0.0
    %324 = vmatpush2.msra.mxu0 0.0
    %325 = vmatprep.subr.mxu0 0.0
    %326 = vmatpush2.msra.mxu0 0.0
    %327 = vmatprep.mubr.f32.mxu0 0.0
    %328 = vmatmul.mubr.f32.gmra.mxu0 %v261
    %v329 = vpop.f32.mrf.mxu0
    %v330 = vadd.f32 %v100, %v329
    %v331 = vpop.f32.mrf.mxu0
    %v332 = vadd.f32 %v104, %v331
    %333 = vdwg.mxu0
    %334 = vmatprep.subr.mxu0 0.0
    %335 = vmatpush1.msra.mxu0 0.0
    %336 = vmatprep.subr.mxu0 0.0
    %337 = vmatpush1.msra.mxu0 0.0
    %338 = vmatprep.subr.mxu0 0.0
    %339 = vmatpush1.msra.mxu0 0.0
    %340 = vmatprep.subr.mxu0 0.0
    %341 = vmatpush1.msra.mxu0 0.0
    %342 = vmatprep.subr.mxu0 0.0
    %343 = vmatpush1.msra.mxu0 0.0
    %344 = vmatprep.subr.mxu0 0.0
    %345 = vmatpush1.msra.mxu0 0.0
    %346 = vmatprep.subr.mxu0 0.0
    %347 = vmatpush1.msra.mxu0 0.0
    %348 = vmatprep.subr.mxu0 0.0
    %349 = vmatpush1.msra.mxu0 0.0
    %350 = vmatprep.subr.mxu0 0.0
    %351 = vmatpush1.msra.mxu0 0.0
    %352 = vmatprep.subr.mxu0 0.0
    %353 = vmatpush1.msra.mxu0 0.0
    %354 = vmatprep.subr.mxu0 0.0
    %355 = vmatpush1.msra.mxu0 0.0
    %356 = vmatprep.subr.mxu0 0.0
    %357 = vmatpush1.msra.mxu0 0.0
    %358 = vmatprep.subr.mxu0 0.0
    %359 = vmatpush1.msra.mxu0 %v93
    %360 = vmatprep.subr.mxu0 0.0
    %361 = vmatpush1.msra.mxu0 %v90
    %362 = vmatprep.subr.mxu0 0.0
    %363 = vmatpush1.msra.mxu0 %v87
    %364 = vmatprep.subr.mxu0 0.0
    %365 = vmatpush1.msra.mxu0 %v84
    %366 = vmatprep.subr.mxu0 0.0
    %367 = vmatpush2.msra.mxu0 0.0
    %368 = vmatprep.subr.mxu0 0.0
    %369 = vmatpush2.msra.mxu0 0.0
    %370 = vmatprep.subr.mxu0 0.0
    %371 = vmatpush2.msra.mxu0 0.0
    %372 = vmatprep.subr.mxu0 0.0
    %373 = vmatpush2.msra.mxu0 0.0
    %374 = vmatprep.subr.mxu0 0.0
    %375 = vmatpush2.msra.mxu0 0.0
    %376 = vmatprep.subr.mxu0 0.0
    %377 = vmatpush2.msra.mxu0 0.0
    %378 = vmatprep.subr.mxu0 0.0
    %379 = vmatpush2.msra.mxu0 0.0
    %380 = vmatprep.subr.mxu0 0.0
    %381 = vmatpush2.msra.mxu0 0.0
    %382 = vmatprep.subr.mxu0 0.0
    %383 = vmatpush2.msra.mxu0 0.0
    %384 = vmatprep.subr.mxu0 0.0
    %385 = vmatpush2.msra.mxu0 0.0
    %386 = vmatprep.subr.mxu0 0.0
    %387 = vmatpush2.msra.mxu0 0.0
    %388 = vmatprep.subr.mxu0 0.0
    %389 = vmatpush2.msra.mxu0 0.0
    %390 = vmatprep.subr.mxu0 0.0
    %391 = vmatpush2.msra.mxu0 0.0
    %392 = vmatprep.subr.mxu0 0.0
    %393 = vmatpush2.msra.mxu0 0.0
    %394 = vmatprep.subr.mxu0 0.0
    %395 = vmatpush2.msra.mxu0 0.0
    %396 = vmatprep.subr.mxu0 0.0
    %397 = vmatpush2.msra.mxu0 0.0
    %398 = vmatprep.mubr.f32.mxu0 0.0
    %399 = vmatmul.mubr.f32.gmra.mxu0 %v261
    %v400 = vpop.f32.mrf.mxu0
    %v401 = vadd.f32 %v108, %v400
    %v402 = vpop.f32.mrf.mxu0
    %403 = vdwg.mxu0
    %s404 = scalar_lea.vmem [#allocation2], 24
    %405 = vst [vmem:[%s404] sm:$0xff] %v330
    %406 = vst [vmem:[%s404 + $0x8] sm:$0xff] %v332
    %407 = vst [vmem:[%s404 + $0x10] sm:$0xff] %v401
    %v408 = vmul.f32 %v42, %v81
    %v410 = vsel %vm56, %v408, 0
    %412 = vmatprep.subr.mxu0 0.0
    %413 = vmatpush1.msra.mxu0 0.0
    %414 = vmatprep.subr.mxu0 0.0
    %415 = vmatpush1.msra.mxu0 0.0
    %416 = vmatprep.subr.mxu0 0.0
    %417 = vmatpush1.msra.mxu0 0.0
    %418 = vmatprep.subr.mxu0 0.0
    %419 = vmatpush1.msra.mxu0 0.0
    %420 = vmatprep.subr.mxu0 0.0
    %421 = vmatpush1.msra.mxu0 0.0
    %422 = vmatprep.subr.mxu0 0.0
    %423 = vmatpush1.msra.mxu0 0.0
    %424 = vmatprep.subr.mxu0 0.0
    %425 = vmatpush1.msra.mxu0 0.0
    %426 = vmatprep.subr.mxu0 0.0
    %427 = vmatpush1.msra.mxu0 0.0
    %428 = vmatprep.subr.mxu0 0.0
    %429 = vmatpush1.msra.mxu0 0.0
    %430 = vmatprep.subr.mxu0 0.0
    %431 = vmatpush1.msra.mxu0 0.0
    %432 = vmatprep.subr.mxu0 0.0
    %433 = vmatpush1.msra.mxu0 0.0
    %434 = vmatprep.subr.mxu0 0.0
    %435 = vmatpush1.msra.mxu0 0.0
    %436 = vmatprep.subr.mxu0 %v92
    %437 = vmatpush1.msra.mxu0 %v91
    %438 = vmatprep.subr.mxu0 %v89
    %439 = vmatpush1.msra.mxu0 %v88
    %440 = vmatprep.subr.mxu0 %v86
    %441 = vmatpush1.msra.mxu0 %v85
    %442 = vmatprep.subr.mxu0 %v83
    %443 = vmatpush1.msra.mxu0 %v82
    %444 = vmatprep.subr.mxu0 0.0
    %445 = vmatpush2.msra.mxu0 0.0
    %446 = vmatprep.subr.mxu0 0.0
    %447 = vmatpush2.msra.mxu0 0.0
    %448 = vmatprep.subr.mxu0 0.0
    %449 = vmatpush2.msra.mxu0 0.0
    %450 = vmatprep.subr.mxu0 0.0
    %451 = vmatpush2.msra.mxu0 0.0
    %452 = vmatprep.subr.mxu0 0.0
    %453 = vmatpush2.msra.mxu0 0.0
    %454 = vmatprep.subr.mxu0 0.0
    %455 = vmatpush2.msra.mxu0 0.0
    %456 = vmatprep.subr.mxu0 0.0
    %457 = vmatpush2.msra.mxu0 0.0
    %458 = vmatprep.subr.mxu0 0.0
    %459 = vmatpush2.msra.mxu0 0.0
    %460 = vmatprep.subr.mxu0 0.0
    %461 = vmatpush2.msra.mxu0 0.0
    %462 = vmatprep.subr.mxu0 0.0
    %463 = vmatpush2.msra.mxu0 0.0
    %464 = vmatprep.subr.mxu0 0.0
    %465 = vmatpush2.msra.mxu0 0.0
    %466 = vmatprep.subr.mxu0 0.0
    %467 = vmatpush2.msra.mxu0 0.0
    %468 = vmatprep.subr.mxu0 0.0
    %469 = vmatpush2.msra.mxu0 0.0
    %470 = vmatprep.subr.mxu0 0.0
    %471 = vmatpush2.msra.mxu0 0.0
    %472 = vmatprep.subr.mxu0 0.0
    %473 = vmatpush2.msra.mxu0 0.0
    %474 = vmatprep.subr.mxu0 0.0
    %475 = vmatpush2.msra.mxu0 0.0
    %476 = vmatprep.mubr.f32.mxu0 0.0
    %477 = vmatmul.mubr.f32.gmra.mxu0 %v410
    %v478 = vpop.f32.mrf.mxu0
    %v479 = vadd.f32 %v100, %v478
    %v480 = vpop.f32.mrf.mxu0
    %v481 = vadd.f32 %v104, %v480
    %482 = vdwg.mxu0
    %483 = vmatprep.subr.mxu0 0.0
    %484 = vmatpush1.msra.mxu0 0.0
    %485 = vmatprep.subr.mxu0 0.0
    %486 = vmatpush1.msra.mxu0 0.0
    %487 = vmatprep.subr.mxu0 0.0
    %488 = vmatpush1.msra.mxu0 0.0
    %489 = vmatprep.subr.mxu0 0.0
    %490 = vmatpush1.msra.mxu0 0.0
    %491 = vmatprep.subr.mxu0 0.0
    %492 = vmatpush1.msra.mxu0 0.0
    %493 = vmatprep.subr.mxu0 0.0
    %494 = vmatpush1.msra.mxu0 0.0
    %495 = vmatprep.subr.mxu0 0.0
    %496 = vmatpush1.msra.mxu0 0.0
    %497 = vmatprep.subr.mxu0 0.0
    %498 = vmatpush1.msra.mxu0 0.0
    %499 = vmatprep.subr.mxu0 0.0
    %500 = vmatpush1.msra.mxu0 0.0
    %501 = vmatprep.subr.mxu0 0.0
    %502 = vmatpush1.msra.mxu0 0.0
    %503 = vmatprep.subr.mxu0 0.0
    %504 = vmatpush1.msra.mxu0 0.0
    %505 = vmatprep.subr.mxu0 0.0
    %506 = vmatpush1.msra.mxu0 0.0
    %507 = vmatprep.subr.mxu0 0.0
    %508 = vmatpush1.msra.mxu0 %v93
    %509 = vmatprep.subr.mxu0 0.0
    %510 = vmatpush1.msra.mxu0 %v90
    %511 = vmatprep.subr.mxu0 0.0
    %512 = vmatpush1.msra.mxu0 %v87
    %513 = vmatprep.subr.mxu0 0.0
    %514 = vmatpush1.msra.mxu0 %v84
    %515 = vmatprep.subr.mxu0 0.0
    %516 = vmatpush2.msra.mxu0 0.0
    %517 = vmatprep.subr.mxu0 0.0
    %518 = vmatpush2.msra.mxu0 0.0
    %519 = vmatprep.subr.mxu0 0.0
    %520 = vmatpush2.msra.mxu0 0.0
    %521 = vmatprep.subr.mxu0 0.0
    %522 = vmatpush2.msra.mxu0 0.0
    %523 = vmatprep.subr.mxu0 0.0
    %524 = vmatpush2.msra.mxu0 0.0
    %525 = vmatprep.subr.mxu0 0.0
    %526 = vmatpush2.msra.mxu0 0.0
    %527 = vmatprep.subr.mxu0 0.0
    %528 = vmatpush2.msra.mxu0 0.0
    %529 = vmatprep.subr.mxu0 0.0
    %530 = vmatpush2.msra.mxu0 0.0
    %531 = vmatprep.subr.mxu0 0.0
    %532 = vmatpush2.msra.mxu0 0.0
    %533 = vmatprep.subr.mxu0 0.0
    %534 = vmatpush2.msra.mxu0 0.0
    %535 = vmatprep.subr.mxu0 0.0
    %536 = vmatpush2.msra.mxu0 0.0
    %537 = vmatprep.subr.mxu0 0.0
    %538 = vmatpush2.msra.mxu0 0.0
    %539 = vmatprep.subr.mxu0 0.0
    %540 = vmatpush2.msra.mxu0 0.0
    %541 = vmatprep.subr.mxu0 0.0
    %542 = vmatpush2.msra.mxu0 0.0
    %543 = vmatprep.subr.mxu0 0.0
    %544 = vmatpush2.msra.mxu0 0.0
    %545 = vmatprep.subr.mxu0 0.0
    %546 = vmatpush2.msra.mxu0 0.0
    %547 = vmatprep.mubr.f32.mxu0 0.0
    %548 = vmatmul.mubr.f32.gmra.mxu0 %v410
    %v549 = vpop.f32.mrf.mxu0
    %v550 = vadd.f32 %v108, %v549
    %v551 = vpop.f32.mrf.mxu0
    %552 = vdwg.mxu0
    %s553 = scalar_lea.vmem [#allocation2], 48
    %554 = vst [vmem:[%s553] sm:$0xff] %v479
    %555 = vst [vmem:[%s553 + $0x8] sm:$0xff] %v481
    %556 = vst [vmem:[%s553 + $0x10] sm:$0xff] %v550
    %v557 = vmul.f32 %v43, %v81
    %v559 = vsel %vm56, %v557, 0
    %561 = vmatprep.subr.mxu0 0.0
    %562 = vmatpush1.msra.mxu0 0.0
    %563 = vmatprep.subr.mxu0 0.0
    %564 = vmatpush1.msra.mxu0 0.0
    %565 = vmatprep.subr.mxu0 0.0
    %566 = vmatpush1.msra.mxu0 0.0
    %567 = vmatprep.subr.mxu0 0.0
    %568 = vmatpush1.msra.mxu0 0.0
    %569 = vmatprep.subr.mxu0 0.0
    %570 = vmatpush1.msra.mxu0 0.0
    %571 = vmatprep.subr.mxu0 0.0
    %572 = vmatpush1.msra.mxu0 0.0
    %573 = vmatprep.subr.mxu0 0.0
    %574 = vmatpush1.msra.mxu0 0.0
    %575 = vmatprep.subr.mxu0 0.0
    %576 = vmatpush1.msra.mxu0 0.0
    %577 = vmatprep.subr.mxu0 0.0
    %578 = vmatpush1.msra.mxu0 0.0
    %579 = vmatprep.subr.mxu0 0.0
    %580 = vmatpush1.msra.mxu0 0.0
    %581 = vmatprep.subr.mxu0 0.0
    %582 = vmatpush1.msra.mxu0 0.0
    %583 = vmatprep.subr.mxu0 0.0
    %584 = vmatpush1.msra.mxu0 0.0
    %585 = vmatprep.subr.mxu0 %v92
    %586 = vmatpush1.msra.mxu0 %v91
    %587 = vmatprep.subr.mxu0 %v89
    %588 = vmatpush1.msra.mxu0 %v88
    %589 = vmatprep.subr.mxu0 %v86
    %590 = vmatpush1.msra.mxu0 %v85
    %591 = vmatprep.subr.mxu0 %v83
    %592 = vmatpush1.msra.mxu0 %v82
    %593 = vmatprep.subr.mxu0 0.0
    %594 = vmatpush2.msra.mxu0 0.0
    %595 = vmatprep.subr.mxu0 0.0
    %596 = vmatpush2.msra.mxu0 0.0
    %597 = vmatprep.subr.mxu0 0.0
    %598 = vmatpush2.msra.mxu0 0.0
    %599 = vmatprep.subr.mxu0 0.0
    %600 = vmatpush2.msra.mxu0 0.0
    %601 = vmatprep.subr.mxu0 0.0
    %602 = vmatpush2.msra.mxu0 0.0
    %603 = vmatprep.subr.mxu0 0.0
    %604 = vmatpush2.msra.mxu0 0.0
    %605 = vmatprep.subr.mxu0 0.0
    %606 = vmatpush2.msra.mxu0 0.0
    %607 = vmatprep.subr.mxu0 0.0
    %608 = vmatpush2.msra.mxu0 0.0
    %609 = vmatprep.subr.mxu0 0.0
    %610 = vmatpush2.msra.mxu0 0.0
    %611 = vmatprep.subr.mxu0 0.0
    %612 = vmatpush2.msra.mxu0 0.0
    %613 = vmatprep.subr.mxu0 0.0
    %614 = vmatpush2.msra.mxu0 0.0
    %615 = vmatprep.subr.mxu0 0.0
    %616 = vmatpush2.msra.mxu0 0.0
    %617 = vmatprep.subr.mxu0 0.0
    %618 = vmatpush2.msra.mxu0 0.0
    %619 = vmatprep.subr.mxu0 0.0
    %620 = vmatpush2.msra.mxu0 0.0
    %621 = vmatprep.subr.mxu0 0.0
    %622 = vmatpush2.msra.mxu0 0.0
    %623 = vmatprep.subr.mxu0 0.0
    %624 = vmatpush2.msra.mxu0 0.0
    %625 = vmatprep.mubr.f32.mxu0 0.0
    %626 = vmatmul.mubr.f32.gmra.mxu0 %v559
    %v627 = vpop.f32.mrf.mxu0
    %v628 = vadd.f32 %v100, %v627
    %v629 = vpop.f32.mrf.mxu0
    %v630 = vadd.f32 %v104, %v629
    %631 = vdwg.mxu0
    %632 = vmatprep.subr.mxu0 0.0
    %633 = vmatpush1.msra.mxu0 0.0
    %634 = vmatprep.subr.mxu0 0.0
    %635 = vmatpush1.msra.mxu0 0.0
    %636 = vmatprep.subr.mxu0 0.0
    %637 = vmatpush1.msra.mxu0 0.0
    %638 = vmatprep.subr.mxu0 0.0
    %639 = vmatpush1.msra.mxu0 0.0
    %640 = vmatprep.subr.mxu0 0.0
    %641 = vmatpush1.msra.mxu0 0.0
    %642 = vmatprep.subr.mxu0 0.0
    %643 = vmatpush1.msra.mxu0 0.0
    %644 = vmatprep.subr.mxu0 0.0
    %645 = vmatpush1.msra.mxu0 0.0
    %646 = vmatprep.subr.mxu0 0.0
    %647 = vmatpush1.msra.mxu0 0.0
    %648 = vmatprep.subr.mxu0 0.0
    %649 = vmatpush1.msra.mxu0 0.0
    %650 = vmatprep.subr.mxu0 0.0
    %651 = vmatpush1.msra.mxu0 0.0
    %652 = vmatprep.subr.mxu0 0.0
    %653 = vmatpush1.msra.mxu0 0.0
    %654 = vmatprep.subr.mxu0 0.0
    %655 = vmatpush1.msra.mxu0 0.0
    %656 = vmatprep.subr.mxu0 0.0
    %657 = vmatpush1.msra.mxu0 %v93
    %658 = vmatprep.subr.mxu0 0.0
    %659 = vmatpush1.msra.mxu0 %v90
    %660 = vmatprep.subr.mxu0 0.0
    %661 = vmatpush1.msra.mxu0 %v87
    %662 = vmatprep.subr.mxu0 0.0
    %663 = vmatpush1.msra.mxu0 %v84
    %664 = vmatprep.subr.mxu0 0.0
    %665 = vmatpush2.msra.mxu0 0.0
    %666 = vmatprep.subr.mxu0 0.0
    %667 = vmatpush2.msra.mxu0 0.0
    %668 = vmatprep.subr.mxu0 0.0
    %669 = vmatpush2.msra.mxu0 0.0
    %670 = vmatprep.subr.mxu0 0.0
    %671 = vmatpush2.msra.mxu0 0.0
    %672 = vmatprep.subr.mxu0 0.0
    %673 = vmatpush2.msra.mxu0 0.0
    %674 = vmatprep.subr.mxu0 0.0
    %675 = vmatpush2.msra.mxu0 0.0
    %676 = vmatprep.subr.mxu0 0.0
    %677 = vmatpush2.msra.mxu0 0.0
    %678 = vmatprep.subr.mxu0 0.0
    %679 = vmatpush2.msra.mxu0 0.0
    %680 = vmatprep.subr.mxu0 0.0
    %681 = vmatpush2.msra.mxu0 0.0
    %682 = vmatprep.subr.mxu0 0.0
    %683 = vmatpush2.msra.mxu0 0.0
    %684 = vmatprep.subr.mxu0 0.0
    %685 = vmatpush2.msra.mxu0 0.0
    %686 = vmatprep.subr.mxu0 0.0
    %687 = vmatpush2.msra.mxu0 0.0
    %688 = vmatprep.subr.mxu0 0.0
    %689 = vmatpush2.msra.mxu0 0.0
    %690 = vmatprep.subr.mxu0 0.0
    %691 = vmatpush2.msra.mxu0 0.0
    %692 = vmatprep.subr.mxu0 0.0
    %693 = vmatpush2.msra.mxu0 0.0
    %694 = vmatprep.subr.mxu0 0.0
    %695 = vmatpush2.msra.mxu0 0.0
    %696 = vmatprep.mubr.f32.mxu0 0.0
    %697 = vmatmul.mubr.f32.gmra.mxu0 %v559
    %v698 = vpop.f32.mrf.mxu0
    %v699 = vadd.f32 %v108, %v698
    %v700 = vpop.f32.mrf.mxu0
    %701 = vdwg.mxu0
    %s702 = scalar_lea.vmem [#allocation2], 72
    %703 = vst [vmem:[%s702] sm:$0xff] %v628
    %704 = vst [vmem:[%s702 + $0x8] sm:$0xff] %v630
    %705 = vst [vmem:[%s702 + $0x10] sm:$0xff] %v699
    %v706 = vmul.f32 %v44, %v81
    %v708 = vsel %vm56, %v706, 0
    %710 = vmatprep.subr.mxu0 0.0
    %711 = vmatpush1.msra.mxu0 0.0
    %712 = vmatprep.subr.mxu0 0.0
    %713 = vmatpush1.msra.mxu0 0.0
    %714 = vmatprep.subr.mxu0 0.0
    %715 = vmatpush1.msra.mxu0 0.0
    %716 = vmatprep.subr.mxu0 0.0
    %717 = vmatpush1.msra.mxu0 0.0
    %718 = vmatprep.subr.mxu0 0.0
    %719 = vmatpush1.msra.mxu0 0.0
    %720 = vmatprep.subr.mxu0 0.0
    %721 = vmatpush1.msra.mxu0 0.0
    %722 = vmatprep.subr.mxu0 0.0
    %723 = vmatpush1.msra.mxu0 0.0
    %724 = vmatprep.subr.mxu0 0.0
    %725 = vmatpush1.msra.mxu0 0.0
    %726 = vmatprep.subr.mxu0 0.0
    %727 = vmatpush1.msra.mxu0 0.0
    %728 = vmatprep.subr.mxu0 0.0
    %729 = vmatpush1.msra.mxu0 0.0
    %730 = vmatprep.subr.mxu0 0.0
    %731 = vmatpush1.msra.mxu0 0.0
    %732 = vmatprep.subr.mxu0 0.0
    %733 = vmatpush1.msra.mxu0 0.0
    %734 = vmatprep.subr.mxu0 %v92
    %735 = vmatpush1.msra.mxu0 %v91
    %736 = vmatprep.subr.mxu0 %v89
    %737 = vmatpush1.msra.mxu0 %v88
    %738 = vmatprep.subr.mxu0 %v86
    %739 = vmatpush1.msra.mxu0 %v85
    %740 = vmatprep.subr.mxu0 %v83
    %741 = vmatpush1.msra.mxu0 %v82
    %742 = vmatprep.subr.mxu0 0.0
    %743 = vmatpush2.msra.mxu0 0.0
    %744 = vmatprep.subr.mxu0 0.0
    %745 = vmatpush2.msra.mxu0 0.0
    %746 = vmatprep.subr.mxu0 0.0
    %747 = vmatpush2.msra.mxu0 0.0
    %748 = vmatprep.subr.mxu0 0.0
    %749 = vmatpush2.msra.mxu0 0.0
    %750 = vmatprep.subr.mxu0 0.0
    %751 = vmatpush2.msra.mxu0 0.0
    %752 = vmatprep.subr.mxu0 0.0
    %753 = vmatpush2.msra.mxu0 0.0
    %754 = vmatprep.subr.mxu0 0.0
    %755 = vmatpush2.msra.mxu0 0.0
    %756 = vmatprep.subr.mxu0 0.0
    %757 = vmatpush2.msra.mxu0 0.0
    %758 = vmatprep.subr.mxu0 0.0
    %759 = vmatpush2.msra.mxu0 0.0
    %760 = vmatprep.subr.mxu0 0.0
    %761 = vmatpush2.msra.mxu0 0.0
    %762 = vmatprep.subr.mxu0 0.0
    %763 = vmatpush2.msra.mxu0 0.0
    %764 = vmatprep.subr.mxu0 0.0
    %765 = vmatpush2.msra.mxu0 0.0
    %766 = vmatprep.subr.mxu0 0.0
    %767 = vmatpush2.msra.mxu0 0.0
    %768 = vmatprep.subr.mxu0 0.0
    %769 = vmatpush2.msra.mxu0 0.0
    %770 = vmatprep.subr.mxu0 0.0
    %771 = vmatpush2.msra.mxu0 0.0
    %772 = vmatprep.subr.mxu0 0.0
    %773 = vmatpush2.msra.mxu0 0.0
    %774 = vmatprep.mubr.f32.mxu0 0.0
    %775 = vmatmul.mubr.f32.gmra.mxu0 %v708
    %v776 = vpop.f32.mrf.mxu0
    %v777 = vadd.f32 %v100, %v776
    %v778 = vpop.f32.mrf.mxu0
    %v779 = vadd.f32 %v104, %v778
    %780 = vdwg.mxu0
    %781 = vmatprep.subr.mxu0 0.0
    %782 = vmatpush1.msra.mxu0 0.0
    %783 = vmatprep.subr.mxu0 0.0
    %784 = vmatpush1.msra.mxu0 0.0
    %785 = vmatprep.subr.mxu0 0.0
    %786 = vmatpush1.msra.mxu0 0.0
    %787 = vmatprep.subr.mxu0 0.0
    %788 = vmatpush1.msra.mxu0 0.0
    %789 = vmatprep.subr.mxu0 0.0
    %790 = vmatpush1.msra.mxu0 0.0
    %791 = vmatprep.subr.mxu0 0.0
    %792 = vmatpush1.msra.mxu0 0.0
    %793 = vmatprep.subr.mxu0 0.0
    %794 = vmatpush1.msra.mxu0 0.0
    %795 = vmatprep.subr.mxu0 0.0
    %796 = vmatpush1.msra.mxu0 0.0
    %797 = vmatprep.subr.mxu0 0.0
    %798 = vmatpush1.msra.mxu0 0.0
    %799 = vmatprep.subr.mxu0 0.0
    %800 = vmatpush1.msra.mxu0 0.0
    %801 = vmatprep.subr.mxu0 0.0
    %802 = vmatpush1.msra.mxu0 0.0
    %803 = vmatprep.subr.mxu0 0.0
    %804 = vmatpush1.msra.mxu0 0.0
    %805 = vmatprep.subr.mxu0 0.0
    %806 = vmatpush1.msra.mxu0 %v93
    %807 = vmatprep.subr.mxu0 0.0
    %808 = vmatpush1.msra.mxu0 %v90
    %809 = vmatprep.subr.mxu0 0.0
    %810 = vmatpush1.msra.mxu0 %v87
    %811 = vmatprep.subr.mxu0 0.0
    %812 = vmatpush1.msra.mxu0 %v84
    %813 = vmatprep.subr.mxu0 0.0
    %814 = vmatpush2.msra.mxu0 0.0
    %815 = vmatprep.subr.mxu0 0.0
    %816 = vmatpush2.msra.mxu0 0.0
    %817 = vmatprep.subr.mxu0 0.0
    %818 = vmatpush2.msra.mxu0 0.0
    %819 = vmatprep.subr.mxu0 0.0
    %820 = vmatpush2.msra.mxu0 0.0
    %821 = vmatprep.subr.mxu0 0.0
    %822 = vmatpush2.msra.mxu0 0.0
    %823 = vmatprep.subr.mxu0 0.0
    %824 = vmatpush2.msra.mxu0 0.0
    %825 = vmatprep.subr.mxu0 0.0
    %826 = vmatpush2.msra.mxu0 0.0
    %827 = vmatprep.subr.mxu0 0.0
    %828 = vmatpush2.msra.mxu0 0.0
    %829 = vmatprep.subr.mxu0 0.0
    %830 = vmatpush2.msra.mxu0 0.0
    %831 = vmatprep.subr.mxu0 0.0
    %832 = vmatpush2.msra.mxu0 0.0
    %833 = vmatprep.subr.mxu0 0.0
    %834 = vmatpush2.msra.mxu0 0.0
    %835 = vmatprep.subr.mxu0 0.0
    %836 = vmatpush2.msra.mxu0 0.0
    %837 = vmatprep.subr.mxu0 0.0
    %838 = vmatpush2.msra.mxu0 0.0
    %839 = vmatprep.subr.mxu0 0.0
    %840 = vmatpush2.msra.mxu0 0.0
    %841 = vmatprep.subr.mxu0 0.0
    %842 = vmatpush2.msra.mxu0 0.0
    %843 = vmatprep.subr.mxu0 0.0
    %844 = vmatpush2.msra.mxu0 0.0
    %845 = vmatprep.mubr.f32.mxu0 0.0
    %846 = vmatmul.mubr.f32.gmra.mxu0 %v708
    %v847 = vpop.f32.mrf.mxu0
    %v848 = vadd.f32 %v108, %v847
    %v849 = vpop.f32.mrf.mxu0
    %850 = vdwg.mxu0
    %s851 = scalar_lea.vmem [#allocation2], 96
    %852 = vst [vmem:[%s851] sm:$0xff] %v777
    %853 = vst [vmem:[%s851 + $0x8] sm:$0xff] %v779
    %854 = vst [vmem:[%s851 + $0x10] sm:$0xff] %v848
    %v855 = vmul.f32 %v45, %v81
    %v857 = vsel %vm56, %v855, 0
    %859 = vmatprep.subr.mxu0 0.0
    %860 = vmatpush1.msra.mxu0 0.0
    %861 = vmatprep.subr.mxu0 0.0
    %862 = vmatpush1.msra.mxu0 0.0
    %863 = vmatprep.subr.mxu0 0.0
    %864 = vmatpush1.msra.mxu0 0.0
    %865 = vmatprep.subr.mxu0 0.0
    %866 = vmatpush1.msra.mxu0 0.0
    %867 = vmatprep.subr.mxu0 0.0
    %868 = vmatpush1.msra.mxu0 0.0
    %869 = vmatprep.subr.mxu0 0.0
    %870 = vmatpush1.msra.mxu0 0.0
    %871 = vmatprep.subr.mxu0 0.0
    %872 = vmatpush1.msra.mxu0 0.0
    %873 = vmatprep.subr.mxu0 0.0
    %874 = vmatpush1.msra.mxu0 0.0
    %875 = vmatprep.subr.mxu0 0.0
    %876 = vmatpush1.msra.mxu0 0.0
    %877 = vmatprep.subr.mxu0 0.0
    %878 = vmatpush1.msra.mxu0 0.0
    %879 = vmatprep.subr.mxu0 0.0
    %880 = vmatpush1.msra.mxu0 0.0
    %881 = vmatprep.subr.mxu0 0.0
    %882 = vmatpush1.msra.mxu0 0.0
    %883 = vmatprep.subr.mxu0 %v92
    %884 = vmatpush1.msra.mxu0 %v91
    %885 = vmatprep.subr.mxu0 %v89
    %886 = vmatpush1.msra.mxu0 %v88
    %887 = vmatprep.subr.mxu0 %v86
    %888 = vmatpush1.msra.mxu0 %v85
    %889 = vmatprep.subr.mxu0 %v83
    %890 = vmatpush1.msra.mxu0 %v82
    %891 = vmatprep.subr.mxu0 0.0
    %892 = vmatpush2.msra.mxu0 0.0
    %893 = vmatprep.subr.mxu0 0.0
    %894 = vmatpush2.msra.mxu0 0.0
    %895 = vmatprep.subr.mxu0 0.0
    %896 = vmatpush2.msra.mxu0 0.0
    %897 = vmatprep.subr.mxu0 0.0
    %898 = vmatpush2.msra.mxu0 0.0
    %899 = vmatprep.subr.mxu0 0.0
    %900 = vmatpush2.msra.mxu0 0.0
    %901 = vmatprep.subr.mxu0 0.0
    %902 = vmatpush2.msra.mxu0 0.0
    %903 = vmatprep.subr.mxu0 0.0
    %904 = vmatpush2.msra.mxu0 0.0
    %905 = vmatprep.subr.mxu0 0.0
    %906 = vmatpush2.msra.mxu0 0.0
    %907 = vmatprep.subr.mxu0 0.0
    %908 = vmatpush2.msra.mxu0 0.0
    %909 = vmatprep.subr.mxu0 0.0
    %910 = vmatpush2.msra.mxu0 0.0
    %911 = vmatprep.subr.mxu0 0.0
    %912 = vmatpush2.msra.mxu0 0.0
    %913 = vmatprep.subr.mxu0 0.0
    %914 = vmatpush2.msra.mxu0 0.0
    %915 = vmatprep.subr.mxu0 0.0
    %916 = vmatpush2.msra.mxu0 0.0
    %917 = vmatprep.subr.mxu0 0.0
    %918 = vmatpush2.msra.mxu0 0.0
    %919 = vmatprep.subr.mxu0 0.0
    %920 = vmatpush2.msra.mxu0 0.0
    %921 = vmatprep.subr.mxu0 0.0
    %922 = vmatpush2.msra.mxu0 0.0
    %923 = vmatprep.mubr.f32.mxu0 0.0
    %924 = vmatmul.mubr.f32.gmra.mxu0 %v857
    %v925 = vpop.f32.mrf.mxu0
    %v926 = vadd.f32 %v100, %v925
    %v927 = vpop.f32.mrf.mxu0
    %v928 = vadd.f32 %v104, %v927
    %929 = vdwg.mxu0
    %930 = vmatprep.subr.mxu0 0.0
    %931 = vmatpush1.msra.mxu0 0.0
    %932 = vmatprep.subr.mxu0 0.0
    %933 = vmatpush1.msra.mxu0 0.0
    %934 = vmatprep.subr.mxu0 0.0
    %935 = vmatpush1.msra.mxu0 0.0
    %936 = vmatprep.subr.mxu0 0.0
    %937 = vmatpush1.msra.mxu0 0.0
    %938 = vmatprep.subr.mxu0 0.0
    %939 = vmatpush1.msra.mxu0 0.0
    %940 = vmatprep.subr.mxu0 0.0
    %941 = vmatpush1.msra.mxu0 0.0
    %942 = vmatprep.subr.mxu0 0.0
    %943 = vmatpush1.msra.mxu0 0.0
    %944 = vmatprep.subr.mxu0 0.0
    %945 = vmatpush1.msra.mxu0 0.0
    %946 = vmatprep.subr.mxu0 0.0
    %947 = vmatpush1.msra.mxu0 0.0
    %948 = vmatprep.subr.mxu0 0.0
    %949 = vmatpush1.msra.mxu0 0.0
    %950 = vmatprep.subr.mxu0 0.0
    %951 = vmatpush1.msra.mxu0 0.0
    %952 = vmatprep.subr.mxu0 0.0
    %953 = vmatpush1.msra.mxu0 0.0
    %954 = vmatprep.subr.mxu0 0.0
    %955 = vmatpush1.msra.mxu0 %v93
    %956 = vmatprep.subr.mxu0 0.0
    %957 = vmatpush1.msra.mxu0 %v90
    %958 = vmatprep.subr.mxu0 0.0
    %959 = vmatpush1.msra.mxu0 %v87
    %960 = vmatprep.subr.mxu0 0.0
    %961 = vmatpush1.msra.mxu0 %v84
    %962 = vmatprep.subr.mxu0 0.0
    %963 = vmatpush2.msra.mxu0 0.0
    %964 = vmatprep.subr.mxu0 0.0
    %965 = vmatpush2.msra.mxu0 0.0
    %966 = vmatprep.subr.mxu0 0.0
    %967 = vmatpush2.msra.mxu0 0.0
    %968 = vmatprep.subr.mxu0 0.0
    %969 = vmatpush2.msra.mxu0 0.0
    %970 = vmatprep.subr.mxu0 0.0
    %971 = vmatpush2.msra.mxu0 0.0
    %972 = vmatprep.subr.mxu0 0.0
    %973 = vmatpush2.msra.mxu0 0.0
    %974 = vmatprep.subr.mxu0 0.0
    %975 = vmatpush2.msra.mxu0 0.0
    %976 = vmatprep.subr.mxu0 0.0
    %977 = vmatpush2.msra.mxu0 0.0
    %978 = vmatprep.subr.mxu0 0.0
    %979 = vmatpush2.msra.mxu0 0.0
    %980 = vmatprep.subr.mxu0 0.0
    %981 = vmatpush2.msra.mxu0 0.0
    %982 = vmatprep.subr.mxu0 0.0
    %983 = vmatpush2.msra.mxu0 0.0
    %984 = vmatprep.subr.mxu0 0.0
    %985 = vmatpush2.msra.mxu0 0.0
    %986 = vmatprep.subr.mxu0 0.0
    %987 = vmatpush2.msra.mxu0 0.0
    %988 = vmatprep.subr.mxu0 0.0
    %989 = vmatpush2.msra.mxu0 0.0
    %990 = vmatprep.subr.mxu0 0.0
    %991 = vmatpush2.msra.mxu0 0.0
    %992 = vmatprep.subr.mxu0 0.0
    %993 = vmatpush2.msra.mxu0 0.0
    %994 = vmatprep.mubr.f32.mxu0 0.0
    %995 = vmatmul.mubr.f32.gmra.mxu0 %v857
    %v996 = vpop.f32.mrf.mxu0
    %v997 = vadd.f32 %v108, %v996
    %v998 = vpop.f32.mrf.mxu0
    %999 = vdwg.mxu0
    %s1000 = scalar_lea.vmem [#allocation2], 120
    %1001 = vst [vmem:[%s1000] sm:$0xff] %v926
    %1002 = vst [vmem:[%s1000 + $0x8] sm:$0xff] %v928
    %1003 = vst [vmem:[%s1000 + $0x10] sm:$0xff] %v997
    %v1004 = vmul.f32 %v46, %v81
    %v1006 = vsel %vm56, %v1004, 0
    %1008 = vmatprep.subr.mxu0 0.0
    %1009 = vmatpush1.msra.mxu0 0.0
    %1010 = vmatprep.subr.mxu0 0.0
    %1011 = vmatpush1.msra.mxu0 0.0
    %1012 = vmatprep.subr.mxu0 0.0
    %1013 = vmatpush1.msra.mxu0 0.0
    %1014 = vmatprep.subr.mxu0 0.0
    %1015 = vmatpush1.msra.mxu0 0.0
    %1016 = vmatprep.subr.mxu0 0.0
    %1017 = vmatpush1.msra.mxu0 0.0
    %1018 = vmatprep.subr.mxu0 0.0
    %1019 = vmatpush1.msra.mxu0 0.0
    %1020 = vmatprep.subr.mxu0 0.0
    %1021 = vmatpush1.msra.mxu0 0.0
    %1022 = vmatprep.subr.mxu0 0.0
    %1023 = vmatpush1.msra.mxu0 0.0
    %1024 = vmatprep.subr.mxu0 0.0
    %1025 = vmatpush1.msra.mxu0 0.0
    %1026 = vmatprep.subr.mxu0 0.0
    %1027 = vmatpush1.msra.mxu0 0.0
    %1028 = vmatprep.subr.mxu0 0.0
    %1029 = vmatpush1.msra.mxu0 0.0
    %1030 = vmatprep.subr.mxu0 0.0
    %1031 = vmatpush1.msra.mxu0 0.0
    %1032 = vmatprep.subr.mxu0 %v92
    %1033 = vmatpush1.msra.mxu0 %v91
    %1034 = vmatprep.subr.mxu0 %v89
    %1035 = vmatpush1.msra.mxu0 %v88
    %1036 = vmatprep.subr.mxu0 %v86
    %1037 = vmatpush1.msra.mxu0 %v85
    %1038 = vmatprep.subr.mxu0 %v83
    %1039 = vmatpush1.msra.mxu0 %v82
    %1040 = vmatprep.subr.mxu0 0.0
    %1041 = vmatpush2.msra.mxu0 0.0
    %1042 = vmatprep.subr.mxu0 0.0
    %1043 = vmatpush2.msra.mxu0 0.0
    %1044 = vmatprep.subr.mxu0 0.0
    %1045 = vmatpush2.msra.mxu0 0.0
    %1046 = vmatprep.subr.mxu0 0.0
    %1047 = vmatpush2.msra.mxu0 0.0
    %1048 = vmatprep.subr.mxu0 0.0
    %1049 = vmatpush2.msra.mxu0 0.0
    %1050 = vmatprep.subr.mxu0 0.0
    %1051 = vmatpush2.msra.mxu0 0.0
    %1052 = vmatprep.subr.mxu0 0.0
    %1053 = vmatpush2.msra.mxu0 0.0
    %1054 = vmatprep.subr.mxu0 0.0
    %1055 = vmatpush2.msra.mxu0 0.0
    %1056 = vmatprep.subr.mxu0 0.0
    %1057 = vmatpush2.msra.mxu0 0.0
    %1058 = vmatprep.subr.mxu0 0.0
    %1059 = vmatpush2.msra.mxu0 0.0
    %1060 = vmatprep.subr.mxu0 0.0
    %1061 = vmatpush2.msra.mxu0 0.0
    %1062 = vmatprep.subr.mxu0 0.0
    %1063 = vmatpush2.msra.mxu0 0.0
    %1064 = vmatprep.subr.mxu0 0.0
    %1065 = vmatpush2.msra.mxu0 0.0
    %1066 = vmatprep.subr.mxu0 0.0
    %1067 = vmatpush2.msra.mxu0 0.0
    %1068 = vmatprep.subr.mxu0 0.0
    %1069 = vmatpush2.msra.mxu0 0.0
    %1070 = vmatprep.subr.mxu0 0.0
    %1071 = vmatpush2.msra.mxu0 0.0
    %1072 = vmatprep.mubr.f32.mxu0 0.0
    %1073 = vmatmul.mubr.f32.gmra.mxu0 %v1006
    %v1074 = vpop.f32.mrf.mxu0
    %v1075 = vadd.f32 %v100, %v1074
    %v1076 = vpop.f32.mrf.mxu0
    %v1077 = vadd.f32 %v104, %v1076
    %1078 = vdwg.mxu0
    %1079 = vmatprep.subr.mxu0 0.0
    %1080 = vmatpush1.msra.mxu0 0.0
    %1081 = vmatprep.subr.mxu0 0.0
    %1082 = vmatpush1.msra.mxu0 0.0
    %1083 = vmatprep.subr.mxu0 0.0
    %1084 = vmatpush1.msra.mxu0 0.0
    %1085 = vmatprep.subr.mxu0 0.0
    %1086 = vmatpush1.msra.mxu0 0.0
    %1087 = vmatprep.subr.mxu0 0.0
    %1088 = vmatpush1.msra.mxu0 0.0
    %1089 = vmatprep.subr.mxu0 0.0
    %1090 = vmatpush1.msra.mxu0 0.0
    %1091 = vmatprep.subr.mxu0 0.0
    %1092 = vmatpush1.msra.mxu0 0.0
    %1093 = vmatprep.subr.mxu0 0.0
    %1094 = vmatpush1.msra.mxu0 0.0
    %1095 = vmatprep.subr.mxu0 0.0
    %1096 = vmatpush1.msra.mxu0 0.0
    %1097 = vmatprep.subr.mxu0 0.0
    %1098 = vmatpush1.msra.mxu0 0.0
    %1099 = vmatprep.subr.mxu0 0.0
    %1100 = vmatpush1.msra.mxu0 0.0
    %1101 = vmatprep.subr.mxu0 0.0
    %1102 = vmatpush1.msra.mxu0 0.0
    %1103 = vmatprep.subr.mxu0 0.0
    %1104 = vmatpush1.msra.mxu0 %v93
    %1105 = vmatprep.subr.mxu0 0.0
    %1106 = vmatpush1.msra.mxu0 %v90
    %1107 = vmatprep.subr.mxu0 0.0
    %1108 = vmatpush1.msra.mxu0 %v87
    %1109 = vmatprep.subr.mxu0 0.0
    %1110 = vmatpush1.msra.mxu0 %v84
    %1111 = vmatprep.subr.mxu0 0.0
    %1112 = vmatpush2.msra.mxu0 0.0
    %1113 = vmatprep.subr.mxu0 0.0
    %1114 = vmatpush2.msra.mxu0 0.0
    %1115 = vmatprep.subr.mxu0 0.0
    %1116 = vmatpush2.msra.mxu0 0.0
    %1117 = vmatprep.subr.mxu0 0.0
    %1118 = vmatpush2.msra.mxu0 0.0
    %1119 = vmatprep.subr.mxu0 0.0
    %1120 = vmatpush2.msra.mxu0 0.0
    %1121 = vmatprep.subr.mxu0 0.0
    %1122 = vmatpush2.msra.mxu0 0.0
    %1123 = vmatprep.subr.mxu0 0.0
    %1124 = vmatpush2.msra.mxu0 0.0
    %1125 = vmatprep.subr.mxu0 0.0
    %1126 = vmatpush2.msra.mxu0 0.0
    %1127 = vmatprep.subr.mxu0 0.0
    %1128 = vmatpush2.msra.mxu0 0.0
    %1129 = vmatprep.subr.mxu0 0.0
    %1130 = vmatpush2.msra.mxu0 0.0
    %1131 = vmatprep.subr.mxu0 0.0
    %1132 = vmatpush2.msra.mxu0 0.0
    %1133 = vmatprep.subr.mxu0 0.0
    %1134 = vmatpush2.msra.mxu0 0.0
    %1135 = vmatprep.subr.mxu0 0.0
    %1136 = vmatpush2.msra.mxu0 0.0
    %1137 = vmatprep.subr.mxu0 0.0
    %1138 = vmatpush2.msra.mxu0 0.0
    %1139 = vmatprep.subr.mxu0 0.0
    %1140 = vmatpush2.msra.mxu0 0.0
    %1141 = vmatprep.subr.mxu0 0.0
    %1142 = vmatpush2.msra.mxu0 0.0
    %1143 = vmatprep.mubr.f32.mxu0 0.0
    %1144 = vmatmul.mubr.f32.gmra.mxu0 %v1006
    %v1145 = vpop.f32.mrf.mxu0
    %v1146 = vadd.f32 %v108, %v1145
    %v1147 = vpop.f32.mrf.mxu0
    %1148 = vdwg.mxu0
    %s1149 = scalar_lea.vmem [#allocation2], 144
    %1150 = vst [vmem:[%s1149] sm:$0xff] %v1075
    %1151 = vst [vmem:[%s1149 + $0x8] sm:$0xff] %v1077
    %1152 = vst [vmem:[%s1149 + $0x10] sm:$0xff] %v1146
    %v1153 = vmul.f32 %v47, %v81
    %v1155 = vsel %vm56, %v1153, 0
    %1157 = vmatprep.subr.mxu0 0.0
    %1158 = vmatpush1.msra.mxu0 0.0
    %1159 = vmatprep.subr.mxu0 0.0
    %1160 = vmatpush1.msra.mxu0 0.0
    %1161 = vmatprep.subr.mxu0 0.0
    %1162 = vmatpush1.msra.mxu0 0.0
    %1163 = vmatprep.subr.mxu0 0.0
    %1164 = vmatpush1.msra.mxu0 0.0
    %1165 = vmatprep.subr.mxu0 0.0
    %1166 = vmatpush1.msra.mxu0 0.0
    %1167 = vmatprep.subr.mxu0 0.0
    %1168 = vmatpush1.msra.mxu0 0.0
    %1169 = vmatprep.subr.mxu0 0.0
    %1170 = vmatpush1.msra.mxu0 0.0
    %1171 = vmatprep.subr.mxu0 0.0
    %1172 = vmatpush1.msra.mxu0 0.0
    %1173 = vmatprep.subr.mxu0 0.0
    %1174 = vmatpush1.msra.mxu0 0.0
    %1175 = vmatprep.subr.mxu0 0.0
    %1176 = vmatpush1.msra.mxu0 0.0
    %1177 = vmatprep.subr.mxu0 0.0
    %1178 = vmatpush1.msra.mxu0 0.0
    %1179 = vmatprep.subr.mxu0 0.0
    %1180 = vmatpush1.msra.mxu0 0.0
    %1181 = vmatprep.subr.mxu0 %v92
    %1182 = vmatpush1.msra.mxu0 %v91
    %1183 = vmatprep.subr.mxu0 %v89
    %1184 = vmatpush1.msra.mxu0 %v88
    %1185 = vmatprep.subr.mxu0 %v86
    %1186 = vmatpush1.msra.mxu0 %v85
    %1187 = vmatprep.subr.mxu0 %v83
    %1188 = vmatpush1.msra.mxu0 %v82
    %1189 = vmatprep.subr.mxu0 0.0
    %1190 = vmatpush2.msra.mxu0 0.0
    %1191 = vmatprep.subr.mxu0 0.0
    %1192 = vmatpush2.msra.mxu0 0.0
    %1193 = vmatprep.subr.mxu0 0.0
    %1194 = vmatpush2.msra.mxu0 0.0
    %1195 = vmatprep.subr.mxu0 0.0
    %1196 = vmatpush2.msra.mxu0 0.0
    %1197 = vmatprep.subr.mxu0 0.0
    %1198 = vmatpush2.msra.mxu0 0.0
    %1199 = vmatprep.subr.mxu0 0.0
    %1200 = vmatpush2.msra.mxu0 0.0
    %1201 = vmatprep.subr.mxu0 0.0
    %1202 = vmatpush2.msra.mxu0 0.0
    %1203 = vmatprep.subr.mxu0 0.0
    %1204 = vmatpush2.msra.mxu0 0.0
    %1205 = vmatprep.subr.mxu0 0.0
    %1206 = vmatpush2.msra.mxu0 0.0
    %1207 = vmatprep.subr.mxu0 0.0
    %1208 = vmatpush2.msra.mxu0 0.0
    %1209 = vmatprep.subr.mxu0 0.0
    %1210 = vmatpush2.msra.mxu0 0.0
    %1211 = vmatprep.subr.mxu0 0.0
    %1212 = vmatpush2.msra.mxu0 0.0
    %1213 = vmatprep.subr.mxu0 0.0
    %1214 = vmatpush2.msra.mxu0 0.0
    %1215 = vmatprep.subr.mxu0 0.0
    %1216 = vmatpush2.msra.mxu0 0.0
    %1217 = vmatprep.subr.mxu0 0.0
    %1218 = vmatpush2.msra.mxu0 0.0
    %1219 = vmatprep.subr.mxu0 0.0
    %1220 = vmatpush2.msra.mxu0 0.0
    %1221 = vmatprep.mubr.f32.mxu0 0.0
    %1222 = vmatmul.mubr.f32.gmra.mxu0 %v1155
    %v1223 = vpop.f32.mrf.mxu0
    %v1224 = vadd.f32 %v100, %v1223
    %v1225 = vpop.f32.mrf.mxu0
    %v1226 = vadd.f32 %v104, %v1225
    %1227 = vdwg.mxu0
    %1228 = vmatprep.subr.mxu0 0.0
    %1229 = vmatpush1.msra.mxu0 0.0
    %1230 = vmatprep.subr.mxu0 0.0
    %1231 = vmatpush1.msra.mxu0 0.0
    %1232 = vmatprep.subr.mxu0 0.0
    %1233 = vmatpush1.msra.mxu0 0.0
    %1234 = vmatprep.subr.mxu0 0.0
    %1235 = vmatpush1.msra.mxu0 0.0
    %1236 = vmatprep.subr.mxu0 0.0
    %1237 = vmatpush1.msra.mxu0 0.0
    %1238 = vmatprep.subr.mxu0 0.0
    %1239 = vmatpush1.msra.mxu0 0.0
    %1240 = vmatprep.subr.mxu0 0.0
    %1241 = vmatpush1.msra.mxu0 0.0
    %1242 = vmatprep.subr.mxu0 0.0
    %1243 = vmatpush1.msra.mxu0 0.0
    %1244 = vmatprep.subr.mxu0 0.0
    %1245 = vmatpush1.msra.mxu0 0.0
    %1246 = vmatprep.subr.mxu0 0.0
    %1247 = vmatpush1.msra.mxu0 0.0
    %1248 = vmatprep.subr.mxu0 0.0
    %1249 = vmatpush1.msra.mxu0 0.0
    %1250 = vmatprep.subr.mxu0 0.0
    %1251 = vmatpush1.msra.mxu0 0.0
    %1252 = vmatprep.subr.mxu0 0.0
    %1253 = vmatpush1.msra.mxu0 %v93
    %1254 = vmatprep.subr.mxu0 0.0
    %1255 = vmatpush1.msra.mxu0 %v90
    %1256 = vmatprep.subr.mxu0 0.0
    %1257 = vmatpush1.msra.mxu0 %v87
    %1258 = vmatprep.subr.mxu0 0.0
    %1259 = vmatpush1.msra.mxu0 %v84
    %1260 = vmatprep.subr.mxu0 0.0
    %1261 = vmatpush2.msra.mxu0 0.0
    %1262 = vmatprep.subr.mxu0 0.0
    %1263 = vmatpush2.msra.mxu0 0.0
    %1264 = vmatprep.subr.mxu0 0.0
    %1265 = vmatpush2.msra.mxu0 0.0
    %1266 = vmatprep.subr.mxu0 0.0
    %1267 = vmatpush2.msra.mxu0 0.0
    %1268 = vmatprep.subr.mxu0 0.0
    %1269 = vmatpush2.msra.mxu0 0.0
    %1270 = vmatprep.subr.mxu0 0.0
    %1271 = vmatpush2.msra.mxu0 0.0
    %1272 = vmatprep.subr.mxu0 0.0
    %1273 = vmatpush2.msra.mxu0 0.0
    %1274 = vmatprep.subr.mxu0 0.0
    %1275 = vmatpush2.msra.mxu0 0.0
    %1276 = vmatprep.subr.mxu0 0.0
    %1277 = vmatpush2.msra.mxu0 0.0
    %1278 = vmatprep.subr.mxu0 0.0
    %1279 = vmatpush2.msra.mxu0 0.0
    %1280 = vmatprep.subr.mxu0 0.0
    %1281 = vmatpush2.msra.mxu0 0.0
    %1282 = vmatprep.subr.mxu0 0.0
    %1283 = vmatpush2.msra.mxu0 0.0
    %1284 = vmatprep.subr.mxu0 0.0
    %1285 = vmatpush2.msra.mxu0 0.0
    %1286 = vmatprep.subr.mxu0 0.0
    %1287 = vmatpush2.msra.mxu0 0.0
    %1288 = vmatprep.subr.mxu0 0.0
    %1289 = vmatpush2.msra.mxu0 0.0
    %1290 = vmatprep.subr.mxu0 0.0
    %1291 = vmatpush2.msra.mxu0 0.0
    %1292 = vmatprep.mubr.f32.mxu0 0.0
    %1293 = vmatmul.mubr.f32.gmra.mxu0 %v1155
    %v1294 = vpop.f32.mrf.mxu0
    %v1295 = vadd.f32 %v108, %v1294
    %v1296 = vpop.f32.mrf.mxu0
    %1297 = vdwg.mxu0
    %s1298 = scalar_lea.vmem [#allocation2], 168
    %1299 = vst [vmem:[%s1298] sm:$0xff] %v1224
    %1300 = vst [vmem:[%s1298 + $0x8] sm:$0xff] %v1226
    %1301 = vst [vmem:[%s1298 + $0x10] sm:$0xff] %v1295
    %v1302 = vld [vmem:[#allocation3] sm:$0xff]
    %v1303 = vld [vmem:[#allocation3 + $0x8] sm:$0xff]
    %v1304 = vld [vmem:[#allocation3 + $0x10] sm:$0xff]
    %v1305 = vld [vmem:[#allocation3 + $0x18] sm:$0xff]
    %v1306 = vld [vmem:[#allocation3 + $0x20] sm:$0xff]
    %v1307 = vld [vmem:[#allocation3 + $0x28] sm:$0xff]
    %v1308 = vld [vmem:[#allocation3 + $0x30] sm:$0xff]
    %v1309 = vld [vmem:[#allocation3 + $0x38] sm:$0xff]
    %v1310 = vld [vmem:[#allocation3 + $0x40] sm:$0xff]
    %v1311 = vld [vmem:[#allocation3 + $0x48] sm:$0xff]
    %v1312 = vld [vmem:[#allocation3 + $0x50] sm:$0xff]
    %v1313 = vld [vmem:[#allocation3 + $0x58] sm:$0xff]
    %v1314 = vld [vmem:[#allocation3 + $0x60] sm:$0xff]
    %v1315 = vld [vmem:[#allocation3 + $0x68] sm:$0xff]
    %v1316 = vld [vmem:[#allocation3 + $0x70] sm:$0xff]
    %v1317 = vld [vmem:[#allocation3 + $0x78] sm:$0xff]
    %v1318 = vld [vmem:[#allocation3 + $0x80] sm:$0xff]
    %v1319 = vld [vmem:[#allocation3 + $0x88] sm:$0xff]
    %v1320 = vld [vmem:[#allocation3 + $0x90] sm:$0xff]
    %v1321 = vld [vmem:[#allocation3 + $0x98] sm:$0xff]
    %v1322 = vld [vmem:[#allocation3 + $0xa0] sm:$0xff]
    %v1323 = vld [vmem:[#allocation3 + $0xa8] sm:$0xff]
    %v1324 = vld [vmem:[#allocation3 + $0xb0] sm:$0xff]
    %v1325 = vld [vmem:[#allocation3 + $0xb8] sm:$0xff]
    %v1326 = vld [vmem:[#allocation3 + $0xc0] sm:$0xff]
    %v1327 = vld [vmem:[#allocation3 + $0xc8] sm:$0xff]
    %v1328 = vld [vmem:[#allocation3 + $0xd0] sm:$0xff]
    %v1329 = vld [vmem:[#allocation3 + $0xd8] sm:$0xff]
    %v1330 = vld [vmem:[#allocation3 + $0xe0] sm:$0xff]
    %v1331 = vld [vmem:[#allocation3 + $0xe8] sm:$0xff]
    %v1332 = vld [vmem:[#allocation3 + $0xf0] sm:$0xff]
    %v1333 = vld [vmem:[#allocation3 + $0xf8] sm:$0xff]
    %v1334 = vld [vmem:[#allocation3 + $0x100] sm:$0xff]
    %v1335 = vld [vmem:[#allocation3 + $0x108] sm:$0xff]
    %v1336 = vld [vmem:[#allocation3 + $0x110] sm:$0xff]
    %v1337 = vld [vmem:[#allocation3 + $0x118] sm:$0xff]
    %v1338 = vld [vmem:[#allocation3 + $0x120] sm:$0xff]
    %v1339 = vld [vmem:[#allocation3 + $0x128] sm:$0xff]
    %v1340 = vld [vmem:[#allocation3 + $0x130] sm:$0xff]
    %v1341 = vld [vmem:[#allocation3 + $0x138] sm:$0xff]
    %v1342 = vld [vmem:[#allocation3 + $0x140] sm:$0xff]
    %v1343 = vld [vmem:[#allocation3 + $0x148] sm:$0xff]
    %v1344 = vld [vmem:[#allocation3 + $0x150] sm:$0xff]
    %v1345 = vld [vmem:[#allocation3 + $0x158] sm:$0xff]
    %v1346 = vld [vmem:[#allocation3 + $0x160] sm:$0xff]
    %v1347 = vld [vmem:[#allocation3 + $0x168] sm:$0xff]
    %v1348 = vld [vmem:[#allocation3 + $0x170] sm:$0xff]
    %v1349 = vld [vmem:[#allocation3 + $0x178] sm:$0xff]
    %v1350 = vld [vmem:[%s4] sm:$0x7]
    %v1351 = vld [vmem:[#allocation2] sm:$0xff]
    %v1352 = vld [vmem:[#allocation2 + $0x8] sm:$0xff]
    %v1353 = vld [vmem:[#allocation2 + $0x10] sm:$0xff]
    %v1355 = vlaneseq
    %v1356 = vshrl.u32 %v1355, 7
    %v1357 = vsub.s32 0, %v1356
    %v1358 = vrot.slane %v1350, %v1357
    %v1359 = vlaneseq
    %v1360 = vshrl.u32 %v1359, 7
    %v1361 = vsub.s32 1, %v1360
    %v1362 = vrot.slane %v1350, %v1361
    %v1363 = vlaneseq
    %v1364 = vshrl.u32 %v1363, 7
    %v1365 = vsub.s32 2, %v1364
    %v1366 = vrot.slane %v1350, %v1365
    %1370 = vmatprep.subr.mxu0 %v1348
    %1371 = vmatpush1.msra.mxu0 %v1347
    %1372 = vmatprep.subr.mxu0 %v1345
    %1373 = vmatpush1.msra.mxu0 %v1344
    %1374 = vmatprep.subr.mxu0 %v1342
    %1375 = vmatpush1.msra.mxu0 %v1341
    %1376 = vmatprep.subr.mxu0 %v1339
    %1377 = vmatpush1.msra.mxu0 %v1338
    %1378 = vmatprep.subr.mxu0 %v1336
    %1379 = vmatpush1.msra.mxu0 %v1335
    %1380 = vmatprep.subr.mxu0 %v1333
    %1381 = vmatpush1.msra.mxu0 %v1332
    %1382 = vmatprep.subr.mxu0 %v1330
    %1383 = vmatpush1.msra.mxu0 %v1329
    %1384 = vmatprep.subr.mxu0 %v1327
    %1385 = vmatpush1.msra.mxu0 %v1326
    %1386 = vmatprep.subr.mxu0 %v1324
    %1387 = vmatpush1.msra.mxu0 %v1323
    %1388 = vmatprep.subr.mxu0 %v1321
    %1389 = vmatpush1.msra.mxu0 %v1320
    %1390 = vmatprep.subr.mxu0 %v1318
    %1391 = vmatpush1.msra.mxu0 %v1317
    %1392 = vmatprep.subr.mxu0 %v1315
    %1393 = vmatpush1.msra.mxu0 %v1314
    %1394 = vmatprep.subr.mxu0 %v1312
    %1395 = vmatpush1.msra.mxu0 %v1311
    %1396 = vmatprep.subr.mxu0 %v1309
    %1397 = vmatpush1.msra.mxu0 %v1308
    %1398 = vmatprep.subr.mxu0 %v1306
    %1399 = vmatpush1.msra.mxu0 %v1305
    %1400 = vmatprep.subr.mxu0 %v1303
    %1401 = vmatpush1.msra.mxu0 %v1302
    %1402 = vmatprep.subr.mxu0 0.0
    %1403 = vmatpush2.msra.mxu0 0.0
    %1404 = vmatprep.subr.mxu0 0.0
    %1405 = vmatpush2.msra.mxu0 0.0
    %1406 = vmatprep.subr.mxu0 0.0
    %1407 = vmatpush2.msra.mxu0 0.0
    %1408 = vmatprep.subr.mxu0 0.0
    %1409 = vmatpush2.msra.mxu0 0.0
    %1410 = vmatprep.subr.mxu0 0.0
    %1411 = vmatpush2.msra.mxu0 0.0
    %1412 = vmatprep.subr.mxu0 0.0
    %1413 = vmatpush2.msra.mxu0 0.0
    %1414 = vmatprep.subr.mxu0 0.0
    %1415 = vmatpush2.msra.mxu0 0.0
    %1416 = vmatprep.subr.mxu0 0.0
    %1417 = vmatpush2.msra.mxu0 0.0
    %1418 = vmatprep.subr.mxu0 0.0
    %1419 = vmatpush2.msra.mxu0 0.0
    %1420 = vmatprep.subr.mxu0 0.0
    %1421 = vmatpush2.msra.mxu0 0.0
    %1422 = vmatprep.subr.mxu0 0.0
    %1423 = vmatpush2.msra.mxu0 0.0
    %1424 = vmatprep.subr.mxu0 0.0
    %1425 = vmatpush2.msra.mxu0 0.0
    %1426 = vmatprep.subr.mxu0 0.0
    %1427 = vmatpush2.msra.mxu0 0.0
    %1428 = vmatprep.subr.mxu0 0.0
    %1429 = vmatpush2.msra.mxu0 0.0
    %1430 = vmatprep.subr.mxu0 0.0
    %1431 = vmatpush2.msra.mxu0 0.0
    %1432 = vmatprep.subr.mxu0 0.0
    %1433 = vmatpush2.msra.mxu0 0.0
    %1434 = vmatprep.mubr.f32.mxu0 0.0
    %1435 = vmatmul.mubr.f32.gmra.mxu0 0.0
    %v1436 = vpop.f32.mrf.mxu0
    %v1437 = vadd.f32 %v1358, %v1436
    %v1438 = vpop.f32.mrf.mxu0
    %v1439 = vadd.f32 %v1362, %v1438
    %1440 = vdwg.mxu0
    %1441 = vmatprep.subr.mxu0 0.0
    %1442 = vmatpush1.msra.mxu0 %v1349
    %1443 = vmatprep.subr.mxu0 0.0
    %1444 = vmatpush1.msra.mxu0 %v1346
    %1445 = vmatprep.subr.mxu0 0.0
    %1446 = vmatpush1.msra.mxu0 %v1343
    %1447 = vmatprep.subr.mxu0 0.0
    %1448 = vmatpush1.msra.mxu0 %v1340
    %1449 = vmatprep.subr.mxu0 0.0
    %1450 = vmatpush1.msra.mxu0 %v1337
    %1451 = vmatprep.subr.mxu0 0.0
    %1452 = vmatpush1.msra.mxu0 %v1334
    %1453 = vmatprep.subr.mxu0 0.0
    %1454 = vmatpush1.msra.mxu0 %v1331
    %1455 = vmatprep.subr.mxu0 0.0
    %1456 = vmatpush1.msra.mxu0 %v1328
    %1457 = vmatprep.subr.mxu0 0.0
    %1458 = vmatpush1.msra.mxu0 %v1325
    %1459 = vmatprep.subr.mxu0 0.0
    %1460 = vmatpush1.msra.mxu0 %v1322
    %1461 = vmatprep.subr.mxu0 0.0
    %1462 = vmatpush1.msra.mxu0 %v1319
    %1463 = vmatprep.subr.mxu0 0.0
    %1464 = vmatpush1.msra.mxu0 %v1316
    %1465 = vmatprep.subr.mxu0 0.0
    %1466 = vmatpush1.msra.mxu0 %v1313
    %1467 = vmatprep.subr.mxu0 0.0
    %1468 = vmatpush1.msra.mxu0 %v1310
    %1469 = vmatprep.subr.mxu0 0.0
    %1470 = vmatpush1.msra.mxu0 %v1307
    %1471 = vmatprep.subr.mxu0 0.0
    %1472 = vmatpush1.msra.mxu0 %v1304
    %1473 = vmatprep.subr.mxu0 0.0
    %1474 = vmatpush2.msra.mxu0 0.0
    %1475 = vmatprep.subr.mxu0 0.0
    %1476 = vmatpush2.msra.mxu0 0.0
    %1477 = vmatprep.subr.mxu0 0.0
    %1478 = vmatpush2.msra.mxu0 0.0
    %1479 = vmatprep.subr.mxu0 0.0
    %1480 = vmatpush2.msra.mxu0 0.0
    %1481 = vmatprep.subr.mxu0 0.0
    %1482 = vmatpush2.msra.mxu0 0.0
    %1483 = vmatprep.subr.mxu0 0.0
    %1484 = vmatpush2.msra.mxu0 0.0
    %1485 = vmatprep.subr.mxu0 0.0
    %1486 = vmatpush2.msra.mxu0 0.0
    %1487 = vmatprep.subr.mxu0 0.0
    %1488 = vmatpush2.msra.mxu0 0.0
    %1489 = vmatprep.subr.mxu0 0.0
    %1490 = vmatpush2.msra.mxu0 0.0
    %1491 = vmatprep.subr.mxu0 0.0
    %1492 = vmatpush2.msra.mxu0 0.0
    %1493 = vmatprep.subr.mxu0 0.0
    %1494 = vmatpush2.msra.mxu0 0.0
    %1495 = vmatprep.subr.mxu0 0.0
    %1496 = vmatpush2.msra.mxu0 0.0
    %1497 = vmatprep.subr.mxu0 0.0
    %1498 = vmatpush2.msra.mxu0 0.0
    %1499 = vmatprep.subr.mxu0 0.0
    %1500 = vmatpush2.msra.mxu0 0.0
    %1501 = vmatprep.subr.mxu0 0.0
    %1502 = vmatpush2.msra.mxu0 0.0
    %1503 = vmatprep.subr.mxu0 0.0
    %1504 = vmatpush2.msra.mxu0 0.0
    %1505 = vmatprep.mubr.f32.mxu0 0.0
    %1506 = vmatmul.mubr.f32.gmra.mxu0 0.0
    %v1507 = vpop.f32.mrf.mxu0
    %v1508 = vadd.f32 %v1366, %v1507
    %v1509 = vpop.f32.mrf.mxu0
    %1510 = vdwg.mxu0
    %v1511 = vadd.f32 %v1351, %v1437
    %v1512 = vxor.u32 %v1511, 2147483648
    %v1513 = vmul.f32 %v1512, 1.442695
    %v1514 = vpow.pop %v1513
    %v1515 = vadd.f32 %v1514, 1.0
    %v1516 = vrcp.pop %v1515
    %v1517 = vmul.f32 1.0, %v1516
    %v1518 = vadd.f32 %v1352, %v1439
    %v1519 = vxor.u32 %v1518, 2147483648
    %v1520 = vmul.f32 %v1519, 1.442695
    %v1521 = vpow.pop %v1520
    %v1522 = vadd.f32 %v1521, 1.0
    %v1523 = vrcp.pop %v1522
    %v1524 = vmul.f32 1.0, %v1523
    %v1525 = vmul.f32 %v1517, %v1508
    %v1526 = vadd.f32 %v1353, %v1525
    %v1527 = vtanh.pop %v1526
    %v1528 = vsub.f32 1.0, %v1524
    %v1529 = vmul.f32 %v1528, %v1527
    %v1530 = vmul.f32 %v1524, 0.0
    %v1531 = vadd.f32 %v1529, %v1530
    %v1532 = vld [vmem:[%s404] sm:$0xff]
    %v1533 = vld [vmem:[%s404 + $0x8] sm:$0xff]
    %v1534 = vld [vmem:[%s404 + $0x10] sm:$0xff]
    %1535 = vmatprep.subr.mxu0 %v1348
    %1536 = vmatpush1.msra.mxu0 %v1347
    %1537 = vmatprep.subr.mxu0 %v1345
    %1538 = vmatpush1.msra.mxu0 %v1344
    %1539 = vmatprep.subr.mxu0 %v1342
    %1540 = vmatpush1.msra.mxu0 %v1341
    %1541 = vmatprep.subr.mxu0 %v1339
    %1542 = vmatpush1.msra.mxu0 %v1338
    %1543 = vmatprep.subr.mxu0 %v1336
    %1544 = vmatpush1.msra.mxu0 %v1335
    %1545 = vmatprep.subr.mxu0 %v1333
    %1546 = vmatpush1.msra.mxu0 %v1332
    %1547 = vmatprep.subr.mxu0 %v1330
    %1548 = vmatpush1.msra.mxu0 %v1329
    %1549 = vmatprep.subr.mxu0 %v1327
    %1550 = vmatpush1.msra.mxu0 %v1326
    %1551 = vmatprep.subr.mxu0 %v1324
    %1552 = vmatpush1.msra.mxu0 %v1323
    %1553 = vmatprep.subr.mxu0 %v1321
    %1554 = vmatpush1.msra.mxu0 %v1320
    %1555 = vmatprep.subr.mxu0 %v1318
    %1556 = vmatpush1.msra.mxu0 %v1317
    %1557 = vmatprep.subr.mxu0 %v1315
    %1558 = vmatpush1.msra.mxu0 %v1314
    %1559 = vmatprep.subr.mxu0 %v1312
    %1560 = vmatpush1.msra.mxu0 %v1311
    %1561 = vmatprep.subr.mxu0 %v1309
    %1562 = vmatpush1.msra.mxu0 %v1308
    %1563 = vmatprep.subr.mxu0 %v1306
    %1564 = vmatpush1.msra.mxu0 %v1305
    %1565 = vmatprep.subr.mxu0 %v1303
    %1566 = vmatpush1.msra.mxu0 %v1302
    %1567 = vmatprep.subr.mxu0 0.0
    %1568 = vmatpush2.msra.mxu0 0.0
    %1569 = vmatprep.subr.mxu0 0.0
    %1570 = vmatpush2.msra.mxu0 0.0
    %1571 = vmatprep.subr.mxu0 0.0
    %1572 = vmatpush2.msra.mxu0 0.0
    %1573 = vmatprep.subr.mxu0 0.0
    %1574 = vmatpush2.msra.mxu0 0.0
    %1575 = vmatprep.subr.mxu0 0.0
    %1576 = vmatpush2.msra.mxu0 0.0
    %1577 = vmatprep.subr.mxu0 0.0
    %1578 = vmatpush2.msra.mxu0 0.0
    %1579 = vmatprep.subr.mxu0 0.0
    %1580 = vmatpush2.msra.mxu0 0.0
    %1581 = vmatprep.subr.mxu0 0.0
    %1582 = vmatpush2.msra.mxu0 0.0
    %1583 = vmatprep.subr.mxu0 0.0
    %1584 = vmatpush2.msra.mxu0 0.0
    %1585 = vmatprep.subr.mxu0 0.0
    %1586 = vmatpush2.msra.mxu0 0.0
    %1587 = vmatprep.subr.mxu0 0.0
    %1588 = vmatpush2.msra.mxu0 0.0
    %1589 = vmatprep.subr.mxu0 0.0
    %1590 = vmatpush2.msra.mxu0 0.0
    %1591 = vmatprep.subr.mxu0 0.0
    %1592 = vmatpush2.msra.mxu0 0.0
    %1593 = vmatprep.subr.mxu0 0.0
    %1594 = vmatpush2.msra.mxu0 0.0
    %1595 = vmatprep.subr.mxu0 0.0
    %1596 = vmatpush2.msra.mxu0 0.0
    %1597 = vmatprep.subr.mxu0 0.0
    %1598 = vmatpush2.msra.mxu0 0.0
    %1599 = vmatprep.mubr.f32.mxu0 0.0
    %1600 = vmatmul.mubr.f32.gmra.mxu0 %v1531
    %v1601 = vpop.f32.mrf.mxu0
    %v1602 = vadd.f32 %v1358, %v1601
    %v1603 = vpop.f32.mrf.mxu0
    %v1604 = vadd.f32 %v1362, %v1603
    %1605 = vdwg.mxu0
    %1606 = vmatprep.subr.mxu0 0.0
    %1607 = vmatpush1.msra.mxu0 %v1349
    %1608 = vmatprep.subr.mxu0 0.0
    %1609 = vmatpush1.msra.mxu0 %v1346
    %1610 = vmatprep.subr.mxu0 0.0
    %1611 = vmatpush1.msra.mxu0 %v1343
    %1612 = vmatprep.subr.mxu0 0.0
    %1613 = vmatpush1.msra.mxu0 %v1340
    %1614 = vmatprep.subr.mxu0 0.0
    %1615 = vmatpush1.msra.mxu0 %v1337
    %1616 = vmatprep.subr.mxu0 0.0
    %1617 = vmatpush1.msra.mxu0 %v1334
    %1618 = vmatprep.subr.mxu0 0.0
    %1619 = vmatpush1.msra.mxu0 %v1331
    %1620 = vmatprep.subr.mxu0 0.0
    %1621 = vmatpush1.msra.mxu0 %v1328
    %1622 = vmatprep.subr.mxu0 0.0
    %1623 = vmatpush1.msra.mxu0 %v1325
    %1624 = vmatprep.subr.mxu0 0.0
    %1625 = vmatpush1.msra.mxu0 %v1322
    %1626 = vmatprep.subr.mxu0 0.0
    %1627 = vmatpush1.msra.mxu0 %v1319
    %1628 = vmatprep.subr.mxu0 0.0
    %1629 = vmatpush1.msra.mxu0 %v1316
    %1630 = vmatprep.subr.mxu0 0.0
    %1631 = vmatpush1.msra.mxu0 %v1313
    %1632 = vmatprep.subr.mxu0 0.0
    %1633 = vmatpush1.msra.mxu0 %v1310
    %1634 = vmatprep.subr.mxu0 0.0
    %1635 = vmatpush1.msra.mxu0 %v1307
    %1636 = vmatprep.subr.mxu0 0.0
    %1637 = vmatpush1.msra.mxu0 %v1304
    %1638 = vmatprep.subr.mxu0 0.0
    %1639 = vmatpush2.msra.mxu0 0.0
    %1640 = vmatprep.subr.mxu0 0.0
    %1641 = vmatpush2.msra.mxu0 0.0
    %1642 = vmatprep.subr.mxu0 0.0
    %1643 = vmatpush2.msra.mxu0 0.0
    %1644 = vmatprep.subr.mxu0 0.0
    %1645 = vmatpush2.msra.mxu0 0.0
    %1646 = vmatprep.subr.mxu0 0.0
    %1647 = vmatpush2.msra.mxu0 0.0
    %1648 = vmatprep.subr.mxu0 0.0
    %1649 = vmatpush2.msra.mxu0 0.0
    %1650 = vmatprep.subr.mxu0 0.0
    %1651 = vmatpush2.msra.mxu0 0.0
    %1652 = vmatprep.subr.mxu0 0.0
    %1653 = vmatpush2.msra.mxu0 0.0
    %1654 = vmatprep.subr.mxu0 0.0
    %1655 = vmatpush2.msra.mxu0 0.0
    %1656 = vmatprep.subr.mxu0 0.0
    %1657 = vmatpush2.msra.mxu0 0.0
    %1658 = vmatprep.subr.mxu0 0.0
    %1659 = vmatpush2.msra.mxu0 0.0
    %1660 = vmatprep.subr.mxu0 0.0
    %1661 = vmatpush2.msra.mxu0 0.0
    %1662 = vmatprep.subr.mxu0 0.0
    %1663 = vmatpush2.msra.mxu0 0.0
    %1664 = vmatprep.subr.mxu0 0.0
    %1665 = vmatpush2.msra.mxu0 0.0
    %1666 = vmatprep.subr.mxu0 0.0
    %1667 = vmatpush2.msra.mxu0 0.0
    %1668 = vmatprep.subr.mxu0 0.0
    %1669 = vmatpush2.msra.mxu0 0.0
    %1670 = vmatprep.mubr.f32.mxu0 0.0
    %1671 = vmatmul.mubr.f32.gmra.mxu0 %v1531
    %v1672 = vpop.f32.mrf.mxu0
    %v1673 = vadd.f32 %v1366, %v1672
    %v1674 = vpop.f32.mrf.mxu0
    %1675 = vdwg.mxu0
    %v1676 = vadd.f32 %v1532, %v1602
    %v1677 = vxor.u32 %v1676, 2147483648
    %v1678 = vmul.f32 %v1677, 1.442695
    %v1679 = vpow.pop %v1678
    %v1680 = vadd.f32 %v1679, 1.0
    %v1681 = vrcp.pop %v1680
    %v1682 = vmul.f32 1.0, %v1681
    %v1683 = vadd.f32 %v1533, %v1604
    %v1684 = vxor.u32 %v1683, 2147483648
    %v1685 = vmul.f32 %v1684, 1.442695
    %v1686 = vpow.pop %v1685
    %v1687 = vadd.f32 %v1686, 1.0
    %v1688 = vrcp.pop %v1687
    %v1689 = vmul.f32 1.0, %v1688
    %v1690 = vmul.f32 %v1682, %v1673
    %v1691 = vadd.f32 %v1534, %v1690
    %v1692 = vtanh.pop %v1691
    %v1693 = vsub.f32 1.0, %v1689
    %v1694 = vmul.f32 %v1693, %v1692
    %v1695 = vmul.f32 %v1689, %v1531
    %v1696 = vadd.f32 %v1694, %v1695
    %v1697 = vld [vmem:[%s553] sm:$0xff]
    %v1698 = vld [vmem:[%s553 + $0x8] sm:$0xff]
    %v1699 = vld [vmem:[%s553 + $0x10] sm:$0xff]
    %1700 = vmatprep.subr.mxu0 %v1348
    %1701 = vmatpush1.msra.mxu0 %v1347
    %1702 = vmatprep.subr.mxu0 %v1345
    %1703 = vmatpush1.msra.mxu0 %v1344
    %1704 = vmatprep.subr.mxu0 %v1342
    %1705 = vmatpush1.msra.mxu0 %v1341
    %1706 = vmatprep.subr.mxu0 %v1339
    %1707 = vmatpush1.msra.mxu0 %v1338
    %1708 = vmatprep.subr.mxu0 %v1336
    %1709 = vmatpush1.msra.mxu0 %v1335
    %1710 = vmatprep.subr.mxu0 %v1333
    %1711 = vmatpush1.msra.mxu0 %v1332
    %1712 = vmatprep.subr.mxu0 %v1330
    %1713 = vmatpush1.msra.mxu0 %v1329
    %1714 = vmatprep.subr.mxu0 %v1327
    %1715 = vmatpush1.msra.mxu0 %v1326
    %1716 = vmatprep.subr.mxu0 %v1324
    %1717 = vmatpush1.msra.mxu0 %v1323
    %1718 = vmatprep.subr.mxu0 %v1321
    %1719 = vmatpush1.msra.mxu0 %v1320
    %1720 = vmatprep.subr.mxu0 %v1318
    %1721 = vmatpush1.msra.mxu0 %v1317
    %1722 = vmatprep.subr.mxu0 %v1315
    %1723 = vmatpush1.msra.mxu0 %v1314
    %1724 = vmatprep.subr.mxu0 %v1312
    %1725 = vmatpush1.msra.mxu0 %v1311
    %1726 = vmatprep.subr.mxu0 %v1309
    %1727 = vmatpush1.msra.mxu0 %v1308
    %1728 = vmatprep.subr.mxu0 %v1306
    %1729 = vmatpush1.msra.mxu0 %v1305
    %1730 = vmatprep.subr.mxu0 %v1303
    %1731 = vmatpush1.msra.mxu0 %v1302
    %1732 = vmatprep.subr.mxu0 0.0
    %1733 = vmatpush2.msra.mxu0 0.0
    %1734 = vmatprep.subr.mxu0 0.0
    %1735 = vmatpush2.msra.mxu0 0.0
    %1736 = vmatprep.subr.mxu0 0.0
    %1737 = vmatpush2.msra.mxu0 0.0
    %1738 = vmatprep.subr.mxu0 0.0
    %1739 = vmatpush2.msra.mxu0 0.0
    %1740 = vmatprep.subr.mxu0 0.0
    %1741 = vmatpush2.msra.mxu0 0.0
    %1742 = vmatprep.subr.mxu0 0.0
    %1743 = vmatpush2.msra.mxu0 0.0
    %1744 = vmatprep.subr.mxu0 0.0
    %1745 = vmatpush2.msra.mxu0 0.0
    %1746 = vmatprep.subr.mxu0 0.0
    %1747 = vmatpush2.msra.mxu0 0.0
    %1748 = vmatprep.subr.mxu0 0.0
    %1749 = vmatpush2.msra.mxu0 0.0
    %1750 = vmatprep.subr.mxu0 0.0
    %1751 = vmatpush2.msra.mxu0 0.0
    %1752 = vmatprep.subr.mxu0 0.0
    %1753 = vmatpush2.msra.mxu0 0.0
    %1754 = vmatprep.subr.mxu0 0.0
    %1755 = vmatpush2.msra.mxu0 0.0
    %1756 = vmatprep.subr.mxu0 0.0
    %1757 = vmatpush2.msra.mxu0 0.0
    %1758 = vmatprep.subr.mxu0 0.0
    %1759 = vmatpush2.msra.mxu0 0.0
    %1760 = vmatprep.subr.mxu0 0.0
    %1761 = vmatpush2.msra.mxu0 0.0
    %1762 = vmatprep.subr.mxu0 0.0
    %1763 = vmatpush2.msra.mxu0 0.0
    %1764 = vmatprep.mubr.f32.mxu0 0.0
    %1765 = vmatmul.mubr.f32.gmra.mxu0 %v1696
    %v1766 = vpop.f32.mrf.mxu0
    %v1767 = vadd.f32 %v1358, %v1766
    %v1768 = vpop.f32.mrf.mxu0
    %v1769 = vadd.f32 %v1362, %v1768
    %1770 = vdwg.mxu0
    %1771 = vmatprep.subr.mxu0 0.0
    %1772 = vmatpush1.msra.mxu0 %v1349
    %1773 = vmatprep.subr.mxu0 0.0
    %1774 = vmatpush1.msra.mxu0 %v1346
    %1775 = vmatprep.subr.mxu0 0.0
    %1776 = vmatpush1.msra.mxu0 %v1343
    %1777 = vmatprep.subr.mxu0 0.0
    %1778 = vmatpush1.msra.mxu0 %v1340
    %1779 = vmatprep.subr.mxu0 0.0
    %1780 = vmatpush1.msra.mxu0 %v1337
    %1781 = vmatprep.subr.mxu0 0.0
    %1782 = vmatpush1.msra.mxu0 %v1334
    %1783 = vmatprep.subr.mxu0 0.0
    %1784 = vmatpush1.msra.mxu0 %v1331
    %1785 = vmatprep.subr.mxu0 0.0
    %1786 = vmatpush1.msra.mxu0 %v1328
    %1787 = vmatprep.subr.mxu0 0.0
    %1788 = vmatpush1.msra.mxu0 %v1325
    %1789 = vmatprep.subr.mxu0 0.0
    %1790 = vmatpush1.msra.mxu0 %v1322
    %1791 = vmatprep.subr.mxu0 0.0
    %1792 = vmatpush1.msra.mxu0 %v1319
    %1793 = vmatprep.subr.mxu0 0.0
    %1794 = vmatpush1.msra.mxu0 %v1316
    %1795 = vmatprep.subr.mxu0 0.0
    %1796 = vmatpush1.msra.mxu0 %v1313
    %1797 = vmatprep.subr.mxu0 0.0
    %1798 = vmatpush1.msra.mxu0 %v1310
    %1799 = vmatprep.subr.mxu0 0.0
    %1800 = vmatpush1.msra.mxu0 %v1307
    %1801 = vmatprep.subr.mxu0 0.0
    %1802 = vmatpush1.msra.mxu0 %v1304
    %1803 = vmatprep.subr.mxu0 0.0
    %1804 = vmatpush2.msra.mxu0 0.0
    %1805 = vmatprep.subr.mxu0 0.0
    %1806 = vmatpush2.msra.mxu0 0.0
    %1807 = vmatprep.subr.mxu0 0.0
    %1808 = vmatpush2.msra.mxu0 0.0
    %1809 = vmatprep.subr.mxu0 0.0
    %1810 = vmatpush2.msra.mxu0 0.0
    %1811 = vmatprep.subr.mxu0 0.0
    %1812 = vmatpush2.msra.mxu0 0.0
    %1813 = vmatprep.subr.mxu0 0.0
    %1814 = vmatpush2.msra.mxu0 0.0
    %1815 = vmatprep.subr.mxu0 0.0
    %1816 = vmatpush2.msra.mxu0 0.0
    %1817 = vmatprep.subr.mxu0 0.0
    %1818 = vmatpush2.msra.mxu0 0.0
    %1819 = vmatprep.subr.mxu0 0.0
    %1820 = vmatpush2.msra.mxu0 0.0
    %1821 = vmatprep.subr.mxu0 0.0
    %1822 = vmatpush2.msra.mxu0 0.0
    %1823 = vmatprep.subr.mxu0 0.0
    %1824 = vmatpush2.msra.mxu0 0.0
    %1825 = vmatprep.subr.mxu0 0.0
    %1826 = vmatpush2.msra.mxu0 0.0
    %1827 = vmatprep.subr.mxu0 0.0
    %1828 = vmatpush2.msra.mxu0 0.0
    %1829 = vmatprep.subr.mxu0 0.0
    %1830 = vmatpush2.msra.mxu0 0.0
    %1831 = vmatprep.subr.mxu0 0.0
    %1832 = vmatpush2.msra.mxu0 0.0
    %1833 = vmatprep.subr.mxu0 0.0
    %1834 = vmatpush2.msra.mxu0 0.0
    %1835 = vmatprep.mubr.f32.mxu0 0.0
    %1836 = vmatmul.mubr.f32.gmra.mxu0 %v1696
    %v1837 = vpop.f32.mrf.mxu0
    %v1838 = vadd.f32 %v1366, %v1837
    %v1839 = vpop.f32.mrf.mxu0
    %1840 = vdwg.mxu0
    %v1841 = vadd.f32 %v1697, %v1767
    %v1842 = vxor.u32 %v1841, 2147483648
    %v1843 = vmul.f32 %v1842, 1.442695
    %v1844 = vpow.pop %v1843
    %v1845 = vadd.f32 %v1844, 1.0
    %v1846 = vrcp.pop %v1845
    %v1847 = vmul.f32 1.0, %v1846
    %v1848 = vadd.f32 %v1698, %v1769
    %v1849 = vxor.u32 %v1848, 2147483648
    %v1850 = vmul.f32 %v1849, 1.442695
    %v1851 = vpow.pop %v1850
    %v1852 = vadd.f32 %v1851, 1.0
    %v1853 = vrcp.pop %v1852
    %v1854 = vmul.f32 1.0, %v1853
    %v1855 = vmul.f32 %v1847, %v1838
    %v1856 = vadd.f32 %v1699, %v1855
    %v1857 = vtanh.pop %v1856
    %v1858 = vsub.f32 1.0, %v1854
    %v1859 = vmul.f32 %v1858, %v1857
    %v1860 = vmul.f32 %v1854, %v1696
    %v1861 = vadd.f32 %v1859, %v1860
    %v1862 = vld [vmem:[%s702] sm:$0xff]
    %v1863 = vld [vmem:[%s702 + $0x8] sm:$0xff]
    %v1864 = vld [vmem:[%s702 + $0x10] sm:$0xff]
    %1865 = vmatprep.subr.mxu0 %v1348
    %1866 = vmatpush1.msra.mxu0 %v1347
    %1867 = vmatprep.subr.mxu0 %v1345
    %1868 = vmatpush1.msra.mxu0 %v1344
    %1869 = vmatprep.subr.mxu0 %v1342
    %1870 = vmatpush1.msra.mxu0 %v1341
    %1871 = vmatprep.subr.mxu0 %v1339
    %1872 = vmatpush1.msra.mxu0 %v1338
    %1873 = vmatprep.subr.mxu0 %v1336
    %1874 = vmatpush1.msra.mxu0 %v1335
    %1875 = vmatprep.subr.mxu0 %v1333
    %1876 = vmatpush1.msra.mxu0 %v1332
    %1877 = vmatprep.subr.mxu0 %v1330
    %1878 = vmatpush1.msra.mxu0 %v1329
    %1879 = vmatprep.subr.mxu0 %v1327
    %1880 = vmatpush1.msra.mxu0 %v1326
    %1881 = vmatprep.subr.mxu0 %v1324
    %1882 = vmatpush1.msra.mxu0 %v1323
    %1883 = vmatprep.subr.mxu0 %v1321
    %1884 = vmatpush1.msra.mxu0 %v1320
    %1885 = vmatprep.subr.mxu0 %v1318
    %1886 = vmatpush1.msra.mxu0 %v1317
    %1887 = vmatprep.subr.mxu0 %v1315
    %1888 = vmatpush1.msra.mxu0 %v1314
    %1889 = vmatprep.subr.mxu0 %v1312
    %1890 = vmatpush1.msra.mxu0 %v1311
    %1891 = vmatprep.subr.mxu0 %v1309
    %1892 = vmatpush1.msra.mxu0 %v1308
    %1893 = vmatprep.subr.mxu0 %v1306
    %1894 = vmatpush1.msra.mxu0 %v1305
    %1895 = vmatprep.subr.mxu0 %v1303
    %1896 = vmatpush1.msra.mxu0 %v1302
    %1897 = vmatprep.subr.mxu0 0.0
    %1898 = vmatpush2.msra.mxu0 0.0
    %1899 = vmatprep.subr.mxu0 0.0
    %1900 = vmatpush2.msra.mxu0 0.0
    %1901 = vmatprep.subr.mxu0 0.0
    %1902 = vmatpush2.msra.mxu0 0.0
    %1903 = vmatprep.subr.mxu0 0.0
    %1904 = vmatpush2.msra.mxu0 0.0
    %1905 = vmatprep.subr.mxu0 0.0
    %1906 = vmatpush2.msra.mxu0 0.0
    %1907 = vmatprep.subr.mxu0 0.0
    %1908 = vmatpush2.msra.mxu0 0.0
    %1909 = vmatprep.subr.mxu0 0.0
    %1910 = vmatpush2.msra.mxu0 0.0
    %1911 = vmatprep.subr.mxu0 0.0
    %1912 = vmatpush2.msra.mxu0 0.0
    %1913 = vmatprep.subr.mxu0 0.0
    %1914 = vmatpush2.msra.mxu0 0.0
    %1915 = vmatprep.subr.mxu0 0.0
    %1916 = vmatpush2.msra.mxu0 0.0
    %1917 = vmatprep.subr.mxu0 0.0
    %1918 = vmatpush2.msra.mxu0 0.0
    %1919 = vmatprep.subr.mxu0 0.0
    %1920 = vmatpush2.msra.mxu0 0.0
    %1921 = vmatprep.subr.mxu0 0.0
    %1922 = vmatpush2.msra.mxu0 0.0
    %1923 = vmatprep.subr.mxu0 0.0
    %1924 = vmatpush2.msra.mxu0 0.0
    %1925 = vmatprep.subr.mxu0 0.0
    %1926 = vmatpush2.msra.mxu0 0.0
    %1927 = vmatprep.subr.mxu0 0.0
    %1928 = vmatpush2.msra.mxu0 0.0
    %1929 = vmatprep.mubr.f32.mxu0 0.0
    %1930 = vmatmul.mubr.f32.gmra.mxu0 %v1861
    %v1931 = vpop.f32.mrf.mxu0
    %v1932 = vadd.f32 %v1358, %v1931
    %v1933 = vpop.f32.mrf.mxu0
    %v1934 = vadd.f32 %v1362, %v1933
    %1935 = vdwg.mxu0
    %1936 = vmatprep.subr.mxu0 0.0
    %1937 = vmatpush1.msra.mxu0 %v1349
    %1938 = vmatprep.subr.mxu0 0.0
    %1939 = vmatpush1.msra.mxu0 %v1346
    %1940 = vmatprep.subr.mxu0 0.0
    %1941 = vmatpush1.msra.mxu0 %v1343
    %1942 = vmatprep.subr.mxu0 0.0
    %1943 = vmatpush1.msra.mxu0 %v1340
    %1944 = vmatprep.subr.mxu0 0.0
    %1945 = vmatpush1.msra.mxu0 %v1337
    %1946 = vmatprep.subr.mxu0 0.0
    %1947 = vmatpush1.msra.mxu0 %v1334
    %1948 = vmatprep.subr.mxu0 0.0
    %1949 = vmatpush1.msra.mxu0 %v1331
    %1950 = vmatprep.subr.mxu0 0.0
    %1951 = vmatpush1.msra.mxu0 %v1328
    %1952 = vmatprep.subr.mxu0 0.0
    %1953 = vmatpush1.msra.mxu0 %v1325
    %1954 = vmatprep.subr.mxu0 0.0
    %1955 = vmatpush1.msra.mxu0 %v1322
    %1956 = vmatprep.subr.mxu0 0.0
    %1957 = vmatpush1.msra.mxu0 %v1319
    %1958 = vmatprep.subr.mxu0 0.0
    %1959 = vmatpush1.msra.mxu0 %v1316
    %1960 = vmatprep.subr.mxu0 0.0
    %1961 = vmatpush1.msra.mxu0 %v1313
    %1962 = vmatprep.subr.mxu0 0.0
    %1963 = vmatpush1.msra.mxu0 %v1310
    %1964 = vmatprep.subr.mxu0 0.0
    %1965 = vmatpush1.msra.mxu0 %v1307
    %1966 = vmatprep.subr.mxu0 0.0
    %1967 = vmatpush1.msra.mxu0 %v1304
    %1968 = vmatprep.subr.mxu0 0.0
    %1969 = vmatpush2.msra.mxu0 0.0
    %1970 = vmatprep.subr.mxu0 0.0
    %1971 = vmatpush2.msra.mxu0 0.0
    %1972 = vmatprep.subr.mxu0 0.0
    %1973 = vmatpush2.msra.mxu0 0.0
    %1974 = vmatprep.subr.mxu0 0.0
    %1975 = vmatpush2.msra.mxu0 0.0
    %1976 = vmatprep.subr.mxu0 0.0
    %1977 = vmatpush2.msra.mxu0 0.0
    %1978 = vmatprep.subr.mxu0 0.0
    %1979 = vmatpush2.msra.mxu0 0.0
    %1980 = vmatprep.subr.mxu0 0.0
    %1981 = vmatpush2.msra.mxu0 0.0
    %1982 = vmatprep.subr.mxu0 0.0
    %1983 = vmatpush2.msra.mxu0 0.0
    %1984 = vmatprep.subr.mxu0 0.0
    %1985 = vmatpush2.msra.mxu0 0.0
    %1986 = vmatprep.subr.mxu0 0.0
    %1987 = vmatpush2.msra.mxu0 0.0
    %1988 = vmatprep.subr.mxu0 0.0
    %1989 = vmatpush2.msra.mxu0 0.0
    %1990 = vmatprep.subr.mxu0 0.0
    %1991 = vmatpush2.msra.mxu0 0.0
    %1992 = vmatprep.subr.mxu0 0.0
    %1993 = vmatpush2.msra.mxu0 0.0
    %1994 = vmatprep.subr.mxu0 0.0
    %1995 = vmatpush2.msra.mxu0 0.0
    %1996 = vmatprep.subr.mxu0 0.0
    %1997 = vmatpush2.msra.mxu0 0.0
    %1998 = vmatprep.subr.mxu0 0.0
    %1999 = vmatpush2.msra.mxu0 0.0
    %2000 = vmatprep.mubr.f32.mxu0 0.0
    %2001 = vmatmul.mubr.f32.gmra.mxu0 %v1861
    %v2002 = vpop.f32.mrf.mxu0
    %v2003 = vadd.f32 %v1366, %v2002
    %v2004 = vpop.f32.mrf.mxu0
    %2005 = vdwg.mxu0
    %v2006 = vadd.f32 %v1862, %v1932
    %v2007 = vxor.u32 %v2006, 2147483648
    %v2008 = vmul.f32 %v2007, 1.442695
    %v2009 = vpow.pop %v2008
    %v2010 = vadd.f32 %v2009, 1.0
    %v2011 = vrcp.pop %v2010
    %v2012 = vmul.f32 1.0, %v2011
    %v2013 = vadd.f32 %v1863, %v1934
    %v2014 = vxor.u32 %v2013, 2147483648
    %v2015 = vmul.f32 %v2014, 1.442695
    %v2016 = vpow.pop %v2015
    %v2017 = vadd.f32 %v2016, 1.0
    %v2018 = vrcp.pop %v2017
    %v2019 = vmul.f32 1.0, %v2018
    %v2020 = vmul.f32 %v2012, %v2003
    %v2021 = vadd.f32 %v1864, %v2020
    %v2022 = vtanh.pop %v2021
    %v2023 = vsub.f32 1.0, %v2019
    %v2024 = vmul.f32 %v2023, %v2022
    %v2025 = vmul.f32 %v2019, %v1861
    %v2026 = vadd.f32 %v2024, %v2025
    %v2027 = vld [vmem:[%s851] sm:$0xff]
    %v2028 = vld [vmem:[%s851 + $0x8] sm:$0xff]
    %v2029 = vld [vmem:[%s851 + $0x10] sm:$0xff]
    %2030 = vmatprep.subr.mxu0 %v1348
    %2031 = vmatpush1.msra.mxu0 %v1347
    %2032 = vmatprep.subr.mxu0 %v1345
    %2033 = vmatpush1.msra.mxu0 %v1344
    %2034 = vmatprep.subr.mxu0 %v1342
    %2035 = vmatpush1.msra.mxu0 %v1341
    %2036 = vmatprep.subr.mxu0 %v1339
    %2037 = vmatpush1.msra.mxu0 %v1338
    %2038 = vmatprep.subr.mxu0 %v1336
    %2039 = vmatpush1.msra.mxu0 %v1335
    %2040 = vmatprep.subr.mxu0 %v1333
    %2041 = vmatpush1.msra.mxu0 %v1332
    %2042 = vmatprep.subr.mxu0 %v1330
    %2043 = vmatpush1.msra.mxu0 %v1329
    %2044 = vmatprep.subr.mxu0 %v1327
    %2045 = vmatpush1.msra.mxu0 %v1326
    %2046 = vmatprep.subr.mxu0 %v1324
    %2047 = vmatpush1.msra.mxu0 %v1323
    %2048 = vmatprep.subr.mxu0 %v1321
    %2049 = vmatpush1.msra.mxu0 %v1320
    %2050 = vmatprep.subr.mxu0 %v1318
    %2051 = vmatpush1.msra.mxu0 %v1317
    %2052 = vmatprep.subr.mxu0 %v1315
    %2053 = vmatpush1.msra.mxu0 %v1314
    %2054 = vmatprep.subr.mxu0 %v1312
    %2055 = vmatpush1.msra.mxu0 %v1311
    %2056 = vmatprep.subr.mxu0 %v1309
    %2057 = vmatpush1.msra.mxu0 %v1308
    %2058 = vmatprep.subr.mxu0 %v1306
    %2059 = vmatpush1.msra.mxu0 %v1305
    %2060 = vmatprep.subr.mxu0 %v1303
    %2061 = vmatpush1.msra.mxu0 %v1302
    %2062 = vmatprep.subr.mxu0 0.0
    %2063 = vmatpush2.msra.mxu0 0.0
    %2064 = vmatprep.subr.mxu0 0.0
    %2065 = vmatpush2.msra.mxu0 0.0
    %2066 = vmatprep.subr.mxu0 0.0
    %2067 = vmatpush2.msra.mxu0 0.0
    %2068 = vmatprep.subr.mxu0 0.0
    %2069 = vmatpush2.msra.mxu0 0.0
    %2070 = vmatprep.subr.mxu0 0.0
    %2071 = vmatpush2.msra.mxu0 0.0
    %2072 = vmatprep.subr.mxu0 0.0
    %2073 = vmatpush2.msra.mxu0 0.0
    %2074 = vmatprep.subr.mxu0 0.0
    %2075 = vmatpush2.msra.mxu0 0.0
    %2076 = vmatprep.subr.mxu0 0.0
    %2077 = vmatpush2.msra.mxu0 0.0
    %2078 = vmatprep.subr.mxu0 0.0
    %2079 = vmatpush2.msra.mxu0 0.0
    %2080 = vmatprep.subr.mxu0 0.0
    %2081 = vmatpush2.msra.mxu0 0.0
    %2082 = vmatprep.subr.mxu0 0.0
    %2083 = vmatpush2.msra.mxu0 0.0
    %2084 = vmatprep.subr.mxu0 0.0
    %2085 = vmatpush2.msra.mxu0 0.0
    %2086 = vmatprep.subr.mxu0 0.0
    %2087 = vmatpush2.msra.mxu0 0.0
    %2088 = vmatprep.subr.mxu0 0.0
    %2089 = vmatpush2.msra.mxu0 0.0
    %2090 = vmatprep.subr.mxu0 0.0
    %2091 = vmatpush2.msra.mxu0 0.0
    %2092 = vmatprep.subr.mxu0 0.0
    %2093 = vmatpush2.msra.mxu0 0.0
    %2094 = vmatprep.mubr.f32.mxu0 0.0
    %2095 = vmatmul.mubr.f32.gmra.mxu0 %v2026
    %v2096 = vpop.f32.mrf.mxu0
    %v2097 = vadd.f32 %v1358, %v2096
    %v2098 = vpop.f32.mrf.mxu0
    %v2099 = vadd.f32 %v1362, %v2098
    %2100 = vdwg.mxu0
    %2101 = vmatprep.subr.mxu0 0.0
    %2102 = vmatpush1.msra.mxu0 %v1349
    %2103 = vmatprep.subr.mxu0 0.0
    %2104 = vmatpush1.msra.mxu0 %v1346
    %2105 = vmatprep.subr.mxu0 0.0
    %2106 = vmatpush1.msra.mxu0 %v1343
    %2107 = vmatprep.subr.mxu0 0.0
    %2108 = vmatpush1.msra.mxu0 %v1340
    %2109 = vmatprep.subr.mxu0 0.0
    %2110 = vmatpush1.msra.mxu0 %v1337
    %2111 = vmatprep.subr.mxu0 0.0
    %2112 = vmatpush1.msra.mxu0 %v1334
    %2113 = vmatprep.subr.mxu0 0.0
    %2114 = vmatpush1.msra.mxu0 %v1331
    %2115 = vmatprep.subr.mxu0 0.0
    %2116 = vmatpush1.msra.mxu0 %v1328
    %2117 = vmatprep.subr.mxu0 0.0
    %2118 = vmatpush1.msra.mxu0 %v1325
    %2119 = vmatprep.subr.mxu0 0.0
    %2120 = vmatpush1.msra.mxu0 %v1322
    %2121 = vmatprep.subr.mxu0 0.0
    %2122 = vmatpush1.msra.mxu0 %v1319
    %2123 = vmatprep.subr.mxu0 0.0
    %2124 = vmatpush1.msra.mxu0 %v1316
    %2125 = vmatprep.subr.mxu0 0.0
    %2126 = vmatpush1.msra.mxu0 %v1313
    %2127 = vmatprep.subr.mxu0 0.0
    %2128 = vmatpush1.msra.mxu0 %v1310
    %2129 = vmatprep.subr.mxu0 0.0
    %2130 = vmatpush1.msra.mxu0 %v1307
    %2131 = vmatprep.subr.mxu0 0.0
    %2132 = vmatpush1.msra.mxu0 %v1304
    %2133 = vmatprep.subr.mxu0 0.0
    %2134 = vmatpush2.msra.mxu0 0.0
    %2135 = vmatprep.subr.mxu0 0.0
    %2136 = vmatpush2.msra.mxu0 0.0
    %2137 = vmatprep.subr.mxu0 0.0
    %2138 = vmatpush2.msra.mxu0 0.0
    %2139 = vmatprep.subr.mxu0 0.0
    %2140 = vmatpush2.msra.mxu0 0.0
    %2141 = vmatprep.subr.mxu0 0.0
    %2142 = vmatpush2.msra.mxu0 0.0
    %2143 = vmatprep.subr.mxu0 0.0
    %2144 = vmatpush2.msra.mxu0 0.0
    %2145 = vmatprep.subr.mxu0 0.0
    %2146 = vmatpush2.msra.mxu0 0.0
    %2147 = vmatprep.subr.mxu0 0.0
    %2148 = vmatpush2.msra.mxu0 0.0
    %2149 = vmatprep.subr.mxu0 0.0
    %2150 = vmatpush2.msra.mxu0 0.0
    %2151 = vmatprep.subr.mxu0 0.0
    %2152 = vmatpush2.msra.mxu0 0.0
    %2153 = vmatprep.subr.mxu0 0.0
    %2154 = vmatpush2.msra.mxu0 0.0
    %2155 = vmatprep.subr.mxu0 0.0
    %2156 = vmatpush2.msra.mxu0 0.0
    %2157 = vmatprep.subr.mxu0 0.0
    %2158 = vmatpush2.msra.mxu0 0.0
    %2159 = vmatprep.subr.mxu0 0.0
    %2160 = vmatpush2.msra.mxu0 0.0
    %2161 = vmatprep.subr.mxu0 0.0
    %2162 = vmatpush2.msra.mxu0 0.0
    %2163 = vmatprep.subr.mxu0 0.0
    %2164 = vmatpush2.msra.mxu0 0.0
    %2165 = vmatprep.mubr.f32.mxu0 0.0
    %2166 = vmatmul.mubr.f32.gmra.mxu0 %v2026
    %v2167 = vpop.f32.mrf.mxu0
    %v2168 = vadd.f32 %v1366, %v2167
    %v2169 = vpop.f32.mrf.mxu0
    %2170 = vdwg.mxu0
    %v2171 = vadd.f32 %v2027, %v2097
    %v2172 = vxor.u32 %v2171, 2147483648
    %v2173 = vmul.f32 %v2172, 1.442695
    %v2174 = vpow.pop %v2173
    %v2175 = vadd.f32 %v2174, 1.0
    %v2176 = vrcp.pop %v2175
    %v2177 = vmul.f32 1.0, %v2176
    %v2178 = vadd.f32 %v2028, %v2099
    %v2179 = vxor.u32 %v2178, 2147483648
    %v2180 = vmul.f32 %v2179, 1.442695
    %v2181 = vpow.pop %v2180
    %v2182 = vadd.f32 %v2181, 1.0
    %v2183 = vrcp.pop %v2182
    %v2184 = vmul.f32 1.0, %v2183
    %v2185 = vmul.f32 %v2177, %v2168
    %v2186 = vadd.f32 %v2029, %v2185
    %v2187 = vtanh.pop %v2186
    %v2188 = vsub.f32 1.0, %v2184
    %v2189 = vmul.f32 %v2188, %v2187
    %v2190 = vmul.f32 %v2184, %v2026
    %v2191 = vadd.f32 %v2189, %v2190
    %v2192 = vld [vmem:[%s1000] sm:$0xff]
    %v2193 = vld [vmem:[%s1000 + $0x8] sm:$0xff]
    %v2194 = vld [vmem:[%s1000 + $0x10] sm:$0xff]
    %2195 = vmatprep.subr.mxu0 %v1348
    %2196 = vmatpush1.msra.mxu0 %v1347
    %2197 = vmatprep.subr.mxu0 %v1345
    %2198 = vmatpush1.msra.mxu0 %v1344
    %2199 = vmatprep.subr.mxu0 %v1342
    %2200 = vmatpush1.msra.mxu0 %v1341
    %2201 = vmatprep.subr.mxu0 %v1339
    %2202 = vmatpush1.msra.mxu0 %v1338
    %2203 = vmatprep.subr.mxu0 %v1336
    %2204 = vmatpush1.msra.mxu0 %v1335
    %2205 = vmatprep.subr.mxu0 %v1333
    %2206 = vmatpush1.msra.mxu0 %v1332
    %2207 = vmatprep.subr.mxu0 %v1330
    %2208 = vmatpush1.msra.mxu0 %v1329
    %2209 = vmatprep.subr.mxu0 %v1327
    %2210 = vmatpush1.msra.mxu0 %v1326
    %2211 = vmatprep.subr.mxu0 %v1324
    %2212 = vmatpush1.msra.mxu0 %v1323
    %2213 = vmatprep.subr.mxu0 %v1321
    %2214 = vmatpush1.msra.mxu0 %v1320
    %2215 = vmatprep.subr.mxu0 %v1318
    %2216 = vmatpush1.msra.mxu0 %v1317
    %2217 = vmatprep.subr.mxu0 %v1315
    %2218 = vmatpush1.msra.mxu0 %v1314
    %2219 = vmatprep.subr.mxu0 %v1312
    %2220 = vmatpush1.msra.mxu0 %v1311
    %2221 = vmatprep.subr.mxu0 %v1309
    %2222 = vmatpush1.msra.mxu0 %v1308
    %2223 = vmatprep.subr.mxu0 %v1306
    %2224 = vmatpush1.msra.mxu0 %v1305
    %2225 = vmatprep.subr.mxu0 %v1303
    %2226 = vmatpush1.msra.mxu0 %v1302
    %2227 = vmatprep.subr.mxu0 0.0
    %2228 = vmatpush2.msra.mxu0 0.0
    %2229 = vmatprep.subr.mxu0 0.0
    %2230 = vmatpush2.msra.mxu0 0.0
    %2231 = vmatprep.subr.mxu0 0.0
    %2232 = vmatpush2.msra.mxu0 0.0
    %2233 = vmatprep.subr.mxu0 0.0
    %2234 = vmatpush2.msra.mxu0 0.0
    %2235 = vmatprep.subr.mxu0 0.0
    %2236 = vmatpush2.msra.mxu0 0.0
    %2237 = vmatprep.subr.mxu0 0.0
    %2238 = vmatpush2.msra.mxu0 0.0
    %2239 = vmatprep.subr.mxu0 0.0
    %2240 = vmatpush2.msra.mxu0 0.0
    %2241 = vmatprep.subr.mxu0 0.0
    %2242 = vmatpush2.msra.mxu0 0.0
    %2243 = vmatprep.subr.mxu0 0.0
    %2244 = vmatpush2.msra.mxu0 0.0
    %2245 = vmatprep.subr.mxu0 0.0
    %2246 = vmatpush2.msra.mxu0 0.0
    %2247 = vmatprep.subr.mxu0 0.0
    %2248 = vmatpush2.msra.mxu0 0.0
    %2249 = vmatprep.subr.mxu0 0.0
    %2250 = vmatpush2.msra.mxu0 0.0
    %2251 = vmatprep.subr.mxu0 0.0
    %2252 = vmatpush2.msra.mxu0 0.0
    %2253 = vmatprep.subr.mxu0 0.0
    %2254 = vmatpush2.msra.mxu0 0.0
    %2255 = vmatprep.subr.mxu0 0.0
    %2256 = vmatpush2.msra.mxu0 0.0
    %2257 = vmatprep.subr.mxu0 0.0
    %2258 = vmatpush2.msra.mxu0 0.0
    %2259 = vmatprep.mubr.f32.mxu0 0.0
    %2260 = vmatmul.mubr.f32.gmra.mxu0 %v2191
    %v2261 = vpop.f32.mrf.mxu0
    %v2262 = vadd.f32 %v1358, %v2261
    %v2263 = vpop.f32.mrf.mxu0
    %v2264 = vadd.f32 %v1362, %v2263
    %2265 = vdwg.mxu0
    %2266 = vmatprep.subr.mxu0 0.0
    %2267 = vmatpush1.msra.mxu0 %v1349
    %2268 = vmatprep.subr.mxu0 0.0
    %2269 = vmatpush1.msra.mxu0 %v1346
    %2270 = vmatprep.subr.mxu0 0.0
    %2271 = vmatpush1.msra.mxu0 %v1343
    %2272 = vmatprep.subr.mxu0 0.0
    %2273 = vmatpush1.msra.mxu0 %v1340
    %2274 = vmatprep.subr.mxu0 0.0
    %2275 = vmatpush1.msra.mxu0 %v1337
    %2276 = vmatprep.subr.mxu0 0.0
    %2277 = vmatpush1.msra.mxu0 %v1334
    %2278 = vmatprep.subr.mxu0 0.0
    %2279 = vmatpush1.msra.mxu0 %v1331
    %2280 = vmatprep.subr.mxu0 0.0
    %2281 = vmatpush1.msra.mxu0 %v1328
    %2282 = vmatprep.subr.mxu0 0.0
    %2283 = vmatpush1.msra.mxu0 %v1325
    %2284 = vmatprep.subr.mxu0 0.0
    %2285 = vmatpush1.msra.mxu0 %v1322
    %2286 = vmatprep.subr.mxu0 0.0
    %2287 = vmatpush1.msra.mxu0 %v1319
    %2288 = vmatprep.subr.mxu0 0.0
    %2289 = vmatpush1.msra.mxu0 %v1316
    %2290 = vmatprep.subr.mxu0 0.0
    %2291 = vmatpush1.msra.mxu0 %v1313
    %2292 = vmatprep.subr.mxu0 0.0
    %2293 = vmatpush1.msra.mxu0 %v1310
    %2294 = vmatprep.subr.mxu0 0.0
    %2295 = vmatpush1.msra.mxu0 %v1307
    %2296 = vmatprep.subr.mxu0 0.0
    %2297 = vmatpush1.msra.mxu0 %v1304
    %2298 = vmatprep.subr.mxu0 0.0
    %2299 = vmatpush2.msra.mxu0 0.0
    %2300 = vmatprep.subr.mxu0 0.0
    %2301 = vmatpush2.msra.mxu0 0.0
    %2302 = vmatprep.subr.mxu0 0.0
    %2303 = vmatpush2.msra.mxu0 0.0
    %2304 = vmatprep.subr.mxu0 0.0
    %2305 = vmatpush2.msra.mxu0 0.0
    %2306 = vmatprep.subr.mxu0 0.0
    %2307 = vmatpush2.msra.mxu0 0.0
    %2308 = vmatprep.subr.mxu0 0.0
    %2309 = vmatpush2.msra.mxu0 0.0
    %2310 = vmatprep.subr.mxu0 0.0
    %2311 = vmatpush2.msra.mxu0 0.0
    %2312 = vmatprep.subr.mxu0 0.0
    %2313 = vmatpush2.msra.mxu0 0.0
    %2314 = vmatprep.subr.mxu0 0.0
    %2315 = vmatpush2.msra.mxu0 0.0
    %2316 = vmatprep.subr.mxu0 0.0
    %2317 = vmatpush2.msra.mxu0 0.0
    %2318 = vmatprep.subr.mxu0 0.0
    %2319 = vmatpush2.msra.mxu0 0.0
    %2320 = vmatprep.subr.mxu0 0.0
    %2321 = vmatpush2.msra.mxu0 0.0
    %2322 = vmatprep.subr.mxu0 0.0
    %2323 = vmatpush2.msra.mxu0 0.0
    %2324 = vmatprep.subr.mxu0 0.0
    %2325 = vmatpush2.msra.mxu0 0.0
    %2326 = vmatprep.subr.mxu0 0.0
    %2327 = vmatpush2.msra.mxu0 0.0
    %2328 = vmatprep.subr.mxu0 0.0
    %2329 = vmatpush2.msra.mxu0 0.0
    %2330 = vmatprep.mubr.f32.mxu0 0.0
    %2331 = vmatmul.mubr.f32.gmra.mxu0 %v2191
    %v2332 = vpop.f32.mrf.mxu0
    %v2333 = vadd.f32 %v1366, %v2332
    %v2334 = vpop.f32.mrf.mxu0
    %2335 = vdwg.mxu0
    %v2336 = vadd.f32 %v2192, %v2262
    %v2337 = vxor.u32 %v2336, 2147483648
    %v2338 = vmul.f32 %v2337, 1.442695
    %v2339 = vpow.pop %v2338
    %v2340 = vadd.f32 %v2339, 1.0
    %v2341 = vrcp.pop %v2340
    %v2342 = vmul.f32 1.0, %v2341
    %v2343 = vadd.f32 %v2193, %v2264
    %v2344 = vxor.u32 %v2343, 2147483648
    %v2345 = vmul.f32 %v2344, 1.442695
    %v2346 = vpow.pop %v2345
    %v2347 = vadd.f32 %v2346, 1.0
    %v2348 = vrcp.pop %v2347
    %v2349 = vmul.f32 1.0, %v2348
    %v2350 = vmul.f32 %v2342, %v2333
    %v2351 = vadd.f32 %v2194, %v2350
    %v2352 = vtanh.pop %v2351
    %v2353 = vsub.f32 1.0, %v2349
    %v2354 = vmul.f32 %v2353, %v2352
    %v2355 = vmul.f32 %v2349, %v2191
    %v2356 = vadd.f32 %v2354, %v2355
    %v2357 = vld [vmem:[%s1149] sm:$0xff]
    %v2358 = vld [vmem:[%s1149 + $0x8] sm:$0xff]
    %v2359 = vld [vmem:[%s1149 + $0x10] sm:$0xff]
    %2360 = vmatprep.subr.mxu0 %v1348
    %2361 = vmatpush1.msra.mxu0 %v1347
    %2362 = vmatprep.subr.mxu0 %v1345
    %2363 = vmatpush1.msra.mxu0 %v1344
    %2364 = vmatprep.subr.mxu0 %v1342
    %2365 = vmatpush1.msra.mxu0 %v1341
    %2366 = vmatprep.subr.mxu0 %v1339
    %2367 = vmatpush1.msra.mxu0 %v1338
    %2368 = vmatprep.subr.mxu0 %v1336
    %2369 = vmatpush1.msra.mxu0 %v1335
    %2370 = vmatprep.subr.mxu0 %v1333
    %2371 = vmatpush1.msra.mxu0 %v1332
    %2372 = vmatprep.subr.mxu0 %v1330
    %2373 = vmatpush1.msra.mxu0 %v1329
    %2374 = vmatprep.subr.mxu0 %v1327
    %2375 = vmatpush1.msra.mxu0 %v1326
    %2376 = vmatprep.subr.mxu0 %v1324
    %2377 = vmatpush1.msra.mxu0 %v1323
    %2378 = vmatprep.subr.mxu0 %v1321
    %2379 = vmatpush1.msra.mxu0 %v1320
    %2380 = vmatprep.subr.mxu0 %v1318
    %2381 = vmatpush1.msra.mxu0 %v1317
    %2382 = vmatprep.subr.mxu0 %v1315
    %2383 = vmatpush1.msra.mxu0 %v1314
    %2384 = vmatprep.subr.mxu0 %v1312
    %2385 = vmatpush1.msra.mxu0 %v1311
    %2386 = vmatprep.subr.mxu0 %v1309
    %2387 = vmatpush1.msra.mxu0 %v1308
    %2388 = vmatprep.subr.mxu0 %v1306
    %2389 = vmatpush1.msra.mxu0 %v1305
    %2390 = vmatprep.subr.mxu0 %v1303
    %2391 = vmatpush1.msra.mxu0 %v1302
    %2392 = vmatprep.subr.mxu0 0.0
    %2393 = vmatpush2.msra.mxu0 0.0
    %2394 = vmatprep.subr.mxu0 0.0
    %2395 = vmatpush2.msra.mxu0 0.0
    %2396 = vmatprep.subr.mxu0 0.0
    %2397 = vmatpush2.msra.mxu0 0.0
    %2398 = vmatprep.subr.mxu0 0.0
    %2399 = vmatpush2.msra.mxu0 0.0
    %2400 = vmatprep.subr.mxu0 0.0
    %2401 = vmatpush2.msra.mxu0 0.0
    %2402 = vmatprep.subr.mxu0 0.0
    %2403 = vmatpush2.msra.mxu0 0.0
    %2404 = vmatprep.subr.mxu0 0.0
    %2405 = vmatpush2.msra.mxu0 0.0
    %2406 = vmatprep.subr.mxu0 0.0
    %2407 = vmatpush2.msra.mxu0 0.0
    %2408 = vmatprep.subr.mxu0 0.0
    %2409 = vmatpush2.msra.mxu0 0.0
    %2410 = vmatprep.subr.mxu0 0.0
    %2411 = vmatpush2.msra.mxu0 0.0
    %2412 = vmatprep.subr.mxu0 0.0
    %2413 = vmatpush2.msra.mxu0 0.0
    %2414 = vmatprep.subr.mxu0 0.0
    %2415 = vmatpush2.msra.mxu0 0.0
    %2416 = vmatprep.subr.mxu0 0.0
    %2417 = vmatpush2.msra.mxu0 0.0
    %2418 = vmatprep.subr.mxu0 0.0
    %2419 = vmatpush2.msra.mxu0 0.0
    %2420 = vmatprep.subr.mxu0 0.0
    %2421 = vmatpush2.msra.mxu0 0.0
    %2422 = vmatprep.subr.mxu0 0.0
    %2423 = vmatpush2.msra.mxu0 0.0
    %2424 = vmatprep.mubr.f32.mxu0 0.0
    %2425 = vmatmul.mubr.f32.gmra.mxu0 %v2356
    %v2426 = vpop.f32.mrf.mxu0
    %v2427 = vadd.f32 %v1358, %v2426
    %v2428 = vpop.f32.mrf.mxu0
    %v2429 = vadd.f32 %v1362, %v2428
    %2430 = vdwg.mxu0
    %2431 = vmatprep.subr.mxu0 0.0
    %2432 = vmatpush1.msra.mxu0 %v1349
    %2433 = vmatprep.subr.mxu0 0.0
    %2434 = vmatpush1.msra.mxu0 %v1346
    %2435 = vmatprep.subr.mxu0 0.0
    %2436 = vmatpush1.msra.mxu0 %v1343
    %2437 = vmatprep.subr.mxu0 0.0
    %2438 = vmatpush1.msra.mxu0 %v1340
    %2439 = vmatprep.subr.mxu0 0.0
    %2440 = vmatpush1.msra.mxu0 %v1337
    %2441 = vmatprep.subr.mxu0 0.0
    %2442 = vmatpush1.msra.mxu0 %v1334
    %2443 = vmatprep.subr.mxu0 0.0
    %2444 = vmatpush1.msra.mxu0 %v1331
    %2445 = vmatprep.subr.mxu0 0.0
    %2446 = vmatpush1.msra.mxu0 %v1328
    %2447 = vmatprep.subr.mxu0 0.0
    %2448 = vmatpush1.msra.mxu0 %v1325
    %2449 = vmatprep.subr.mxu0 0.0
    %2450 = vmatpush1.msra.mxu0 %v1322
    %2451 = vmatprep.subr.mxu0 0.0
    %2452 = vmatpush1.msra.mxu0 %v1319
    %2453 = vmatprep.subr.mxu0 0.0
    %2454 = vmatpush1.msra.mxu0 %v1316
    %2455 = vmatprep.subr.mxu0 0.0
    %2456 = vmatpush1.msra.mxu0 %v1313
    %2457 = vmatprep.subr.mxu0 0.0
    %2458 = vmatpush1.msra.mxu0 %v1310
    %2459 = vmatprep.subr.mxu0 0.0
    %2460 = vmatpush1.msra.mxu0 %v1307
    %2461 = vmatprep.subr.mxu0 0.0
    %2462 = vmatpush1.msra.mxu0 %v1304
    %2463 = vmatprep.subr.mxu0 0.0
    %2464 = vmatpush2.msra.mxu0 0.0
    %2465 = vmatprep.subr.mxu0 0.0
    %2466 = vmatpush2.msra.mxu0 0.0
    %2467 = vmatprep.subr.mxu0 0.0
    %2468 = vmatpush2.msra.mxu0 0.0
    %2469 = vmatprep.subr.mxu0 0.0
    %2470 = vmatpush2.msra.mxu0 0.0
    %2471 = vmatprep.subr.mxu0 0.0
    %2472 = vmatpush2.msra.mxu0 0.0
    %2473 = vmatprep.subr.mxu0 0.0
    %2474 = vmatpush2.msra.mxu0 0.0
    %2475 = vmatprep.subr.mxu0 0.0
    %2476 = vmatpush2.msra.mxu0 0.0
    %2477 = vmatprep.subr.mxu0 0.0
    %2478 = vmatpush2.msra.mxu0 0.0
    %2479 = vmatprep.subr.mxu0 0.0
    %2480 = vmatpush2.msra.mxu0 0.0
    %2481 = vmatprep.subr.mxu0 0.0
    %2482 = vmatpush2.msra.mxu0 0.0
    %2483 = vmatprep.subr.mxu0 0.0
    %2484 = vmatpush2.msra.mxu0 0.0
    %2485 = vmatprep.subr.mxu0 0.0
    %2486 = vmatpush2.msra.mxu0 0.0
    %2487 = vmatprep.subr.mxu0 0.0
    %2488 = vmatpush2.msra.mxu0 0.0
    %2489 = vmatprep.subr.mxu0 0.0
    %2490 = vmatpush2.msra.mxu0 0.0
    %2491 = vmatprep.subr.mxu0 0.0
    %2492 = vmatpush2.msra.mxu0 0.0
    %2493 = vmatprep.subr.mxu0 0.0
    %2494 = vmatpush2.msra.mxu0 0.0
    %2495 = vmatprep.mubr.f32.mxu0 0.0
    %2496 = vmatmul.mubr.f32.gmra.mxu0 %v2356
    %v2497 = vpop.f32.mrf.mxu0
    %v2498 = vadd.f32 %v1366, %v2497
    %v2499 = vpop.f32.mrf.mxu0
    %2500 = vdwg.mxu0
    %v2501 = vadd.f32 %v2357, %v2427
    %v2502 = vxor.u32 %v2501, 2147483648
    %v2503 = vmul.f32 %v2502, 1.442695
    %v2504 = vpow.pop %v2503
    %v2505 = vadd.f32 %v2504, 1.0
    %v2506 = vrcp.pop %v2505
    %v2507 = vmul.f32 1.0, %v2506
    %v2508 = vadd.f32 %v2358, %v2429
    %v2509 = vxor.u32 %v2508, 2147483648
    %v2510 = vmul.f32 %v2509, 1.442695
    %v2511 = vpow.pop %v2510
    %v2512 = vadd.f32 %v2511, 1.0
    %v2513 = vrcp.pop %v2512
    %v2514 = vmul.f32 1.0, %v2513
    %v2515 = vmul.f32 %v2507, %v2498
    %v2516 = vadd.f32 %v2359, %v2515
    %v2517 = vtanh.pop %v2516
    %v2518 = vsub.f32 1.0, %v2514
    %v2519 = vmul.f32 %v2518, %v2517
    %v2520 = vmul.f32 %v2514, %v2356
    %v2521 = vadd.f32 %v2519, %v2520
    %v2522 = vld [vmem:[%s1298] sm:$0xff]
    %v2523 = vld [vmem:[%s1298 + $0x8] sm:$0xff]
    %v2524 = vld [vmem:[%s1298 + $0x10] sm:$0xff]
    %2525 = vmatprep.subr.mxu0 %v1348
    %2526 = vmatpush1.msra.mxu0 %v1347
    %2527 = vmatprep.subr.mxu0 %v1345
    %2528 = vmatpush1.msra.mxu0 %v1344
    %2529 = vmatprep.subr.mxu0 %v1342
    %2530 = vmatpush1.msra.mxu0 %v1341
    %2531 = vmatprep.subr.mxu0 %v1339
    %2532 = vmatpush1.msra.mxu0 %v1338
    %2533 = vmatprep.subr.mxu0 %v1336
    %2534 = vmatpush1.msra.mxu0 %v1335
    %2535 = vmatprep.subr.mxu0 %v1333
    %2536 = vmatpush1.msra.mxu0 %v1332
    %2537 = vmatprep.subr.mxu0 %v1330
    %2538 = vmatpush1.msra.mxu0 %v1329
    %2539 = vmatprep.subr.mxu0 %v1327
    %2540 = vmatpush1.msra.mxu0 %v1326
    %2541 = vmatprep.subr.mxu0 %v1324
    %2542 = vmatpush1.msra.mxu0 %v1323
    %2543 = vmatprep.subr.mxu0 %v1321
    %2544 = vmatpush1.msra.mxu0 %v1320
    %2545 = vmatprep.subr.mxu0 %v1318
    %2546 = vmatpush1.msra.mxu0 %v1317
    %2547 = vmatprep.subr.mxu0 %v1315
    %2548 = vmatpush1.msra.mxu0 %v1314
    %2549 = vmatprep.subr.mxu0 %v1312
    %2550 = vmatpush1.msra.mxu0 %v1311
    %2551 = vmatprep.subr.mxu0 %v1309
    %2552 = vmatpush1.msra.mxu0 %v1308
    %2553 = vmatprep.subr.mxu0 %v1306
    %2554 = vmatpush1.msra.mxu0 %v1305
    %2555 = vmatprep.subr.mxu0 %v1303
    %2556 = vmatpush1.msra.mxu0 %v1302
    %2557 = vmatprep.subr.mxu0 0.0
    %2558 = vmatpush2.msra.mxu0 0.0
    %2559 = vmatprep.subr.mxu0 0.0
    %2560 = vmatpush2.msra.mxu0 0.0
    %2561 = vmatprep.subr.mxu0 0.0
    %2562 = vmatpush2.msra.mxu0 0.0
    %2563 = vmatprep.subr.mxu0 0.0
    %2564 = vmatpush2.msra.mxu0 0.0
    %2565 = vmatprep.subr.mxu0 0.0
    %2566 = vmatpush2.msra.mxu0 0.0
    %2567 = vmatprep.subr.mxu0 0.0
    %2568 = vmatpush2.msra.mxu0 0.0
    %2569 = vmatprep.subr.mxu0 0.0
    %2570 = vmatpush2.msra.mxu0 0.0
    %2571 = vmatprep.subr.mxu0 0.0
    %2572 = vmatpush2.msra.mxu0 0.0
    %2573 = vmatprep.subr.mxu0 0.0
    %2574 = vmatpush2.msra.mxu0 0.0
    %2575 = vmatprep.subr.mxu0 0.0
    %2576 = vmatpush2.msra.mxu0 0.0
    %2577 = vmatprep.subr.mxu0 0.0
    %2578 = vmatpush2.msra.mxu0 0.0
    %2579 = vmatprep.subr.mxu0 0.0
    %2580 = vmatpush2.msra.mxu0 0.0
    %2581 = vmatprep.subr.mxu0 0.0
    %2582 = vmatpush2.msra.mxu0 0.0
    %2583 = vmatprep.subr.mxu0 0.0
    %2584 = vmatpush2.msra.mxu0 0.0
    %2585 = vmatprep.subr.mxu0 0.0
    %2586 = vmatpush2.msra.mxu0 0.0
    %2587 = vmatprep.subr.mxu0 0.0
    %2588 = vmatpush2.msra.mxu0 0.0
    %2589 = vmatprep.mubr.f32.mxu0 0.0
    %2590 = vmatmul.mubr.f32.gmra.mxu0 %v2521
    %v2591 = vpop.f32.mrf.mxu0
    %v2592 = vadd.f32 %v1358, %v2591
    %v2593 = vpop.f32.mrf.mxu0
    %v2594 = vadd.f32 %v1362, %v2593
    %2595 = vdwg.mxu0
    %2596 = vmatprep.subr.mxu0 0.0
    %2597 = vmatpush1.msra.mxu0 %v1349
    %2598 = vmatprep.subr.mxu0 0.0
    %2599 = vmatpush1.msra.mxu0 %v1346
    %2600 = vmatprep.subr.mxu0 0.0
    %2601 = vmatpush1.msra.mxu0 %v1343
    %2602 = vmatprep.subr.mxu0 0.0
    %2603 = vmatpush1.msra.mxu0 %v1340
    %2604 = vmatprep.subr.mxu0 0.0
    %2605 = vmatpush1.msra.mxu0 %v1337
    %2606 = vmatprep.subr.mxu0 0.0
    %2607 = vmatpush1.msra.mxu0 %v1334
    %2608 = vmatprep.subr.mxu0 0.0
    %2609 = vmatpush1.msra.mxu0 %v1331
    %2610 = vmatprep.subr.mxu0 0.0
    %2611 = vmatpush1.msra.mxu0 %v1328
    %2612 = vmatprep.subr.mxu0 0.0
    %2613 = vmatpush1.msra.mxu0 %v1325
    %2614 = vmatprep.subr.mxu0 0.0
    %2615 = vmatpush1.msra.mxu0 %v1322
    %2616 = vmatprep.subr.mxu0 0.0
    %2617 = vmatpush1.msra.mxu0 %v1319
    %2618 = vmatprep.subr.mxu0 0.0
    %2619 = vmatpush1.msra.mxu0 %v1316
    %2620 = vmatprep.subr.mxu0 0.0
    %2621 = vmatpush1.msra.mxu0 %v1313
    %2622 = vmatprep.subr.mxu0 0.0
    %2623 = vmatpush1.msra.mxu0 %v1310
    %2624 = vmatprep.subr.mxu0 0.0
    %2625 = vmatpush1.msra.mxu0 %v1307
    %2626 = vmatprep.subr.mxu0 0.0
    %2627 = vmatpush1.msra.mxu0 %v1304
    %2628 = vmatprep.subr.mxu0 0.0
    %2629 = vmatpush2.msra.mxu0 0.0
    %2630 = vmatprep.subr.mxu0 0.0
    %2631 = vmatpush2.msra.mxu0 0.0
    %2632 = vmatprep.subr.mxu0 0.0
    %2633 = vmatpush2.msra.mxu0 0.0
    %2634 = vmatprep.subr.mxu0 0.0
    %2635 = vmatpush2.msra.mxu0 0.0
    %2636 = vmatprep.subr.mxu0 0.0
    %2637 = vmatpush2.msra.mxu0 0.0
    %2638 = vmatprep.subr.mxu0 0.0
    %2639 = vmatpush2.msra.mxu0 0.0
    %2640 = vmatprep.subr.mxu0 0.0
    %2641 = vmatpush2.msra.mxu0 0.0
    %2642 = vmatprep.subr.mxu0 0.0
    %2643 = vmatpush2.msra.mxu0 0.0
    %2644 = vmatprep.subr.mxu0 0.0
    %2645 = vmatpush2.msra.mxu0 0.0
    %2646 = vmatprep.subr.mxu0 0.0
    %2647 = vmatpush2.msra.mxu0 0.0
    %2648 = vmatprep.subr.mxu0 0.0
    %2649 = vmatpush2.msra.mxu0 0.0
    %2650 = vmatprep.subr.mxu0 0.0
    %2651 = vmatpush2.msra.mxu0 0.0
    %2652 = vmatprep.subr.mxu0 0.0
    %2653 = vmatpush2.msra.mxu0 0.0
    %2654 = vmatprep.subr.mxu0 0.0
    %2655 = vmatpush2.msra.mxu0 0.0
    %2656 = vmatprep.subr.mxu0 0.0
    %2657 = vmatpush2.msra.mxu0 0.0
    %2658 = vmatprep.subr.mxu0 0.0
    %2659 = vmatpush2.msra.mxu0 0.0
    %2660 = vmatprep.mubr.f32.mxu0 0.0
    %2661 = vmatmul.mubr.f32.gmra.mxu0 %v2521
    %v2662 = vpop.f32.mrf.mxu0
    %v2663 = vadd.f32 %v1366, %v2662
    %v2664 = vpop.f32.mrf.mxu0
    %2665 = vdwg.mxu0
    %v2666 = vadd.f32 %v2522, %v2592
    %v2667 = vxor.u32 %v2666, 2147483648
    %v2668 = vmul.f32 %v2667, 1.442695
    %v2669 = vpow.pop %v2668
    %v2670 = vadd.f32 %v2669, 1.0
    %v2671 = vrcp.pop %v2670
    %v2672 = vmul.f32 1.0, %v2671
    %v2673 = vadd.f32 %v2523, %v2594
    %v2674 = vxor.u32 %v2673, 2147483648
    %v2675 = vmul.f32 %v2674, 1.442695
    %v2676 = vpow.pop %v2675
    %v2677 = vadd.f32 %v2676, 1.0
    %v2678 = vrcp.pop %v2677
    %v2679 = vmul.f32 1.0, %v2678
    %v2680 = vmul.f32 %v2672, %v2663
    %v2681 = vadd.f32 %v2524, %v2680
    %v2682 = vtanh.pop %v2681
    %v2683 = vsub.f32 1.0, %v2679
    %v2684 = vmul.f32 %v2683, %v2682
    %v2685 = vmul.f32 %v2679, %v2521
    %v2686 = vadd.f32 %v2684, %v2685
    %v2687 = vld [vmem:[%s5] sm:$0xff]
    %v2688 = vld [vmem:[%s5 + $0x8] sm:$0xff]
    %v2689 = vld [vmem:[%s5 + $0x10] sm:$0xff]
    %v2690 = vld [vmem:[%s5 + $0x18] sm:$0xff]
    %v2691 = vld [vmem:[%s5 + $0x20] sm:$0xff]
    %v2692 = vld [vmem:[%s5 + $0x28] sm:$0xff]
    %v2693 = vld [vmem:[%s5 + $0x30] sm:$0xff]
    %v2694 = vld [vmem:[%s5 + $0x38] sm:$0xff]
    %v2695 = vld [vmem:[%s5 + $0x40] sm:$0xff]
    %v2696 = vld [vmem:[%s5 + $0x48] sm:$0xff]
    %v2697 = vld [vmem:[%s5 + $0x50] sm:$0xff]
    %v2698 = vld [vmem:[%s5 + $0x58] sm:$0xff]
    %v2699 = vld [vmem:[%s5 + $0x60] sm:$0xff]
    %v2700 = vld [vmem:[%s5 + $0x68] sm:$0xff]
    %v2701 = vld [vmem:[%s5 + $0x70] sm:$0xff]
    %v2702 = vld [vmem:[%s5 + $0x78] sm:$0xff]
    %v2703 = vld [vmem:[%s6] sm:$0x1]
    %v2705 = vlaneseq
    %v2706 = vshrl.u32 %v2705, 7
    %v2707 = vsub.s32 0, %v2706
    %v2708 = vrot.slane %v2703, %v2707
    %2710 = vmatprep.subr.mxu0 0.0
    %2711 = vmatpush1.msra.mxu0 %v2702
    %2712 = vmatprep.subr.mxu0 0.0
    %2713 = vmatpush1.msra.mxu0 %v2701
    %2714 = vmatprep.subr.mxu0 0.0
    %2715 = vmatpush1.msra.mxu0 %v2700
    %2716 = vmatprep.subr.mxu0 0.0
    %2717 = vmatpush1.msra.mxu0 %v2699
    %2718 = vmatprep.subr.mxu0 0.0
    %2719 = vmatpush1.msra.mxu0 %v2698
    %2720 = vmatprep.subr.mxu0 0.0
    %2721 = vmatpush1.msra.mxu0 %v2697
    %2722 = vmatprep.subr.mxu0 0.0
    %2723 = vmatpush1.msra.mxu0 %v2696
    %2724 = vmatprep.subr.mxu0 0.0
    %2725 = vmatpush1.msra.mxu0 %v2695
    %2726 = vmatprep.subr.mxu0 0.0
    %2727 = vmatpush1.msra.mxu0 %v2694
    %2728 = vmatprep.subr.mxu0 0.0
    %2729 = vmatpush1.msra.mxu0 %v2693
    %2730 = vmatprep.subr.mxu0 0.0
    %2731 = vmatpush1.msra.mxu0 %v2692
    %2732 = vmatprep.subr.mxu0 0.0
    %2733 = vmatpush1.msra.mxu0 %v2691
    %2734 = vmatprep.subr.mxu0 0.0
    %2735 = vmatpush1.msra.mxu0 %v2690
    %2736 = vmatprep.subr.mxu0 0.0
    %2737 = vmatpush1.msra.mxu0 %v2689
    %2738 = vmatprep.subr.mxu0 0.0
    %2739 = vmatpush1.msra.mxu0 %v2688
    %2740 = vmatprep.subr.mxu0 0.0
    %2741 = vmatpush1.msra.mxu0 %v2687
    %2742 = vmatprep.subr.mxu0 0.0
    %2743 = vmatpush2.msra.mxu0 0.0
    %2744 = vmatprep.subr.mxu0 0.0
    %2745 = vmatpush2.msra.mxu0 0.0
    %2746 = vmatprep.subr.mxu0 0.0
    %2747 = vmatpush2.msra.mxu0 0.0
    %2748 = vmatprep.subr.mxu0 0.0
    %2749 = vmatpush2.msra.mxu0 0.0
    %2750 = vmatprep.subr.mxu0 0.0
    %2751 = vmatpush2.msra.mxu0 0.0
    %2752 = vmatprep.subr.mxu0 0.0
    %2753 = vmatpush2.msra.mxu0 0.0
    %2754 = vmatprep.subr.mxu0 0.0
    %2755 = vmatpush2.msra.mxu0 0.0
    %2756 = vmatprep.subr.mxu0 0.0
    %2757 = vmatpush2.msra.mxu0 0.0
    %2758 = vmatprep.subr.mxu0 0.0
    %2759 = vmatpush2.msra.mxu0 0.0
    %2760 = vmatprep.subr.mxu0 0.0
    %2761 = vmatpush2.msra.mxu0 0.0
    %2762 = vmatprep.subr.mxu0 0.0
    %2763 = vmatpush2.msra.mxu0 0.0
    %2764 = vmatprep.subr.mxu0 0.0
    %2765 = vmatpush2.msra.mxu0 0.0
    %2766 = vmatprep.subr.mxu0 0.0
    %2767 = vmatpush2.msra.mxu0 0.0
    %2768 = vmatprep.subr.mxu0 0.0
    %2769 = vmatpush2.msra.mxu0 0.0
    %2770 = vmatprep.subr.mxu0 0.0
    %2771 = vmatpush2.msra.mxu0 0.0
    %2772 = vmatprep.subr.mxu0 0.0
    %2773 = vmatpush2.msra.mxu0 0.0
    %2774 = vmatprep.mubr.f32.mxu0 0.0
    %2775 = vmatmul.mubr.f32.gmra.mxu0 %v2686
    %v2776 = vpop.f32.mrf.mxu0
    %v2777 = vadd.f32 %v2708, %v2776
    %v2778 = vpop.f32.mrf.mxu0
    %2779 = vdwg.mxu0
    %v2780 = vmax.f32 %v2777, 0.0
    %vm2781 = vcmp.ne.f32.partialorder %v2777, %v2777
    %v2782 = vadd.f32 %v2777, 0.0
    %v2783 = vand.u32 2147483647, %v2777
    %v2784 = vsub.f32 0.0, %v2783
    %v2785 = vmul.f32 %v2784, 1.442695
    %v2786 = vpow.pop %v2785
    %v2787 = vadd.f32 %v2786, 1.0
    %v2788 = vlog2.pop %v2787
    %v2789 = vmul.f32 %v2788, 0.6931472
    %v2790 = vmul.f32 -0.5, %v2786
    %v2791 = vadd.f32 %v2790, 1.0
    %v2792 = vmul.f32 %v2791, %v2786
    %v2793 = vand.u32 2147483647, %v2786
    %vm2794 = vcmp.lt.f32.partialorder %v2793, 0.0004427343
    %v2795 = vsel %vm2794, %v2792, %v2789
    %v2796 = vadd.f32 %v2780, %v2795
    %v2797 = vsel %vm2781, %v2782, %v2796
    %vm2798 = vcmask 64512
    %2799 = vst.msk [vmem:[%s7] sm:$0xff] %vm2798, %v2797
    // Predicated region
    $region34: #{traj_model_linear_forward.1} parent=1 // pred_check
      _
    $region35: #{traj_model_linear_forward.1} parent=1 // pred_check_branch
      %2801 = sbr.rel (0) target = $region37
    $region36: #{traj_model_linear_forward.1} parent=1 // pred_region
      _
    $region37: #{traj_model_linear_forward.1} parent=1 // pred_fallthru
      _
    // Predicated region
    $region38: #{traj_model_linear_forward.1} parent=1 // pred_check
      _
    $region39: #{traj_model_linear_forward.1} parent=1 // pred_check_branch
      %2803 = sbr.rel (0) target = $region41
    $region40: #{traj_model_linear_forward.1} parent=1 // pred_region
      _
    $region41: #{traj_model_linear_forward.1} parent=1 // pred_fallthru
      _
    %2804 = vsyncpa [#allocation4], 1

</llo_original>
